<compile_context>
chip_gen: v7x
topology: tpu7x:2x2x1
jax: 0.10.0
libtpu: 0.0.40
codegen_flags: <defaults>
</compile_context>

<pallas_src>
import jax
import jax.numpy as jnp
from jax import lax
from jax.experimental import pallas as pl
from jax.experimental.pallas import tpu as pltpu


def _make_bigru_layer_kernel(n_halves, T, B, H):
    """Build the fused (fwd+bwd) kernel for one bidirectional GRU layer.

    Ref order (all whole-array VMEM blocks; no grid — the recurrence is a
    serial in-kernel loop over T):
      inputs : lengths (B,1) i32,
               x_0..x_{n_halves-1} (T*B, Hh)   layer input, per-direction halves
               wih (2, n_halves, Hh, 3H) bf16, bih (2, 1, 3H) f32,
               whh (2, H, 3H) bf16,            bhn (2, 1, H) f32
      outputs: out_f (T*B, H), out_b (T*B, H), hN_f (B, H) f32, hN_b (B, H) f32
      scratch: gi_f (T*B, 3H) f32, gi_b (T*B, 3H) f32
    """
    G = 3 * H

    def kernel(*refs):
        len_ref = refs[0]
        x_refs = refs[1:1 + n_halves]
        wih_ref, bih_ref, whh_ref, bhn_ref = refs[1 + n_halves:5 + n_halves]
        out_f_ref, out_b_ref, hNf_ref, hNb_ref = refs[5 + n_halves:9 + n_halves]
        gi_f_ref, gi_b_ref = refs[9 + n_halves:11 + n_halves]

        lengths = len_ref[...]                       # (B, 1) int32, loaded once
        whh_f = whh_ref[0]                           # (H, 3H) bf16 (pre-cast)
        whh_b = whh_ref[1]
        bih = bih_ref[...]                           # (2, 1, 3H) f32
        bhn = bhn_ref[...]                           # (2, 1, H)  f32
        # hoist per-step bias broadcasts out of the loop
        bhn_f = jnp.broadcast_to(bhn[0], (B, H))
        bhn_b = jnp.broadcast_to(bhn[1], (B, H))

        # ---- input projection (time-invariant): one big MXU matmul per
        # direction over all T timesteps at once, written to VMEM scratch.
        # gi never touches HBM.
        xs = [x_refs[j][...].astype(jnp.bfloat16) for j in range(n_halves)]
        for d, gi_dst in ((0, gi_f_ref), (1, gi_b_ref)):
            acc = jnp.dot(xs[0], wih_ref[d, 0],
                          preferred_element_type=jnp.float32)
            for j in range(1, n_halves):
                acc = acc + jnp.dot(xs[j], wih_ref[d, j],
                                    preferred_element_type=jnp.float32)
            gi_dst[...] = acc + bih[d]               # bias = b_ih + [b_hr,b_hz,0]

        def gates(gi, gh, bhn_n, h):
            # PyTorch gate order (r, z, n); b_hh_n stays inside the r*(.) term.
            r = jax.nn.sigmoid(gi[:, 0:H] + gh[:, 0:H])
            z = jax.nn.sigmoid(gi[:, H:2 * H] + gh[:, H:2 * H])
            n = jnp.tanh(gi[:, 2 * H:] + r * (gh[:, 2 * H:] + bhn_n))
            return n + z * (h - n)                   # == (1-z)*n + z*h

        def step(i, carry):
            h_f, h_b = carry                         # (B, H) f32 vreg carries
            # fwd walks t=i, bwd walks t=T-1-i: both affine in the loop counter.
            rf = pl.multiple_of(i * B, B)
            rb = pl.multiple_of((T - 1 - i) * B, B)
            gi_f = gi_f_ref[pl.ds(rf, B), :]         # (B, 3H) f32
            gi_b = gi_b_ref[pl.ds(rb, B), :]
            # two back-to-back recurrent matmuls (independent -> MXU pipelines)
            gh_f = jnp.dot(h_f.astype(jnp.bfloat16), whh_f,
                           preferred_element_type=jnp.float32)
            gh_b = jnp.dot(h_b.astype(jnp.bfloat16), whh_b,
                           preferred_element_type=jnp.float32)
            hf_new = gates(gi_f, gh_f, bhn_f, h_f)
            hb_new = gates(gi_b, gh_b, bhn_b, h_b)
            # packed-sequence semantics: hidden frozen / output zero on padding
            valid_f = i < lengths                    # (B, 1) bool
            valid_b = (T - 1 - i) < lengths
            out_f_ref[pl.ds(rf, B), :] = jnp.where(
                valid_f, hf_new, 0.0).astype(out_f_ref.dtype)
            out_b_ref[pl.ds(rb, B), :] = jnp.where(
                valid_b, hb_new, 0.0).astype(out_b_ref.dtype)
            return (jnp.where(valid_f, hf_new, h_f),
                    jnp.where(valid_b, hb_new, h_b))

        h0 = jnp.zeros((B, H), jnp.float32)          # hidden=None -> zeros
        # partial unroll: LLO scheduling visibility without vreg spills at big T
        h_f, h_b = lax.fori_loop(0, T, step, (h0, h0), unroll=min(T, 8))
        hNf_ref[...] = h_f.astype(hNf_ref.dtype)
        hNb_ref[...] = h_b.astype(hNb_ref.dtype)

    return kernel


def bigru_layer(x_halves, lengths_2d, wih_t, bih, whh_t, bhn,
                T, B, H, out_dtype):
    """One bidirectional GRU layer: both directions fused in one pallas_call."""
    n_halves = len(x_halves)
    G = 3 * H
    kernel = _make_bigru_layer_kernel(n_halves, T, B, H)

    vmem_spec = pl.BlockSpec(memory_space=pltpu.MemorySpace.VMEM)
    n_inputs = 1 + n_halves + 4

    # Explicit VMEM budget (single invocation => no double-buffering):
    # inputs + outputs + gi scratches, with 2x headroom.
    out_isize = jnp.dtype(out_dtype).itemsize
    bytes_needed = (
        int(lengths_2d.size) * 4
        + sum(int(x.size) * x.dtype.itemsize for x in x_halves)
        + int(wih_t.size) * 2 + int(whh_t.size) * 2
        + int(bih.size) * 4 + int(bhn.size) * 4
        + 2 * T * B * H * out_isize + 2 * B * H * 4
        + 2 * T * B * G * 4)
    vmem_limit = int(min(max(2 * bytes_needed, 16 << 20), 100 << 20))
    # TODO(synk): for long sequences that exceed the per-core VMEM budget
    # (notably v7x's 64 MiB), switch x/gi/out to time-chunked manual double
    # buffering (memory_space=pl.ANY + make_async_copy); h stays a loop carry.

    out_f, out_b, hN_f, hN_b = pl.pallas_call(
        kernel,
        out_shape=(jax.ShapeDtypeStruct((T * B, H), out_dtype),
                   jax.ShapeDtypeStruct((T * B, H), out_dtype),
                   jax.ShapeDtypeStruct((B, H), jnp.float32),
                   jax.ShapeDtypeStruct((B, H), jnp.float32)),
        in_specs=[vmem_spec] * n_inputs,
        out_specs=(vmem_spec, vmem_spec, vmem_spec, vmem_spec),
        scratch_shapes=[pltpu.VMEM((T * B, G), jnp.float32),   # gi fwd
                        pltpu.VMEM((T * B, G), jnp.float32)],  # gi bwd
        compiler_params=pltpu.CompilerParams(vmem_limit_bytes=vmem_limit),
    )(lengths_2d, *x_halves, wih_t, bih, whh_t, bhn)
    return out_f, out_b, hN_f, hN_b


def init_params(key, vocab_size, hidden_size, n_layers=2):
    params = {"n_layers": n_layers, "hidden_size": hidden_size}
    k = 1.0 / jnp.sqrt(hidden_size)
    keys = jax.random.split(key, 1 + n_layers * 2 * 4)
    params["embedding"] = jax.random.normal(
        keys[0], (vocab_size, hidden_size), jnp.float32)
    i = 1
    for layer in range(n_layers):
        d_in = hidden_size if layer == 0 else 2 * hidden_size
        for suffix in ("", "_reverse"):
            params[f"weight_ih_l{layer}{suffix}"] = jax.random.uniform(
                keys[i], (3 * hidden_size, d_in), jnp.float32, -k, k); i += 1
            params[f"weight_hh_l{layer}{suffix}"] = jax.random.uniform(
                keys[i], (3 * hidden_size, hidden_size), jnp.float32, -k, k); i += 1
            params[f"bias_ih_l{layer}{suffix}"] = jax.random.uniform(
                keys[i], (3 * hidden_size,), jnp.float32, -k, k); i += 1
            params[f"bias_hh_l{layer}{suffix}"] = jax.random.uniform(
                keys[i], (3 * hidden_size,), jnp.float32, -k, k); i += 1
    return params


def encoder_gru_forward(params, input_seq, input_lengths):
    H = params["hidden_size"]
    n_layers = params["n_layers"]

    # glue: embedding lookup (gather) stays in plain JAX
    embedded = params["embedding"][input_seq]              # (T, B, H) f32
    T, B, _ = embedded.shape

    # Pad batch to a multiple of 16 (clean bf16 sublane packing). Padded rows
    # get length 0, so they never update the hidden state and emit zeros.
    B_pad = max(16, -(-B // 16) * 16)
    pad_b = B_pad - B
    x0 = jnp.pad(embedded, ((0, 0), (0, pad_b), (0, 0)))
    lengths_2d = jnp.pad(jnp.asarray(input_lengths, jnp.int32),
                         (0, pad_b)).reshape(B_pad, 1)

    # Layer input as per-direction "halves": the concat of the previous
    # layer's fwd/bwd outputs is folded into the next layer's in-kernel input
    # projection (no HBM concatenate round trip).
    x_halves = [x0.reshape(T * B_pad, H)]                  # free metadata reshape
    hiddens = []
    out_f = out_b = None
    for layer in range(n_layers):
        n_halves = len(x_halves)
        Hh = x_halves[0].shape[-1]
        G = 3 * H
        wih_t, bih, whh_t, bhn = [], [], [], []
        for suffix in ("", "_reverse"):
            w_ih = params[f"weight_ih_l{layer}{suffix}"]   # (3H, n_halves*Hh)
            w_hh = params[f"weight_hh_l{layer}{suffix}"]   # (3H, H)
            b_ih = params[f"bias_ih_l{layer}{suffix}"]     # (3H,)
            b_hh = params[f"bias_hh_l{layer}{suffix}"]     # (3H,)
            wih_t.append(w_ih.T.reshape(n_halves, Hh, G))
            # fold the r/z parts of b_hh into the gi bias; only the n-gate
            # b_hh must stay inside the r*(.) term in the kernel.
            bih.append((b_ih + jnp.concatenate(
                [b_hh[:2 * H], jnp.zeros((H,), b_hh.dtype)])).reshape(1, G))
            whh_t.append(w_hh.T)                           # (H, 3H)
            bhn.append(b_hh[2 * H:].reshape(1, H))
        wih_t = jnp.stack(wih_t).astype(jnp.bfloat16)      # pre-cast to bf16
        bih = jnp.stack(bih)                               # (2, 1, 3H) f32
        whh_t = jnp.stack(whh_t).astype(jnp.bfloat16)      # (2, H, 3H) bf16
        bhn = jnp.stack(bhn)                               # (2, 1, H)  f32

        # inter-layer activations in bf16 (halves HBM traffic); last layer f32
        out_dtype = jnp.float32 if layer == n_layers - 1 else jnp.bfloat16
        out_f, out_b, hNf, hNb = bigru_layer(
            x_halves, lengths_2d, wih_t, bih, whh_t, bhn,
            T, B_pad, H, out_dtype)
        hiddens.extend([hNf, hNb])
        x_halves = [out_f, out_b]
        # TODO(synk): nn.GRU inter-layer dropout is a no-op in eval mode; the
        # training-mode dropout mask is omitted here.

    # sum of fwd + bwd halves, as in the PyTorch module
    outputs = (out_f + out_b).reshape(T, B_pad, H)[:, :B, :]
    hidden = jnp.stack(hiddens, axis=0)[:, :B, :]          # [l0_f,l0_b,l1_f,l1_b]
    return outputs, hidden


if __name__ == "__main__":
    key = jax.random.PRNGKey(0)
    vocab_size, hidden_size, n_layers = 16, 32, 2
    T, B = 8, 4

    pkey, skey = jax.random.split(key)
    params = init_params(pkey, vocab_size, hidden_size, n_layers)

    input_seq = jax.random.randint(skey, (T, B), 0, vocab_size, dtype=jnp.int32)
    # pack_padded_sequence default requires lengths sorted in decreasing order
    input_lengths = jnp.array([8, 7, 5, 3], dtype=jnp.int32)

    outputs, hidden = encoder_gru_forward(params, input_seq, input_lengths)
    jax.block_until_ready((outputs, hidden))

    assert outputs.shape == (T, B, hidden_size)
    assert hidden.shape == (n_layers * 2, B, hidden_size)
    assert bool(jnp.all(jnp.isfinite(outputs)))
    assert bool(jnp.all(jnp.isfinite(hidden)))
    print("KERNEL_OK")
</pallas_src>

<mosaic_0001>
module attributes {stable_mosaic.version = 11 : i64} {
  func.func @kernel(%arg0: memref<16x1xi32, #tpu.memory_space<vmem>>, %arg1: memref<128x32xf32, #tpu.memory_space<vmem>>, %arg2: memref<2x1x32x96xbf16, #tpu.memory_space<vmem>>, %arg3: memref<2x1x96xf32, #tpu.memory_space<vmem>>, %arg4: memref<2x32x96xbf16, #tpu.memory_space<vmem>>, %arg5: memref<2x1x32xf32, #tpu.memory_space<vmem>>, %arg6: memref<128x32xbf16, #tpu.memory_space<vmem>>, %arg7: memref<128x32xbf16, #tpu.memory_space<vmem>>, %arg8: memref<16x32xf32, #tpu.memory_space<vmem>>, %arg9: memref<16x32xf32, #tpu.memory_space<vmem>>, %arg10: memref<128x96xf32, #tpu.memory_space<vmem>>, %arg11: memref<128x96xf32, #tpu.memory_space<vmem>>) attributes {dimension_semantics = [], scalar_prefetch = 0 : i64, scratch_operands = 2 : i64, tpu.core_type = #tpu.core_type<tc>} {
    %c0 = arith.constant 0 : index
    %c0_0 = arith.constant 0 : index
    %0 = vector.load %arg0[%c0, %c0_0] : memref<16x1xi32, #tpu.memory_space<vmem>>, vector<16x1xi32>
    %c0_1 = arith.constant 0 : index
    %c0_2 = arith.constant 0 : index
    %c0_3 = arith.constant 0 : index
    %1 = vector.load %arg4[%c0_1, %c0_2, %c0_3] : memref<2x32x96xbf16, #tpu.memory_space<vmem>>, vector<1x32x96xbf16>
    %2 = vector.shape_cast %1 : vector<1x32x96xbf16> to vector<32x96xbf16>
    %c1 = arith.constant 1 : index
    %c0_4 = arith.constant 0 : index
    %c0_5 = arith.constant 0 : index
    %3 = vector.load %arg4[%c1, %c0_4, %c0_5] : memref<2x32x96xbf16, #tpu.memory_space<vmem>>, vector<1x32x96xbf16>
    %4 = vector.shape_cast %3 : vector<1x32x96xbf16> to vector<32x96xbf16>
    %c0_6 = arith.constant 0 : index
    %c0_7 = arith.constant 0 : index
    %c0_8 = arith.constant 0 : index
    %5 = vector.load %arg3[%c0_6, %c0_7, %c0_8] : memref<2x1x96xf32, #tpu.memory_space<vmem>>, vector<2x1x96xf32>
    %c0_9 = arith.constant 0 : index
    %c0_10 = arith.constant 0 : index
    %c0_11 = arith.constant 0 : index
    %6 = vector.load %arg5[%c0_9, %c0_10, %c0_11] : memref<2x1x32xf32, #tpu.memory_space<vmem>>, vector<2x1x32xf32>
    %7 = vector.extract_strided_slice %6 {offsets = [0, 0, 0], sizes = [1, 1, 32], strides = [1, 1, 1]} : vector<2x1x32xf32> to vector<1x1x32xf32>
    %8 = vector.shape_cast %7 : vector<1x1x32xf32> to vector<1x32xf32>
    %9 = vector.shape_cast %8 : vector<1x32xf32> to vector<1x32xf32>
    %10 = vector.broadcast %9 : vector<1x32xf32> to vector<16x32xf32>
    %11 = vector.extract_strided_slice %6 {offsets = [1, 0, 0], sizes = [1, 1, 32], strides = [1, 1, 1]} : vector<2x1x32xf32> to vector<1x1x32xf32>
    %12 = vector.shape_cast %11 : vector<1x1x32xf32> to vector<1x32xf32>
    %13 = vector.shape_cast %12 : vector<1x32xf32> to vector<1x32xf32>
    %14 = vector.broadcast %13 : vector<1x32xf32> to vector<16x32xf32>
    %c0_12 = arith.constant 0 : index
    %c0_13 = arith.constant 0 : index
    %15 = vector.load %arg1[%c0_12, %c0_13] : memref<128x32xf32, #tpu.memory_space<vmem>>, vector<128x32xf32>
    %16 = arith.truncf %15 : vector<128x32xf32> to vector<128x32xbf16>
    %c0_14 = arith.constant 0 : index
    %c0_15 = arith.constant 0 : index
    %c0_16 = arith.constant 0 : index
    %c0_17 = arith.constant 0 : index
    %17 = vector.load %arg2[%c0_14, %c0_15, %c0_16, %c0_17] : memref<2x1x32x96xbf16, #tpu.memory_space<vmem>>, vector<1x1x32x96xbf16>
    %18 = vector.shape_cast %17 : vector<1x1x32x96xbf16> to vector<32x96xbf16>
    %cst = arith.constant dense<0.000000e+00> : vector<128x96xf32>
    %19 = tpu.matmul %16, %18, %cst {dimension_numbers = #tpu.dot_dimension_numbers<[1], [0], [0], [1], [0, 0, 1, 1], [], []>} : vector<128x32xbf16>, vector<32x96xbf16>, vector<128x96xf32> -> vector<128x96xf32>
    %20 = vector.extract_strided_slice %5 {offsets = [0, 0, 0], sizes = [1, 1, 96], strides = [1, 1, 1]} : vector<2x1x96xf32> to vector<1x1x96xf32>
    %21 = vector.shape_cast %20 : vector<1x1x96xf32> to vector<1x96xf32>
    %22 = vector.broadcast %21 : vector<1x96xf32> to vector<128x96xf32>
    %23 = arith.addf %19, %22 : vector<128x96xf32>
    %c0_18 = arith.constant 0 : index
    %c0_19 = arith.constant 0 : index
    %24 = vector.load %arg10[%c0_18, %c0_19] : memref<128x96xf32, #tpu.memory_space<vmem>>, vector<128x96xf32>
    tpu.vector_store %arg10[%c0_18, %c0_19], %23 {strides = array<i32>} : memref<128x96xf32, #tpu.memory_space<vmem>>, vector<128x96xf32>,
    %c1_20 = arith.constant 1 : index
    %c0_21 = arith.constant 0 : index
    %c0_22 = arith.constant 0 : index
    %c0_23 = arith.constant 0 : index
    %25 = vector.load %arg2[%c1_20, %c0_21, %c0_22, %c0_23] : memref<2x1x32x96xbf16, #tpu.memory_space<vmem>>, vector<1x1x32x96xbf16>
    %26 = vector.shape_cast %25 : vector<1x1x32x96xbf16> to vector<32x96xbf16>
    %cst_24 = arith.constant dense<0.000000e+00> : vector<128x96xf32>
    %27 = tpu.matmul %16, %26, %cst_24 {dimension_numbers = #tpu.dot_dimension_numbers<[1], [0], [0], [1], [0, 0, 1, 1], [], []>} : vector<128x32xbf16>, vector<32x96xbf16>, vector<128x96xf32> -> vector<128x96xf32>
    %28 = vector.extract_strided_slice %5 {offsets = [1, 0, 0], sizes = [1, 1, 96], strides = [1, 1, 1]} : vector<2x1x96xf32> to vector<1x1x96xf32>
    %29 = vector.shape_cast %28 : vector<1x1x96xf32> to vector<1x96xf32>
    %30 = vector.broadcast %29 : vector<1x96xf32> to vector<128x96xf32>
    %31 = arith.addf %27, %30 : vector<128x96xf32>
    %c0_25 = arith.constant 0 : index
    %c0_26 = arith.constant 0 : index
    %32 = vector.load %arg11[%c0_25, %c0_26] : memref<128x96xf32, #tpu.memory_space<vmem>>, vector<128x96xf32>
    tpu.vector_store %arg11[%c0_25, %c0_26], %31 {strides = array<i32>} : memref<128x96xf32, #tpu.memory_space<vmem>>, vector<128x96xf32>,
    %cst_27 = arith.constant 0.000000e+00 : f32
    %33 = vector.broadcast %cst_27 : f32 to vector<16x32xf32>
    %c0_i32 = arith.constant 0 : i32
    %c16_i32 = arith.constant 16 : i32
    %34 = arith.muli %c0_i32, %c16_i32 : i32
    %35 = tpu.assume_multiple %34, 16 : i32
    %c7_i32 = arith.constant 7 : i32
    %36 = arith.subi %c7_i32, %c0_i32 : i32
    %c16_i32_28 = arith.constant 16 : i32
    %37 = arith.muli %36, %c16_i32_28 : i32
    %38 = tpu.assume_multiple %37, 16 : i32
    %39 = arith.index_cast %35 : i32 to index
    %c0_29 = arith.constant 0 : index
    %40 = vector.load %arg10[%39, %c0_29] : memref<128x96xf32, #tpu.memory_space<vmem>>, vector<16x96xf32>
    %41 = arith.index_cast %38 : i32 to index
    %c0_30 = arith.constant 0 : index
    %42 = vector.load %arg11[%41, %c0_30] : memref<128x96xf32, #tpu.memory_space<vmem>>, vector<16x96xf32>
    %43 = arith.truncf %33 : vector<16x32xf32> to vector<16x32xbf16>
    %cst_31 = arith.constant dense<0.000000e+00> : vector<16x96xf32>
    %44 = tpu.matmul %43, %2, %cst_31 {dimension_numbers = #tpu.dot_dimension_numbers<[1], [0], [0], [1], [0, 0, 1, 1], [], []>} : vector<16x32xbf16>, vector<32x96xbf16>, vector<16x96xf32> -> vector<16x96xf32>
    %45 = arith.truncf %33 : vector<16x32xf32> to vector<16x32xbf16>
    %cst_32 = arith.constant dense<0.000000e+00> : vector<16x96xf32>
    %46 = tpu.matmul %45, %4, %cst_32 {dimension_numbers = #tpu.dot_dimension_numbers<[1], [0], [0], [1], [0, 0, 1, 1], [], []>} : vector<16x32xbf16>, vector<32x96xbf16>, vector<16x96xf32> -> vector<16x96xf32>
    %47 = vector.extract_strided_slice %40 {offsets = [0, 0], sizes = [16, 32], strides = [1, 1]} : vector<16x96xf32> to vector<16x32xf32>
    %48 = vector.extract_strided_slice %44 {offsets = [0, 0], sizes = [16, 32], strides = [1, 1]} : vector<16x96xf32> to vector<16x32xf32>
    %49 = arith.addf %47, %48 : vector<16x32xf32>
    %50 = arith.negf %49 : vector<16x32xf32>
    %51 = math.exp %50 : vector<16x32xf32>
    %cst_33 = arith.constant 1.000000e+00 : f32
    %52 = vector.broadcast %cst_33 : f32 to vector<16x32xf32>
    %53 = arith.addf %52, %51 : vector<16x32xf32>
    %54 = arith.divf %52, %53 : vector<16x32xf32>
    %55 = vector.extract_strided_slice %40 {offsets = [0, 32], sizes = [16, 32], strides = [1, 1]} : vector<16x96xf32> to vector<16x32xf32>
    %56 = vector.extract_strided_slice %44 {offsets = [0, 32], sizes = [16, 32], strides = [1, 1]} : vector<16x96xf32> to vector<16x32xf32>
    %57 = arith.addf %55, %56 : vector<16x32xf32>
    %58 = arith.negf %57 : vector<16x32xf32>
    %59 = math.exp %58 : vector<16x32xf32>
    %cst_34 = arith.constant 1.000000e+00 : f32
    %60 = vector.broadcast %cst_34 : f32 to vector<16x32xf32>
    %61 = arith.addf %60, %59 : vector<16x32xf32>
    %62 = arith.divf %60, %61 : vector<16x32xf32>
    %63 = vector.extract_strided_slice %40 {offsets = [0, 64], sizes = [16, 32], strides = [1, 1]} : vector<16x96xf32> to vector<16x32xf32>
    %64 = vector.extract_strided_slice %44 {offsets = [0, 64], sizes = [16, 32], strides = [1, 1]} : vector<16x96xf32> to vector<16x32xf32>
    %65 = arith.addf %64, %10 : vector<16x32xf32>
    %66 = arith.mulf %54, %65 : vector<16x32xf32>
    %67 = arith.addf %63, %66 : vector<16x32xf32>
    %68 = math.tanh %67 : vector<16x32xf32>
    %69 = arith.subf %33, %68 : vector<16x32xf32>
    %70 = arith.mulf %62, %69 : vector<16x32xf32>
    %71 = arith.addf %68, %70 : vector<16x32xf32>
    %72 = vector.extract_strided_slice %42 {offsets = [0, 0], sizes = [16, 32], strides = [1, 1]} : vector<16x96xf32> to vector<16x32xf32>
    %73 = vector.extract_strided_slice %46 {offsets = [0, 0], sizes = [16, 32], strides = [1, 1]} : vector<16x96xf32> to vector<16x32xf32>
    %74 = arith.addf %72, %73 : vector<16x32xf32>
    %75 = arith.negf %74 : vector<16x32xf32>
    %76 = math.exp %75 : vector<16x32xf32>
    %cst_35 = arith.constant 1.000000e+00 : f32
    %77 = vector.broadcast %cst_35 : f32 to vector<16x32xf32>
    %78 = arith.addf %77, %76 : vector<16x32xf32>
    %79 = arith.divf %77, %78 : vector<16x32xf32>
    %80 = vector.extract_strided_slice %42 {offsets = [0, 32], sizes = [16, 32], strides = [1, 1]} : vector<16x96xf32> to vector<16x32xf32>
    %81 = vector.extract_strided_slice %46 {offsets = [0, 32], sizes = [16, 32], strides = [1, 1]} : vector<16x96xf32> to vector<16x32xf32>
    %82 = arith.addf %80, %81 : vector<16x32xf32>
    %83 = arith.negf %82 : vector<16x32xf32>
    %84 = math.exp %83 : vector<16x32xf32>
    %cst_36 = arith.constant 1.000000e+00 : f32
    %85 = vector.broadcast %cst_36 : f32 to vector<16x32xf32>
    %86 = arith.addf %85, %84 : vector<16x32xf32>
    %87 = arith.divf %85, %86 : vector<16x32xf32>
    %88 = vector.extract_strided_slice %42 {offsets = [0, 64], sizes = [16, 32], strides = [1, 1]} : vector<16x96xf32> to vector<16x32xf32>
    %89 = vector.extract_strided_slice %46 {offsets = [0, 64], sizes = [16, 32], strides = [1, 1]} : vector<16x96xf32> to vector<16x32xf32>
    %90 = arith.addf %89, %14 : vector<16x32xf32>
    %91 = arith.mulf %79, %90 : vector<16x32xf32>
    %92 = arith.addf %88, %91 : vector<16x32xf32>
    %93 = math.tanh %92 : vector<16x32xf32>
    %94 = arith.subf %33, %93 : vector<16x32xf32>
    %95 = arith.mulf %87, %94 : vector<16x32xf32>
    %96 = arith.addf %93, %95 : vector<16x32xf32>
    %97 = vector.broadcast %c0_i32 : i32 to vector<16x1xi32>
    %98 = arith.cmpi slt, %97, %0 : vector<16x1xi32>
    %c7_i32_37 = arith.constant 7 : i32
    %99 = arith.subi %c7_i32_37, %c0_i32 : i32
    %100 = vector.broadcast %99 : i32 to vector<16x1xi32>
    %101 = arith.cmpi slt, %100, %0 : vector<16x1xi32>
    %cst_38 = arith.constant 0.000000e+00 : f32
    %102 = vector.shape_cast %98 : vector<16x1xi1> to vector<16x1xi1>
    %103 = vector.broadcast %102 : vector<16x1xi1> to vector<16x32xi1>
    %104 = vector.broadcast %cst_38 : f32 to vector<16x32xf32>
    %105 = arith.select %103, %71, %104 : vector<16x32xi1>, vector<16x32xf32>
    %106 = arith.truncf %105 : vector<16x32xf32> to vector<16x32xbf16>
    %107 = arith.index_cast %35 : i32 to index
    %c0_39 = arith.constant 0 : index
    %108 = vector.load %arg6[%107, %c0_39] : memref<128x32xbf16, #tpu.memory_space<vmem>>, vector<16x32xbf16>
    tpu.vector_store %arg6[%107, %c0_39], %106 {strides = array<i32>} : memref<128x32xbf16, #tpu.memory_space<vmem>>, vector<16x32xbf16>,
    %cst_40 = arith.constant 0.000000e+00 : f32
    %109 = vector.shape_cast %101 : vector<16x1xi1> to vector<16x1xi1>
    %110 = vector.broadcast %109 : vector<16x1xi1> to vector<16x32xi1>
    %111 = vector.broadcast %cst_40 : f32 to vector<16x32xf32>
    %112 = arith.select %110, %96, %111 : vector<16x32xi1>, vector<16x32xf32>
    %113 = arith.truncf %112 : vector<16x32xf32> to vector<16x32xbf16>
    %114 = arith.index_cast %38 : i32 to index
    %c0_41 = arith.constant 0 : index
    %115 = vector.load %arg7[%114, %c0_41] : memref<128x32xbf16, #tpu.memory_space<vmem>>, vector<16x32xbf16>
    tpu.vector_store %arg7[%114, %c0_41], %113 {strides = array<i32>} : memref<128x32xbf16, #tpu.memory_space<vmem>>, vector<16x32xbf16>,
    %116 = vector.shape_cast %98 : vector<16x1xi1> to vector<16x1xi1>
    %117 = vector.broadcast %116 : vector<16x1xi1> to vector<16x32xi1>
    %118 = arith.select %117, %71, %33 : vector<16x32xi1>, vector<16x32xf32>
    %119 = vector.shape_cast %101 : vector<16x1xi1> to vector<16x1xi1>
    %120 = vector.broadcast %119 : vector<16x1xi1> to vector<16x32xi1>
    %121 = arith.select %120, %96, %33 : vector<16x32xi1>, vector<16x32xf32>
    %c1_i32 = arith.constant 1 : i32
    %c16_i32_42 = arith.constant 16 : i32
    %122 = arith.muli %c1_i32, %c16_i32_42 : i32
    %123 = tpu.assume_multiple %122, 16 : i32
    %c7_i32_43 = arith.constant 7 : i32
    %124 = arith.subi %c7_i32_43, %c1_i32 : i32
    %c16_i32_44 = arith.constant 16 : i32
    %125 = arith.muli %124, %c16_i32_44 : i32
    %126 = tpu.assume_multiple %125, 16 : i32
    %127 = arith.index_cast %123 : i32 to index
    %c0_45 = arith.constant 0 : index
    %128 = vector.load %arg10[%127, %c0_45] : memref<128x96xf32, #tpu.memory_space<vmem>>, vector<16x96xf32>
    %129 = arith.index_cast %126 : i32 to index
    %c0_46 = arith.constant 0 : index
    %130 = vector.load %arg11[%129, %c0_46] : memref<128x96xf32, #tpu.memory_space<vmem>>, vector<16x96xf32>
    %131 = arith.truncf %118 : vector<16x32xf32> to vector<16x32xbf16>
    %cst_47 = arith.constant dense<0.000000e+00> : vector<16x96xf32>
    %132 = tpu.matmul %131, %2, %cst_47 {dimension_numbers = #tpu.dot_dimension_numbers<[1], [0], [0], [1], [0, 0, 1, 1], [], []>} : vector<16x32xbf16>, vector<32x96xbf16>, vector<16x96xf32> -> vector<16x96xf32>
    %133 = arith.truncf %121 : vector<16x32xf32> to vector<16x32xbf16>
    %cst_48 = arith.constant dense<0.000000e+00> : vector<16x96xf32>
    %134 = tpu.matmul %133, %4, %cst_48 {dimension_numbers = #tpu.dot_dimension_numbers<[1], [0], [0], [1], [0, 0, 1, 1], [], []>} : vector<16x32xbf16>, vector<32x96xbf16>, vector<16x96xf32> -> vector<16x96xf32>
    %135 = vector.extract_strided_slice %128 {offsets = [0, 0], sizes = [16, 32], strides = [1, 1]} : vector<16x96xf32> to vector<16x32xf32>
    %136 = vector.extract_strided_slice %132 {offsets = [0, 0], sizes = [16, 32], strides = [1, 1]} : vector<16x96xf32> to vector<16x32xf32>
    %137 = arith.addf %135, %136 : vector<16x32xf32>
    %138 = arith.negf %137 : vector<16x32xf32>
    %139 = math.exp %138 : vector<16x32xf32>
    %cst_49 = arith.constant 1.000000e+00 : f32
    %140 = vector.broadcast %cst_49 : f32 to vector<16x32xf32>
    %141 = arith.addf %140, %139 : vector<16x32xf32>
    %142 = arith.divf %140, %141 : vector<16x32xf32>
    %143 = vector.extract_strided_slice %128 {offsets = [0, 32], sizes = [16, 32], strides = [1, 1]} : vector<16x96xf32> to vector<16x32xf32>
    %144 = vector.extract_strided_slice %132 {offsets = [0, 32], sizes = [16, 32], strides = [1, 1]} : vector<16x96xf32> to vector<16x32xf32>
    %145 = arith.addf %143, %144 : vector<16x32xf32>
    %146 = arith.negf %145 : vector<16x32xf32>
    %147 = math.exp %146 : vector<16x32xf32>
    %cst_50 = arith.constant 1.000000e+00 : f32
    %148 = vector.broadcast %cst_50 : f32 to vector<16x32xf32>
    %149 = arith.addf %148, %147 : vector<16x32xf32>
    %150 = arith.divf %148, %149 : vector<16x32xf32>
    %151 = vector.extract_strided_slice %128 {offsets = [0, 64], sizes = [16, 32], strides = [1, 1]} : vector<16x96xf32> to vector<16x32xf32>
    %152 = vector.extract_strided_slice %132 {offsets = [0, 64], sizes = [16, 32], strides = [1, 1]} : vector<16x96xf32> to vector<16x32xf32>
    %153 = arith.addf %152, %10 : vector<16x32xf32>
    %154 = arith.mulf %142, %153 : vector<16x32xf32>
    %155 = arith.addf %151, %154 : vector<16x32xf32>
    %156 = math.tanh %155 : vector<16x32xf32>
    %157 = arith.subf %118, %156 : vector<16x32xf32>
    %158 = arith.mulf %150, %157 : vector<16x32xf32>
    %159 = arith.addf %156, %158 : vector<16x32xf32>
    %160 = vector.extract_strided_slice %130 {offsets = [0, 0], sizes = [16, 32], strides = [1, 1]} : vector<16x96xf32> to vector<16x32xf32>
    %161 = vector.extract_strided_slice %134 {offsets = [0, 0], sizes = [16, 32], strides = [1, 1]} : vector<16x96xf32> to vector<16x32xf32>
    %162 = arith.addf %160, %161 : vector<16x32xf32>
    %163 = arith.negf %162 : vector<16x32xf32>
    %164 = math.exp %163 : vector<16x32xf32>
    %cst_51 = arith.constant 1.000000e+00 : f32
    %165 = vector.broadcast %cst_51 : f32 to vector<16x32xf32>
    %166 = arith.addf %165, %164 : vector<16x32xf32>
    %167 = arith.divf %165, %166 : vector<16x32xf32>
    %168 = vector.extract_strided_slice %130 {offsets = [0, 32], sizes = [16, 32], strides = [1, 1]} : vector<16x96xf32> to vector<16x32xf32>
    %169 = vector.extract_strided_slice %134 {offsets = [0, 32], sizes = [16, 32], strides = [1, 1]} : vector<16x96xf32> to vector<16x32xf32>
    %170 = arith.addf %168, %169 : vector<16x32xf32>
    %171 = arith.negf %170 : vector<16x32xf32>
    %172 = math.exp %171 : vector<16x32xf32>
    %cst_52 = arith.constant 1.000000e+00 : f32
    %173 = vector.broadcast %cst_52 : f32 to vector<16x32xf32>
    %174 = arith.addf %173, %172 : vector<16x32xf32>
    %175 = arith.divf %173, %174 : vector<16x32xf32>
    %176 = vector.extract_strided_slice %130 {offsets = [0, 64], sizes = [16, 32], strides = [1, 1]} : vector<16x96xf32> to vector<16x32xf32>
    %177 = vector.extract_strided_slice %134 {offsets = [0, 64], sizes = [16, 32], strides = [1, 1]} : vector<16x96xf32> to vector<16x32xf32>
    %178 = arith.addf %177, %14 : vector<16x32xf32>
    %179 = arith.mulf %167, %178 : vector<16x32xf32>
    %180 = arith.addf %176, %179 : vector<16x32xf32>
    %181 = math.tanh %180 : vector<16x32xf32>
    %182 = arith.subf %121, %181 : vector<16x32xf32>
    %183 = arith.mulf %175, %182 : vector<16x32xf32>
    %184 = arith.addf %181, %183 : vector<16x32xf32>
    %185 = vector.broadcast %c1_i32 : i32 to vector<16x1xi32>
    %186 = arith.cmpi slt, %185, %0 : vector<16x1xi32>
    %c7_i32_53 = arith.constant 7 : i32
    %187 = arith.subi %c7_i32_53, %c1_i32 : i32
    %188 = vector.broadcast %187 : i32 to vector<16x1xi32>
    %189 = arith.cmpi slt, %188, %0 : vector<16x1xi32>
    %cst_54 = arith.constant 0.000000e+00 : f32
    %190 = vector.shape_cast %186 : vector<16x1xi1> to vector<16x1xi1>
    %191 = vector.broadcast %190 : vector<16x1xi1> to vector<16x32xi1>
    %192 = vector.broadcast %cst_54 : f32 to vector<16x32xf32>
    %193 = arith.select %191, %159, %192 : vector<16x32xi1>, vector<16x32xf32>
    %194 = arith.truncf %193 : vector<16x32xf32> to vector<16x32xbf16>
    %195 = arith.index_cast %123 : i32 to index
    %c0_55 = arith.constant 0 : index
    %196 = vector.load %arg6[%195, %c0_55] : memref<128x32xbf16, #tpu.memory_space<vmem>>, vector<16x32xbf16>
    tpu.vector_store %arg6[%195, %c0_55], %194 {strides = array<i32>} : memref<128x32xbf16, #tpu.memory_space<vmem>>, vector<16x32xbf16>,
    %cst_56 = arith.constant 0.000000e+00 : f32
    %197 = vector.shape_cast %189 : vector<16x1xi1> to vector<16x1xi1>
    %198 = vector.broadcast %197 : vector<16x1xi1> to vector<16x32xi1>
    %199 = vector.broadcast %cst_56 : f32 to vector<16x32xf32>
    %200 = arith.select %198, %184, %199 : vector<16x32xi1>, vector<16x32xf32>
    %201 = arith.truncf %200 : vector<16x32xf32> to vector<16x32xbf16>
    %202 = arith.index_cast %126 : i32 to index
    %c0_57 = arith.constant 0 : index
    %203 = vector.load %arg7[%202, %c0_57] : memref<128x32xbf16, #tpu.memory_space<vmem>>, vector<16x32xbf16>
    tpu.vector_store %arg7[%202, %c0_57], %201 {strides = array<i32>} : memref<128x32xbf16, #tpu.memory_space<vmem>>, vector<16x32xbf16>,
    %204 = vector.shape_cast %186 : vector<16x1xi1> to vector<16x1xi1>
    %205 = vector.broadcast %204 : vector<16x1xi1> to vector<16x32xi1>
    %206 = arith.select %205, %159, %118 : vector<16x32xi1>, vector<16x32xf32>
    %207 = vector.shape_cast %189 : vector<16x1xi1> to vector<16x1xi1>
    %208 = vector.broadcast %207 : vector<16x1xi1> to vector<16x32xi1>
    %209 = arith.select %208, %184, %121 : vector<16x32xi1>, vector<16x32xf32>
    %c2_i32 = arith.constant 2 : i32
    %c16_i32_58 = arith.constant 16 : i32
    %210 = arith.muli %c2_i32, %c16_i32_58 : i32
    %211 = tpu.assume_multiple %210, 16 : i32
    %c7_i32_59 = arith.constant 7 : i32
    %212 = arith.subi %c7_i32_59, %c2_i32 : i32
    %c16_i32_60 = arith.constant 16 : i32
    %213 = arith.muli %212, %c16_i32_60 : i32
    %214 = tpu.assume_multiple %213, 16 : i32
    %215 = arith.index_cast %211 : i32 to index
    %c0_61 = arith.constant 0 : index
    %216 = vector.load %arg10[%215, %c0_61] : memref<128x96xf32, #tpu.memory_space<vmem>>, vector<16x96xf32>
    %217 = arith.index_cast %214 : i32 to index
    %c0_62 = arith.constant 0 : index
    %218 = vector.load %arg11[%217, %c0_62] : memref<128x96xf32, #tpu.memory_space<vmem>>, vector<16x96xf32>
    %219 = arith.truncf %206 : vector<16x32xf32> to vector<16x32xbf16>
    %cst_63 = arith.constant dense<0.000000e+00> : vector<16x96xf32>
    %220 = tpu.matmul %219, %2, %cst_63 {dimension_numbers = #tpu.dot_dimension_numbers<[1], [0], [0], [1], [0, 0, 1, 1], [], []>} : vector<16x32xbf16>, vector<32x96xbf16>, vector<16x96xf32> -> vector<16x96xf32>
    %221 = arith.truncf %209 : vector<16x32xf32> to vector<16x32xbf16>
    %cst_64 = arith.constant dense<0.000000e+00> : vector<16x96xf32>
    %222 = tpu.matmul %221, %4, %cst_64 {dimension_numbers = #tpu.dot_dimension_numbers<[1], [0], [0], [1], [0, 0, 1, 1], [], []>} : vector<16x32xbf16>, vector<32x96xbf16>, vector<16x96xf32> -> vector<16x96xf32>
    %223 = vector.extract_strided_slice %216 {offsets = [0, 0], sizes = [16, 32], strides = [1, 1]} : vector<16x96xf32> to vector<16x32xf32>
    %224 = vector.extract_strided_slice %220 {offsets = [0, 0], sizes = [16, 32], strides = [1, 1]} : vector<16x96xf32> to vector<16x32xf32>
    %225 = arith.addf %223, %224 : vector<16x32xf32>
    %226 = arith.negf %225 : vector<16x32xf32>
    %227 = math.exp %226 : vector<16x32xf32>
    %cst_65 = arith.constant 1.000000e+00 : f32
    %228 = vector.broadcast %cst_65 : f32 to vector<16x32xf32>
    %229 = arith.addf %228, %227 : vector<16x32xf32>
    %230 = arith.divf %228, %229 : vector<16x32xf32>
    %231 = vector.extract_strided_slice %216 {offsets = [0, 32], sizes = [16, 32], strides = [1, 1]} : vector<16x96xf32> to vector<16x32xf32>
    %232 = vector.extract_strided_slice %220 {offsets = [0, 32], sizes = [16, 32], strides = [1, 1]} : vector<16x96xf32> to vector<16x32xf32>
    %233 = arith.addf %231, %232 : vector<16x32xf32>
    %234 = arith.negf %233 : vector<16x32xf32>
    %235 = math.exp %234 : vector<16x32xf32>
    %cst_66 = arith.constant 1.000000e+00 : f32
    %236 = vector.broadcast %cst_66 : f32 to vector<16x32xf32>
    %237 = arith.addf %236, %235 : vector<16x32xf32>
    %238 = arith.divf %236, %237 : vector<16x32xf32>
    %239 = vector.extract_strided_slice %216 {offsets = [0, 64], sizes = [16, 32], strides = [1, 1]} : vector<16x96xf32> to vector<16x32xf32>
    %240 = vector.extract_strided_slice %220 {offsets = [0, 64], sizes = [16, 32], strides = [1, 1]} : vector<16x96xf32> to vector<16x32xf32>
    %241 = arith.addf %240, %10 : vector<16x32xf32>
    %242 = arith.mulf %230, %241 : vector<16x32xf32>
    %243 = arith.addf %239, %242 : vector<16x32xf32>
    %244 = math.tanh %243 : vector<16x32xf32>
    %245 = arith.subf %206, %244 : vector<16x32xf32>
    %246 = arith.mulf %238, %245 : vector<16x32xf32>
    %247 = arith.addf %244, %246 : vector<16x32xf32>
    %248 = vector.extract_strided_slice %218 {offsets = [0, 0], sizes = [16, 32], strides = [1, 1]} : vector<16x96xf32> to vector<16x32xf32>
    %249 = vector.extract_strided_slice %222 {offsets = [0, 0], sizes = [16, 32], strides = [1, 1]} : vector<16x96xf32> to vector<16x32xf32>
    %250 = arith.addf %248, %249 : vector<16x32xf32>
    %251 = arith.negf %250 : vector<16x32xf32>
    %252 = math.exp %251 : vector<16x32xf32>
    %cst_67 = arith.constant 1.000000e+00 : f32
    %253 = vector.broadcast %cst_67 : f32 to vector<16x32xf32>
    %254 = arith.addf %253, %252 : vector<16x32xf32>
    %255 = arith.divf %253, %254 : vector<16x32xf32>
    %256 = vector.extract_strided_slice %218 {offsets = [0, 32], sizes = [16, 32], strides = [1, 1]} : vector<16x96xf32> to vector<16x32xf32>
    %257 = vector.extract_strided_slice %222 {offsets = [0, 32], sizes = [16, 32], strides = [1, 1]} : vector<16x96xf32> to vector<16x32xf32>
    %258 = arith.addf %256, %257 : vector<16x32xf32>
    %259 = arith.negf %258 : vector<16x32xf32>
    %260 = math.exp %259 : vector<16x32xf32>
    %cst_68 = arith.constant 1.000000e+00 : f32
    %261 = vector.broadcast %cst_68 : f32 to vector<16x32xf32>
    %262 = arith.addf %261, %260 : vector<16x32xf32>
    %263 = arith.divf %261, %262 : vector<16x32xf32>
    %264 = vector.extract_strided_slice %218 {offsets = [0, 64], sizes = [16, 32], strides = [1, 1]} : vector<16x96xf32> to vector<16x32xf32>
    %265 = vector.extract_strided_slice %222 {offsets = [0, 64], sizes = [16, 32], strides = [1, 1]} : vector<16x96xf32> to vector<16x32xf32>
    %266 = arith.addf %265, %14 : vector<16x32xf32>
    %267 = arith.mulf %255, %266 : vector<16x32xf32>
    %268 = arith.addf %264, %267 : vector<16x32xf32>
    %269 = math.tanh %268 : vector<16x32xf32>
    %270 = arith.subf %209, %269 : vector<16x32xf32>
    %271 = arith.mulf %263, %270 : vector<16x32xf32>
    %272 = arith.addf %269, %271 : vector<16x32xf32>
    %273 = vector.broadcast %c2_i32 : i32 to vector<16x1xi32>
    %274 = arith.cmpi slt, %273, %0 : vector<16x1xi32>
    %c7_i32_69 = arith.constant 7 : i32
    %275 = arith.subi %c7_i32_69, %c2_i32 : i32
    %276 = vector.broadcast %275 : i32 to vector<16x1xi32>
    %277 = arith.cmpi slt, %276, %0 : vector<16x1xi32>
    %cst_70 = arith.constant 0.000000e+00 : f32
    %278 = vector.shape_cast %274 : vector<16x1xi1> to vector<16x1xi1>
    %279 = vector.broadcast %278 : vector<16x1xi1> to vector<16x32xi1>
    %280 = vector.broadcast %cst_70 : f32 to vector<16x32xf32>
    %281 = arith.select %279, %247, %280 : vector<16x32xi1>, vector<16x32xf32>
    %282 = arith.truncf %281 : vector<16x32xf32> to vector<16x32xbf16>
    %283 = arith.index_cast %211 : i32 to index
    %c0_71 = arith.constant 0 : index
    %284 = vector.load %arg6[%283, %c0_71] : memref<128x32xbf16, #tpu.memory_space<vmem>>, vector<16x32xbf16>
    tpu.vector_store %arg6[%283, %c0_71], %282 {strides = array<i32>} : memref<128x32xbf16, #tpu.memory_space<vmem>>, vector<16x32xbf16>,
    %cst_72 = arith.constant 0.000000e+00 : f32
    %285 = vector.shape_cast %277 : vector<16x1xi1> to vector<16x1xi1>
    %286 = vector.broadcast %285 : vector<16x1xi1> to vector<16x32xi1>
    %287 = vector.broadcast %cst_72 : f32 to vector<16x32xf32>
    %288 = arith.select %286, %272, %287 : vector<16x32xi1>, vector<16x32xf32>
    %289 = arith.truncf %288 : vector<16x32xf32> to vector<16x32xbf16>
    %290 = arith.index_cast %214 : i32 to index
    %c0_73 = arith.constant 0 : index
    %291 = vector.load %arg7[%290, %c0_73] : memref<128x32xbf16, #tpu.memory_space<vmem>>, vector<16x32xbf16>
    tpu.vector_store %arg7[%290, %c0_73], %289 {strides = array<i32>} : memref<128x32xbf16, #tpu.memory_space<vmem>>, vector<16x32xbf16>,
    %292 = vector.shape_cast %274 : vector<16x1xi1> to vector<16x1xi1>
    %293 = vector.broadcast %292 : vector<16x1xi1> to vector<16x32xi1>
    %294 = arith.select %293, %247, %206 : vector<16x32xi1>, vector<16x32xf32>
    %295 = vector.shape_cast %277 : vector<16x1xi1> to vector<16x1xi1>
    %296 = vector.broadcast %295 : vector<16x1xi1> to vector<16x32xi1>
    %297 = arith.select %296, %272, %209 : vector<16x32xi1>, vector<16x32xf32>
    %c3_i32 = arith.constant 3 : i32
    %c16_i32_74 = arith.constant 16 : i32
    %298 = arith.muli %c3_i32, %c16_i32_74 : i32
    %299 = tpu.assume_multiple %298, 16 : i32
    %c7_i32_75 = arith.constant 7 : i32
    %300 = arith.subi %c7_i32_75, %c3_i32 : i32
    %c16_i32_76 = arith.constant 16 : i32
    %301 = arith.muli %300, %c16_i32_76 : i32
    %302 = tpu.assume_multiple %301, 16 : i32
    %303 = arith.index_cast %299 : i32 to index
    %c0_77 = arith.constant 0 : index
    %304 = vector.load %arg10[%303, %c0_77] : memref<128x96xf32, #tpu.memory_space<vmem>>, vector<16x96xf32>
    %305 = arith.index_cast %302 : i32 to index
    %c0_78 = arith.constant 0 : index
    %306 = vector.load %arg11[%305, %c0_78] : memref<128x96xf32, #tpu.memory_space<vmem>>, vector<16x96xf32>
    %307 = arith.truncf %294 : vector<16x32xf32> to vector<16x32xbf16>
    %cst_79 = arith.constant dense<0.000000e+00> : vector<16x96xf32>
    %308 = tpu.matmul %307, %2, %cst_79 {dimension_numbers = #tpu.dot_dimension_numbers<[1], [0], [0], [1], [0, 0, 1, 1], [], []>} : vector<16x32xbf16>, vector<32x96xbf16>, vector<16x96xf32> -> vector<16x96xf32>
    %309 = arith.truncf %297 : vector<16x32xf32> to vector<16x32xbf16>
    %cst_80 = arith.constant dense<0.000000e+00> : vector<16x96xf32>
    %310 = tpu.matmul %309, %4, %cst_80 {dimension_numbers = #tpu.dot_dimension_numbers<[1], [0], [0], [1], [0, 0, 1, 1], [], []>} : vector<16x32xbf16>, vector<32x96xbf16>, vector<16x96xf32> -> vector<16x96xf32>
    %311 = vector.extract_strided_slice %304 {offsets = [0, 0], sizes = [16, 32], strides = [1, 1]} : vector<16x96xf32> to vector<16x32xf32>
    %312 = vector.extract_strided_slice %308 {offsets = [0, 0], sizes = [16, 32], strides = [1, 1]} : vector<16x96xf32> to vector<16x32xf32>
    %313 = arith.addf %311, %312 : vector<16x32xf32>
    %314 = arith.negf %313 : vector<16x32xf32>
    %315 = math.exp %314 : vector<16x32xf32>
    %cst_81 = arith.constant 1.000000e+00 : f32
    %316 = vector.broadcast %cst_81 : f32 to vector<16x32xf32>
    %317 = arith.addf %316, %315 : vector<16x32xf32>
    %318 = arith.divf %316, %317 : vector<16x32xf32>
    %319 = vector.extract_strided_slice %304 {offsets = [0, 32], sizes = [16, 32], strides = [1, 1]} : vector<16x96xf32> to vector<16x32xf32>
    %320 = vector.extract_strided_slice %308 {offsets = [0, 32], sizes = [16, 32], strides = [1, 1]} : vector<16x96xf32> to vector<16x32xf32>
    %321 = arith.addf %319, %320 : vector<16x32xf32>
    %322 = arith.negf %321 : vector<16x32xf32>
    %323 = math.exp %322 : vector<16x32xf32>
    %cst_82 = arith.constant 1.000000e+00 : f32
    %324 = vector.broadcast %cst_82 : f32 to vector<16x32xf32>
    %325 = arith.addf %324, %323 : vector<16x32xf32>
    %326 = arith.divf %324, %325 : vector<16x32xf32>
    %327 = vector.extract_strided_slice %304 {offsets = [0, 64], sizes = [16, 32], strides = [1, 1]} : vector<16x96xf32> to vector<16x32xf32>
    %328 = vector.extract_strided_slice %308 {offsets = [0, 64], sizes = [16, 32], strides = [1, 1]} : vector<16x96xf32> to vector<16x32xf32>
    %329 = arith.addf %328, %10 : vector<16x32xf32>
    %330 = arith.mulf %318, %329 : vector<16x32xf32>
    %331 = arith.addf %327, %330 : vector<16x32xf32>
    %332 = math.tanh %331 : vector<16x32xf32>
    %333 = arith.subf %294, %332 : vector<16x32xf32>
    %334 = arith.mulf %326, %333 : vector<16x32xf32>
    %335 = arith.addf %332, %334 : vector<16x32xf32>
    %336 = vector.extract_strided_slice %306 {offsets = [0, 0], sizes = [16, 32], strides = [1, 1]} : vector<16x96xf32> to vector<16x32xf32>
    %337 = vector.extract_strided_slice %310 {offsets = [0, 0], sizes = [16, 32], strides = [1, 1]} : vector<16x96xf32> to vector<16x32xf32>
    %338 = arith.addf %336, %337 : vector<16x32xf32>
    %339 = arith.negf %338 : vector<16x32xf32>
    %340 = math.exp %339 : vector<16x32xf32>
    %cst_83 = arith.constant 1.000000e+00 : f32
    %341 = vector.broadcast %cst_83 : f32 to vector<16x32xf32>
    %342 = arith.addf %341, %340 : vector<16x32xf32>
    %343 = arith.divf %341, %342 : vector<16x32xf32>
    %344 = vector.extract_strided_slice %306 {offsets = [0, 32], sizes = [16, 32], strides = [1, 1]} : vector<16x96xf32> to vector<16x32xf32>
    %345 = vector.extract_strided_slice %310 {offsets = [0, 32], sizes = [16, 32], strides = [1, 1]} : vector<16x96xf32> to vector<16x32xf32>
    %346 = arith.addf %344, %345 : vector<16x32xf32>
    %347 = arith.negf %346 : vector<16x32xf32>
    %348 = math.exp %347 : vector<16x32xf32>
    %cst_84 = arith.constant 1.000000e+00 : f32
    %349 = vector.broadcast %cst_84 : f32 to vector<16x32xf32>
    %350 = arith.addf %349, %348 : vector<16x32xf32>
    %351 = arith.divf %349, %350 : vector<16x32xf32>
    %352 = vector.extract_strided_slice %306 {offsets = [0, 64], sizes = [16, 32], strides = [1, 1]} : vector<16x96xf32> to vector<16x32xf32>
    %353 = vector.extract_strided_slice %310 {offsets = [0, 64], sizes = [16, 32], strides = [1, 1]} : vector<16x96xf32> to vector<16x32xf32>
    %354 = arith.addf %353, %14 : vector<16x32xf32>
    %355 = arith.mulf %343, %354 : vector<16x32xf32>
    %356 = arith.addf %352, %355 : vector<16x32xf32>
    %357 = math.tanh %356 : vector<16x32xf32>
    %358 = arith.subf %297, %357 : vector<16x32xf32>
    %359 = arith.mulf %351, %358 : vector<16x32xf32>
    %360 = arith.addf %357, %359 : vector<16x32xf32>
    %361 = vector.broadcast %c3_i32 : i32 to vector<16x1xi32>
    %362 = arith.cmpi slt, %361, %0 : vector<16x1xi32>
    %c7_i32_85 = arith.constant 7 : i32
    %363 = arith.subi %c7_i32_85, %c3_i32 : i32
    %364 = vector.broadcast %363 : i32 to vector<16x1xi32>
    %365 = arith.cmpi slt, %364, %0 : vector<16x1xi32>
    %cst_86 = arith.constant 0.000000e+00 : f32
    %366 = vector.shape_cast %362 : vector<16x1xi1> to vector<16x1xi1>
    %367 = vector.broadcast %366 : vector<16x1xi1> to vector<16x32xi1>
    %368 = vector.broadcast %cst_86 : f32 to vector<16x32xf32>
    %369 = arith.select %367, %335, %368 : vector<16x32xi1>, vector<16x32xf32>
    %370 = arith.truncf %369 : vector<16x32xf32> to vector<16x32xbf16>
    %371 = arith.index_cast %299 : i32 to index
    %c0_87 = arith.constant 0 : index
    %372 = vector.load %arg6[%371, %c0_87] : memref<128x32xbf16, #tpu.memory_space<vmem>>, vector<16x32xbf16>
    tpu.vector_store %arg6[%371, %c0_87], %370 {strides = array<i32>} : memref<128x32xbf16, #tpu.memory_space<vmem>>, vector<16x32xbf16>,
    %cst_88 = arith.constant 0.000000e+00 : f32
    %373 = vector.shape_cast %365 : vector<16x1xi1> to vector<16x1xi1>
    %374 = vector.broadcast %373 : vector<16x1xi1> to vector<16x32xi1>
    %375 = vector.broadcast %cst_88 : f32 to vector<16x32xf32>
    %376 = arith.select %374, %360, %375 : vector<16x32xi1>, vector<16x32xf32>
    %377 = arith.truncf %376 : vector<16x32xf32> to vector<16x32xbf16>
    %378 = arith.index_cast %302 : i32 to index
    %c0_89 = arith.constant 0 : index
    %379 = vector.load %arg7[%378, %c0_89] : memref<128x32xbf16, #tpu.memory_space<vmem>>, vector<16x32xbf16>
    tpu.vector_store %arg7[%378, %c0_89], %377 {strides = array<i32>} : memref<128x32xbf16, #tpu.memory_space<vmem>>, vector<16x32xbf16>,
    %380 = vector.shape_cast %362 : vector<16x1xi1> to vector<16x1xi1>
    %381 = vector.broadcast %380 : vector<16x1xi1> to vector<16x32xi1>
    %382 = arith.select %381, %335, %294 : vector<16x32xi1>, vector<16x32xf32>
    %383 = vector.shape_cast %365 : vector<16x1xi1> to vector<16x1xi1>
    %384 = vector.broadcast %383 : vector<16x1xi1> to vector<16x32xi1>
    %385 = arith.select %384, %360, %297 : vector<16x32xi1>, vector<16x32xf32>
    %c4_i32 = arith.constant 4 : i32
    %c16_i32_90 = arith.constant 16 : i32
    %386 = arith.muli %c4_i32, %c16_i32_90 : i32
    %387 = tpu.assume_multiple %386, 16 : i32
    %c7_i32_91 = arith.constant 7 : i32
    %388 = arith.subi %c7_i32_91, %c4_i32 : i32
    %c16_i32_92 = arith.constant 16 : i32
    %389 = arith.muli %388, %c16_i32_92 : i32
    %390 = tpu.assume_multiple %389, 16 : i32
    %391 = arith.index_cast %387 : i32 to index
    %c0_93 = arith.constant 0 : index
    %392 = vector.load %arg10[%391, %c0_93] : memref<128x96xf32, #tpu.memory_space<vmem>>, vector<16x96xf32>
    %393 = arith.index_cast %390 : i32 to index
    %c0_94 = arith.constant 0 : index
    %394 = vector.load %arg11[%393, %c0_94] : memref<128x96xf32, #tpu.memory_space<vmem>>, vector<16x96xf32>
    %395 = arith.truncf %382 : vector<16x32xf32> to vector<16x32xbf16>
    %cst_95 = arith.constant dense<0.000000e+00> : vector<16x96xf32>
    %396 = tpu.matmul %395, %2, %cst_95 {dimension_numbers = #tpu.dot_dimension_numbers<[1], [0], [0], [1], [0, 0, 1, 1], [], []>} : vector<16x32xbf16>, vector<32x96xbf16>, vector<16x96xf32> -> vector<16x96xf32>
    %397 = arith.truncf %385 : vector<16x32xf32> to vector<16x32xbf16>
    %cst_96 = arith.constant dense<0.000000e+00> : vector<16x96xf32>
    %398 = tpu.matmul %397, %4, %cst_96 {dimension_numbers = #tpu.dot_dimension_numbers<[1], [0], [0], [1], [0, 0, 1, 1], [], []>} : vector<16x32xbf16>, vector<32x96xbf16>, vector<16x96xf32> -> vector<16x96xf32>
    %399 = vector.extract_strided_slice %392 {offsets = [0, 0], sizes = [16, 32], strides = [1, 1]} : vector<16x96xf32> to vector<16x32xf32>
    %400 = vector.extract_strided_slice %396 {offsets = [0, 0], sizes = [16, 32], strides = [1, 1]} : vector<16x96xf32> to vector<16x32xf32>
    %401 = arith.addf %399, %400 : vector<16x32xf32>
    %402 = arith.negf %401 : vector<16x32xf32>
    %403 = math.exp %402 : vector<16x32xf32>
    %cst_97 = arith.constant 1.000000e+00 : f32
    %404 = vector.broadcast %cst_97 : f32 to vector<16x32xf32>
    %405 = arith.addf %404, %403 : vector<16x32xf32>
    %406 = arith.divf %404, %405 : vector<16x32xf32>
    %407 = vector.extract_strided_slice %392 {offsets = [0, 32], sizes = [16, 32], strides = [1, 1]} : vector<16x96xf32> to vector<16x32xf32>
    %408 = vector.extract_strided_slice %396 {offsets = [0, 32], sizes = [16, 32], strides = [1, 1]} : vector<16x96xf32> to vector<16x32xf32>
    %409 = arith.addf %407, %408 : vector<16x32xf32>
    %410 = arith.negf %409 : vector<16x32xf32>
    %411 = math.exp %410 : vector<16x32xf32>
    %cst_98 = arith.constant 1.000000e+00 : f32
    %412 = vector.broadcast %cst_98 : f32 to vector<16x32xf32>
    %413 = arith.addf %412, %411 : vector<16x32xf32>
    %414 = arith.divf %412, %413 : vector<16x32xf32>
    %415 = vector.extract_strided_slice %392 {offsets = [0, 64], sizes = [16, 32], strides = [1, 1]} : vector<16x96xf32> to vector<16x32xf32>
    %416 = vector.extract_strided_slice %396 {offsets = [0, 64], sizes = [16, 32], strides = [1, 1]} : vector<16x96xf32> to vector<16x32xf32>
    %417 = arith.addf %416, %10 : vector<16x32xf32>
    %418 = arith.mulf %406, %417 : vector<16x32xf32>
    %419 = arith.addf %415, %418 : vector<16x32xf32>
    %420 = math.tanh %419 : vector<16x32xf32>
    %421 = arith.subf %382, %420 : vector<16x32xf32>
    %422 = arith.mulf %414, %421 : vector<16x32xf32>
    %423 = arith.addf %420, %422 : vector<16x32xf32>
    %424 = vector.extract_strided_slice %394 {offsets = [0, 0], sizes = [16, 32], strides = [1, 1]} : vector<16x96xf32> to vector<16x32xf32>
    %425 = vector.extract_strided_slice %398 {offsets = [0, 0], sizes = [16, 32], strides = [1, 1]} : vector<16x96xf32> to vector<16x32xf32>
    %426 = arith.addf %424, %425 : vector<16x32xf32>
    %427 = arith.negf %426 : vector<16x32xf32>
    %428 = math.exp %427 : vector<16x32xf32>
    %cst_99 = arith.constant 1.000000e+00 : f32
    %429 = vector.broadcast %cst_99 : f32 to vector<16x32xf32>
    %430 = arith.addf %429, %428 : vector<16x32xf32>
    %431 = arith.divf %429, %430 : vector<16x32xf32>
    %432 = vector.extract_strided_slice %394 {offsets = [0, 32], sizes = [16, 32], strides = [1, 1]} : vector<16x96xf32> to vector<16x32xf32>
    %433 = vector.extract_strided_slice %398 {offsets = [0, 32], sizes = [16, 32], strides = [1, 1]} : vector<16x96xf32> to vector<16x32xf32>
    %434 = arith.addf %432, %433 : vector<16x32xf32>
    %435 = arith.negf %434 : vector<16x32xf32>
    %436 = math.exp %435 : vector<16x32xf32>
    %cst_100 = arith.constant 1.000000e+00 : f32
    %437 = vector.broadcast %cst_100 : f32 to vector<16x32xf32>
    %438 = arith.addf %437, %436 : vector<16x32xf32>
    %439 = arith.divf %437, %438 : vector<16x32xf32>
    %440 = vector.extract_strided_slice %394 {offsets = [0, 64], sizes = [16, 32], strides = [1, 1]} : vector<16x96xf32> to vector<16x32xf32>
    %441 = vector.extract_strided_slice %398 {offsets = [0, 64], sizes = [16, 32], strides = [1, 1]} : vector<16x96xf32> to vector<16x32xf32>
    %442 = arith.addf %441, %14 : vector<16x32xf32>
    %443 = arith.mulf %431, %442 : vector<16x32xf32>
    %444 = arith.addf %440, %443 : vector<16x32xf32>
    %445 = math.tanh %444 : vector<16x32xf32>
    %446 = arith.subf %385, %445 : vector<16x32xf32>
    %447 = arith.mulf %439, %446 : vector<16x32xf32>
    %448 = arith.addf %445, %447 : vector<16x32xf32>
    %449 = vector.broadcast %c4_i32 : i32 to vector<16x1xi32>
    %450 = arith.cmpi slt, %449, %0 : vector<16x1xi32>
    %c7_i32_101 = arith.constant 7 : i32
    %451 = arith.subi %c7_i32_101, %c4_i32 : i32
    %452 = vector.broadcast %451 : i32 to vector<16x1xi32>
    %453 = arith.cmpi slt, %452, %0 : vector<16x1xi32>
    %cst_102 = arith.constant 0.000000e+00 : f32
    %454 = vector.shape_cast %450 : vector<16x1xi1> to vector<16x1xi1>
    %455 = vector.broadcast %454 : vector<16x1xi1> to vector<16x32xi1>
    %456 = vector.broadcast %cst_102 : f32 to vector<16x32xf32>
    %457 = arith.select %455, %423, %456 : vector<16x32xi1>, vector<16x32xf32>
    %458 = arith.truncf %457 : vector<16x32xf32> to vector<16x32xbf16>
    %459 = arith.index_cast %387 : i32 to index
    %c0_103 = arith.constant 0 : index
    %460 = vector.load %arg6[%459, %c0_103] : memref<128x32xbf16, #tpu.memory_space<vmem>>, vector<16x32xbf16>
    tpu.vector_store %arg6[%459, %c0_103], %458 {strides = array<i32>} : memref<128x32xbf16, #tpu.memory_space<vmem>>, vector<16x32xbf16>,
    %cst_104 = arith.constant 0.000000e+00 : f32
    %461 = vector.shape_cast %453 : vector<16x1xi1> to vector<16x1xi1>
    %462 = vector.broadcast %461 : vector<16x1xi1> to vector<16x32xi1>
    %463 = vector.broadcast %cst_104 : f32 to vector<16x32xf32>
    %464 = arith.select %462, %448, %463 : vector<16x32xi1>, vector<16x32xf32>
    %465 = arith.truncf %464 : vector<16x32xf32> to vector<16x32xbf16>
    %466 = arith.index_cast %390 : i32 to index
    %c0_105 = arith.constant 0 : index
    %467 = vector.load %arg7[%466, %c0_105] : memref<128x32xbf16, #tpu.memory_space<vmem>>, vector<16x32xbf16>
    tpu.vector_store %arg7[%466, %c0_105], %465 {strides = array<i32>} : memref<128x32xbf16, #tpu.memory_space<vmem>>, vector<16x32xbf16>,
    %468 = vector.shape_cast %450 : vector<16x1xi1> to vector<16x1xi1>
    %469 = vector.broadcast %468 : vector<16x1xi1> to vector<16x32xi1>
    %470 = arith.select %469, %423, %382 : vector<16x32xi1>, vector<16x32xf32>
    %471 = vector.shape_cast %453 : vector<16x1xi1> to vector<16x1xi1>
    %472 = vector.broadcast %471 : vector<16x1xi1> to vector<16x32xi1>
    %473 = arith.select %472, %448, %385 : vector<16x32xi1>, vector<16x32xf32>
    %c5_i32 = arith.constant 5 : i32
    %c16_i32_106 = arith.constant 16 : i32
    %474 = arith.muli %c5_i32, %c16_i32_106 : i32
    %475 = tpu.assume_multiple %474, 16 : i32
    %c7_i32_107 = arith.constant 7 : i32
    %476 = arith.subi %c7_i32_107, %c5_i32 : i32
    %c16_i32_108 = arith.constant 16 : i32
    %477 = arith.muli %476, %c16_i32_108 : i32
    %478 = tpu.assume_multiple %477, 16 : i32
    %479 = arith.index_cast %475 : i32 to index
    %c0_109 = arith.constant 0 : index
    %480 = vector.load %arg10[%479, %c0_109] : memref<128x96xf32, #tpu.memory_space<vmem>>, vector<16x96xf32>
    %481 = arith.index_cast %478 : i32 to index
    %c0_110 = arith.constant 0 : index
    %482 = vector.load %arg11[%481, %c0_110] : memref<128x96xf32, #tpu.memory_space<vmem>>, vector<16x96xf32>
    %483 = arith.truncf %470 : vector<16x32xf32> to vector<16x32xbf16>
    %cst_111 = arith.constant dense<0.000000e+00> : vector<16x96xf32>
    %484 = tpu.matmul %483, %2, %cst_111 {dimension_numbers = #tpu.dot_dimension_numbers<[1], [0], [0], [1], [0, 0, 1, 1], [], []>} : vector<16x32xbf16>, vector<32x96xbf16>, vector<16x96xf32> -> vector<16x96xf32>
    %485 = arith.truncf %473 : vector<16x32xf32> to vector<16x32xbf16>
    %cst_112 = arith.constant dense<0.000000e+00> : vector<16x96xf32>
    %486 = tpu.matmul %485, %4, %cst_112 {dimension_numbers = #tpu.dot_dimension_numbers<[1], [0], [0], [1], [0, 0, 1, 1], [], []>} : vector<16x32xbf16>, vector<32x96xbf16>, vector<16x96xf32> -> vector<16x96xf32>
    %487 = vector.extract_strided_slice %480 {offsets = [0, 0], sizes = [16, 32], strides = [1, 1]} : vector<16x96xf32> to vector<16x32xf32>
    %488 = vector.extract_strided_slice %484 {offsets = [0, 0], sizes = [16, 32], strides = [1, 1]} : vector<16x96xf32> to vector<16x32xf32>
    %489 = arith.addf %487, %488 : vector<16x32xf32>
    %490 = arith.negf %489 : vector<16x32xf32>
    %491 = math.exp %490 : vector<16x32xf32>
    %cst_113 = arith.constant 1.000000e+00 : f32
    %492 = vector.broadcast %cst_113 : f32 to vector<16x32xf32>
    %493 = arith.addf %492, %491 : vector<16x32xf32>
    %494 = arith.divf %492, %493 : vector<16x32xf32>
    %495 = vector.extract_strided_slice %480 {offsets = [0, 32], sizes = [16, 32], strides = [1, 1]} : vector<16x96xf32> to vector<16x32xf32>
    %496 = vector.extract_strided_slice %484 {offsets = [0, 32], sizes = [16, 32], strides = [1, 1]} : vector<16x96xf32> to vector<16x32xf32>
    %497 = arith.addf %495, %496 : vector<16x32xf32>
    %498 = arith.negf %497 : vector<16x32xf32>
    %499 = math.exp %498 : vector<16x32xf32>
    %cst_114 = arith.constant 1.000000e+00 : f32
    %500 = vector.broadcast %cst_114 : f32 to vector<16x32xf32>
    %501 = arith.addf %500, %499 : vector<16x32xf32>
    %502 = arith.divf %500, %501 : vector<16x32xf32>
    %503 = vector.extract_strided_slice %480 {offsets = [0, 64], sizes = [16, 32], strides = [1, 1]} : vector<16x96xf32> to vector<16x32xf32>
    %504 = vector.extract_strided_slice %484 {offsets = [0, 64], sizes = [16, 32], strides = [1, 1]} : vector<16x96xf32> to vector<16x32xf32>
    %505 = arith.addf %504, %10 : vector<16x32xf32>
    %506 = arith.mulf %494, %505 : vector<16x32xf32>
    %507 = arith.addf %503, %506 : vector<16x32xf32>
    %508 = math.tanh %507 : vector<16x32xf32>
    %509 = arith.subf %470, %508 : vector<16x32xf32>
    %510 = arith.mulf %502, %509 : vector<16x32xf32>
    %511 = arith.addf %508, %510 : vector<16x32xf32>
    %512 = vector.extract_strided_slice %482 {offsets = [0, 0], sizes = [16, 32], strides = [1, 1]} : vector<16x96xf32> to vector<16x32xf32>
    %513 = vector.extract_strided_slice %486 {offsets = [0, 0], sizes = [16, 32], strides = [1, 1]} : vector<16x96xf32> to vector<16x32xf32>
    %514 = arith.addf %512, %513 : vector<16x32xf32>
    %515 = arith.negf %514 : vector<16x32xf32>
    %516 = math.exp %515 : vector<16x32xf32>
    %cst_115 = arith.constant 1.000000e+00 : f32
    %517 = vector.broadcast %cst_115 : f32 to vector<16x32xf32>
    %518 = arith.addf %517, %516 : vector<16x32xf32>
    %519 = arith.divf %517, %518 : vector<16x32xf32>
    %520 = vector.extract_strided_slice %482 {offsets = [0, 32], sizes = [16, 32], strides = [1, 1]} : vector<16x96xf32> to vector<16x32xf32>
    %521 = vector.extract_strided_slice %486 {offsets = [0, 32], sizes = [16, 32], strides = [1, 1]} : vector<16x96xf32> to vector<16x32xf32>
    %522 = arith.addf %520, %521 : vector<16x32xf32>
    %523 = arith.negf %522 : vector<16x32xf32>
    %524 = math.exp %523 : vector<16x32xf32>
    %cst_116 = arith.constant 1.000000e+00 : f32
    %525 = vector.broadcast %cst_116 : f32 to vector<16x32xf32>
    %526 = arith.addf %525, %524 : vector<16x32xf32>
    %527 = arith.divf %525, %526 : vector<16x32xf32>
    %528 = vector.extract_strided_slice %482 {offsets = [0, 64], sizes = [16, 32], strides = [1, 1]} : vector<16x96xf32> to vector<16x32xf32>
    %529 = vector.extract_strided_slice %486 {offsets = [0, 64], sizes = [16, 32], strides = [1, 1]} : vector<16x96xf32> to vector<16x32xf32>
    %530 = arith.addf %529, %14 : vector<16x32xf32>
    %531 = arith.mulf %519, %530 : vector<16x32xf32>
    %532 = arith.addf %528, %531 : vector<16x32xf32>
    %533 = math.tanh %532 : vector<16x32xf32>
    %534 = arith.subf %473, %533 : vector<16x32xf32>
    %535 = arith.mulf %527, %534 : vector<16x32xf32>
    %536 = arith.addf %533, %535 : vector<16x32xf32>
    %537 = vector.broadcast %c5_i32 : i32 to vector<16x1xi32>
    %538 = arith.cmpi slt, %537, %0 : vector<16x1xi32>
    %c7_i32_117 = arith.constant 7 : i32
    %539 = arith.subi %c7_i32_117, %c5_i32 : i32
    %540 = vector.broadcast %539 : i32 to vector<16x1xi32>
    %541 = arith.cmpi slt, %540, %0 : vector<16x1xi32>
    %cst_118 = arith.constant 0.000000e+00 : f32
    %542 = vector.shape_cast %538 : vector<16x1xi1> to vector<16x1xi1>
    %543 = vector.broadcast %542 : vector<16x1xi1> to vector<16x32xi1>
    %544 = vector.broadcast %cst_118 : f32 to vector<16x32xf32>
    %545 = arith.select %543, %511, %544 : vector<16x32xi1>, vector<16x32xf32>
    %546 = arith.truncf %545 : vector<16x32xf32> to vector<16x32xbf16>
    %547 = arith.index_cast %475 : i32 to index
    %c0_119 = arith.constant 0 : index
    %548 = vector.load %arg6[%547, %c0_119] : memref<128x32xbf16, #tpu.memory_space<vmem>>, vector<16x32xbf16>
    tpu.vector_store %arg6[%547, %c0_119], %546 {strides = array<i32>} : memref<128x32xbf16, #tpu.memory_space<vmem>>, vector<16x32xbf16>,
    %cst_120 = arith.constant 0.000000e+00 : f32
    %549 = vector.shape_cast %541 : vector<16x1xi1> to vector<16x1xi1>
    %550 = vector.broadcast %549 : vector<16x1xi1> to vector<16x32xi1>
    %551 = vector.broadcast %cst_120 : f32 to vector<16x32xf32>
    %552 = arith.select %550, %536, %551 : vector<16x32xi1>, vector<16x32xf32>
    %553 = arith.truncf %552 : vector<16x32xf32> to vector<16x32xbf16>
    %554 = arith.index_cast %478 : i32 to index
    %c0_121 = arith.constant 0 : index
    %555 = vector.load %arg7[%554, %c0_121] : memref<128x32xbf16, #tpu.memory_space<vmem>>, vector<16x32xbf16>
    tpu.vector_store %arg7[%554, %c0_121], %553 {strides = array<i32>} : memref<128x32xbf16, #tpu.memory_space<vmem>>, vector<16x32xbf16>,
    %556 = vector.shape_cast %538 : vector<16x1xi1> to vector<16x1xi1>
    %557 = vector.broadcast %556 : vector<16x1xi1> to vector<16x32xi1>
    %558 = arith.select %557, %511, %470 : vector<16x32xi1>, vector<16x32xf32>
    %559 = vector.shape_cast %541 : vector<16x1xi1> to vector<16x1xi1>
    %560 = vector.broadcast %559 : vector<16x1xi1> to vector<16x32xi1>
    %561 = arith.select %560, %536, %473 : vector<16x32xi1>, vector<16x32xf32>
    %c6_i32 = arith.constant 6 : i32
    %c16_i32_122 = arith.constant 16 : i32
    %562 = arith.muli %c6_i32, %c16_i32_122 : i32
    %563 = tpu.assume_multiple %562, 16 : i32
    %c7_i32_123 = arith.constant 7 : i32
    %564 = arith.subi %c7_i32_123, %c6_i32 : i32
    %c16_i32_124 = arith.constant 16 : i32
    %565 = arith.muli %564, %c16_i32_124 : i32
    %566 = tpu.assume_multiple %565, 16 : i32
    %567 = arith.index_cast %563 : i32 to index
    %c0_125 = arith.constant 0 : index
    %568 = vector.load %arg10[%567, %c0_125] : memref<128x96xf32, #tpu.memory_space<vmem>>, vector<16x96xf32>
    %569 = arith.index_cast %566 : i32 to index
    %c0_126 = arith.constant 0 : index
    %570 = vector.load %arg11[%569, %c0_126] : memref<128x96xf32, #tpu.memory_space<vmem>>, vector<16x96xf32>
    %571 = arith.truncf %558 : vector<16x32xf32> to vector<16x32xbf16>
    %cst_127 = arith.constant dense<0.000000e+00> : vector<16x96xf32>
    %572 = tpu.matmul %571, %2, %cst_127 {dimension_numbers = #tpu.dot_dimension_numbers<[1], [0], [0], [1], [0, 0, 1, 1], [], []>} : vector<16x32xbf16>, vector<32x96xbf16>, vector<16x96xf32> -> vector<16x96xf32>
    %573 = arith.truncf %561 : vector<16x32xf32> to vector<16x32xbf16>
    %cst_128 = arith.constant dense<0.000000e+00> : vector<16x96xf32>
    %574 = tpu.matmul %573, %4, %cst_128 {dimension_numbers = #tpu.dot_dimension_numbers<[1], [0], [0], [1], [0, 0, 1, 1], [], []>} : vector<16x32xbf16>, vector<32x96xbf16>, vector<16x96xf32> -> vector<16x96xf32>
    %575 = vector.extract_strided_slice %568 {offsets = [0, 0], sizes = [16, 32], strides = [1, 1]} : vector<16x96xf32> to vector<16x32xf32>
    %576 = vector.extract_strided_slice %572 {offsets = [0, 0], sizes = [16, 32], strides = [1, 1]} : vector<16x96xf32> to vector<16x32xf32>
    %577 = arith.addf %575, %576 : vector<16x32xf32>
    %578 = arith.negf %577 : vector<16x32xf32>
    %579 = math.exp %578 : vector<16x32xf32>
    %cst_129 = arith.constant 1.000000e+00 : f32
    %580 = vector.broadcast %cst_129 : f32 to vector<16x32xf32>
    %581 = arith.addf %580, %579 : vector<16x32xf32>
    %582 = arith.divf %580, %581 : vector<16x32xf32>
    %583 = vector.extract_strided_slice %568 {offsets = [0, 32], sizes = [16, 32], strides = [1, 1]} : vector<16x96xf32> to vector<16x32xf32>
    %584 = vector.extract_strided_slice %572 {offsets = [0, 32], sizes = [16, 32], strides = [1, 1]} : vector<16x96xf32> to vector<16x32xf32>
    %585 = arith.addf %583, %584 : vector<16x32xf32>
    %586 = arith.negf %585 : vector<16x32xf32>
    %587 = math.exp %586 : vector<16x32xf32>
    %cst_130 = arith.constant 1.000000e+00 : f32
    %588 = vector.broadcast %cst_130 : f32 to vector<16x32xf32>
    %589 = arith.addf %588, %587 : vector<16x32xf32>
    %590 = arith.divf %588, %589 : vector<16x32xf32>
    %591 = vector.extract_strided_slice %568 {offsets = [0, 64], sizes = [16, 32], strides = [1, 1]} : vector<16x96xf32> to vector<16x32xf32>
    %592 = vector.extract_strided_slice %572 {offsets = [0, 64], sizes = [16, 32], strides = [1, 1]} : vector<16x96xf32> to vector<16x32xf32>
    %593 = arith.addf %592, %10 : vector<16x32xf32>
    %594 = arith.mulf %582, %593 : vector<16x32xf32>
    %595 = arith.addf %591, %594 : vector<16x32xf32>
    %596 = math.tanh %595 : vector<16x32xf32>
    %597 = arith.subf %558, %596 : vector<16x32xf32>
    %598 = arith.mulf %590, %597 : vector<16x32xf32>
    %599 = arith.addf %596, %598 : vector<16x32xf32>
    %600 = vector.extract_strided_slice %570 {offsets = [0, 0], sizes = [16, 32], strides = [1, 1]} : vector<16x96xf32> to vector<16x32xf32>
    %601 = vector.extract_strided_slice %574 {offsets = [0, 0], sizes = [16, 32], strides = [1, 1]} : vector<16x96xf32> to vector<16x32xf32>
    %602 = arith.addf %600, %601 : vector<16x32xf32>
    %603 = arith.negf %602 : vector<16x32xf32>
    %604 = math.exp %603 : vector<16x32xf32>
    %cst_131 = arith.constant 1.000000e+00 : f32
    %605 = vector.broadcast %cst_131 : f32 to vector<16x32xf32>
    %606 = arith.addf %605, %604 : vector<16x32xf32>
    %607 = arith.divf %605, %606 : vector<16x32xf32>
    %608 = vector.extract_strided_slice %570 {offsets = [0, 32], sizes = [16, 32], strides = [1, 1]} : vector<16x96xf32> to vector<16x32xf32>
    %609 = vector.extract_strided_slice %574 {offsets = [0, 32], sizes = [16, 32], strides = [1, 1]} : vector<16x96xf32> to vector<16x32xf32>
    %610 = arith.addf %608, %609 : vector<16x32xf32>
    %611 = arith.negf %610 : vector<16x32xf32>
    %612 = math.exp %611 : vector<16x32xf32>
    %cst_132 = arith.constant 1.000000e+00 : f32
    %613 = vector.broadcast %cst_132 : f32 to vector<16x32xf32>
    %614 = arith.addf %613, %612 : vector<16x32xf32>
    %615 = arith.divf %613, %614 : vector<16x32xf32>
    %616 = vector.extract_strided_slice %570 {offsets = [0, 64], sizes = [16, 32], strides = [1, 1]} : vector<16x96xf32> to vector<16x32xf32>
    %617 = vector.extract_strided_slice %574 {offsets = [0, 64], sizes = [16, 32], strides = [1, 1]} : vector<16x96xf32> to vector<16x32xf32>
    %618 = arith.addf %617, %14 : vector<16x32xf32>
    %619 = arith.mulf %607, %618 : vector<16x32xf32>
    %620 = arith.addf %616, %619 : vector<16x32xf32>
    %621 = math.tanh %620 : vector<16x32xf32>
    %622 = arith.subf %561, %621 : vector<16x32xf32>
    %623 = arith.mulf %615, %622 : vector<16x32xf32>
    %624 = arith.addf %621, %623 : vector<16x32xf32>
    %625 = vector.broadcast %c6_i32 : i32 to vector<16x1xi32>
    %626 = arith.cmpi slt, %625, %0 : vector<16x1xi32>
    %c7_i32_133 = arith.constant 7 : i32
    %627 = arith.subi %c7_i32_133, %c6_i32 : i32
    %628 = vector.broadcast %627 : i32 to vector<16x1xi32>
    %629 = arith.cmpi slt, %628, %0 : vector<16x1xi32>
    %cst_134 = arith.constant 0.000000e+00 : f32
    %630 = vector.shape_cast %626 : vector<16x1xi1> to vector<16x1xi1>
    %631 = vector.broadcast %630 : vector<16x1xi1> to vector<16x32xi1>
    %632 = vector.broadcast %cst_134 : f32 to vector<16x32xf32>
    %633 = arith.select %631, %599, %632 : vector<16x32xi1>, vector<16x32xf32>
    %634 = arith.truncf %633 : vector<16x32xf32> to vector<16x32xbf16>
    %635 = arith.index_cast %563 : i32 to index
    %c0_135 = arith.constant 0 : index
    %636 = vector.load %arg6[%635, %c0_135] : memref<128x32xbf16, #tpu.memory_space<vmem>>, vector<16x32xbf16>
    tpu.vector_store %arg6[%635, %c0_135], %634 {strides = array<i32>} : memref<128x32xbf16, #tpu.memory_space<vmem>>, vector<16x32xbf16>,
    %cst_136 = arith.constant 0.000000e+00 : f32
    %637 = vector.shape_cast %629 : vector<16x1xi1> to vector<16x1xi1>
    %638 = vector.broadcast %637 : vector<16x1xi1> to vector<16x32xi1>
    %639 = vector.broadcast %cst_136 : f32 to vector<16x32xf32>
    %640 = arith.select %638, %624, %639 : vector<16x32xi1>, vector<16x32xf32>
    %641 = arith.truncf %640 : vector<16x32xf32> to vector<16x32xbf16>
    %642 = arith.index_cast %566 : i32 to index
    %c0_137 = arith.constant 0 : index
    %643 = vector.load %arg7[%642, %c0_137] : memref<128x32xbf16, #tpu.memory_space<vmem>>, vector<16x32xbf16>
    tpu.vector_store %arg7[%642, %c0_137], %641 {strides = array<i32>} : memref<128x32xbf16, #tpu.memory_space<vmem>>, vector<16x32xbf16>,
    %644 = vector.shape_cast %626 : vector<16x1xi1> to vector<16x1xi1>
    %645 = vector.broadcast %644 : vector<16x1xi1> to vector<16x32xi1>
    %646 = arith.select %645, %599, %558 : vector<16x32xi1>, vector<16x32xf32>
    %647 = vector.shape_cast %629 : vector<16x1xi1> to vector<16x1xi1>
    %648 = vector.broadcast %647 : vector<16x1xi1> to vector<16x32xi1>
    %649 = arith.select %648, %624, %561 : vector<16x32xi1>, vector<16x32xf32>
    %c7_i32_138 = arith.constant 7 : i32
    %c16_i32_139 = arith.constant 16 : i32
    %650 = arith.muli %c7_i32_138, %c16_i32_139 : i32
    %651 = tpu.assume_multiple %650, 16 : i32
    %c7_i32_140 = arith.constant 7 : i32
    %652 = arith.subi %c7_i32_140, %c7_i32_138 : i32
    %c16_i32_141 = arith.constant 16 : i32
    %653 = arith.muli %652, %c16_i32_141 : i32
    %654 = tpu.assume_multiple %653, 16 : i32
    %655 = arith.index_cast %651 : i32 to index
    %c0_142 = arith.constant 0 : index
    %656 = vector.load %arg10[%655, %c0_142] : memref<128x96xf32, #tpu.memory_space<vmem>>, vector<16x96xf32>
    %657 = arith.index_cast %654 : i32 to index
    %c0_143 = arith.constant 0 : index
    %658 = vector.load %arg11[%657, %c0_143] : memref<128x96xf32, #tpu.memory_space<vmem>>, vector<16x96xf32>
    %659 = arith.truncf %646 : vector<16x32xf32> to vector<16x32xbf16>
    %cst_144 = arith.constant dense<0.000000e+00> : vector<16x96xf32>
    %660 = tpu.matmul %659, %2, %cst_144 {dimension_numbers = #tpu.dot_dimension_numbers<[1], [0], [0], [1], [0, 0, 1, 1], [], []>} : vector<16x32xbf16>, vector<32x96xbf16>, vector<16x96xf32> -> vector<16x96xf32>
    %661 = arith.truncf %649 : vector<16x32xf32> to vector<16x32xbf16>
    %cst_145 = arith.constant dense<0.000000e+00> : vector<16x96xf32>
    %662 = tpu.matmul %661, %4, %cst_145 {dimension_numbers = #tpu.dot_dimension_numbers<[1], [0], [0], [1], [0, 0, 1, 1], [], []>} : vector<16x32xbf16>, vector<32x96xbf16>, vector<16x96xf32> -> vector<16x96xf32>
    %663 = vector.extract_strided_slice %656 {offsets = [0, 0], sizes = [16, 32], strides = [1, 1]} : vector<16x96xf32> to vector<16x32xf32>
    %664 = vector.extract_strided_slice %660 {offsets = [0, 0], sizes = [16, 32], strides = [1, 1]} : vector<16x96xf32> to vector<16x32xf32>
    %665 = arith.addf %663, %664 : vector<16x32xf32>
    %666 = arith.negf %665 : vector<16x32xf32>
    %667 = math.exp %666 : vector<16x32xf32>
    %cst_146 = arith.constant 1.000000e+00 : f32
    %668 = vector.broadcast %cst_146 : f32 to vector<16x32xf32>
    %669 = arith.addf %668, %667 : vector<16x32xf32>
    %670 = arith.divf %668, %669 : vector<16x32xf32>
    %671 = vector.extract_strided_slice %656 {offsets = [0, 32], sizes = [16, 32], strides = [1, 1]} : vector<16x96xf32> to vector<16x32xf32>
    %672 = vector.extract_strided_slice %660 {offsets = [0, 32], sizes = [16, 32], strides = [1, 1]} : vector<16x96xf32> to vector<16x32xf32>
    %673 = arith.addf %671, %672 : vector<16x32xf32>
    %674 = arith.negf %673 : vector<16x32xf32>
    %675 = math.exp %674 : vector<16x32xf32>
    %cst_147 = arith.constant 1.000000e+00 : f32
    %676 = vector.broadcast %cst_147 : f32 to vector<16x32xf32>
    %677 = arith.addf %676, %675 : vector<16x32xf32>
    %678 = arith.divf %676, %677 : vector<16x32xf32>
    %679 = vector.extract_strided_slice %656 {offsets = [0, 64], sizes = [16, 32], strides = [1, 1]} : vector<16x96xf32> to vector<16x32xf32>
    %680 = vector.extract_strided_slice %660 {offsets = [0, 64], sizes = [16, 32], strides = [1, 1]} : vector<16x96xf32> to vector<16x32xf32>
    %681 = arith.addf %680, %10 : vector<16x32xf32>
    %682 = arith.mulf %670, %681 : vector<16x32xf32>
    %683 = arith.addf %679, %682 : vector<16x32xf32>
    %684 = math.tanh %683 : vector<16x32xf32>
    %685 = arith.subf %646, %684 : vector<16x32xf32>
    %686 = arith.mulf %678, %685 : vector<16x32xf32>
    %687 = arith.addf %684, %686 : vector<16x32xf32>
    %688 = vector.extract_strided_slice %658 {offsets = [0, 0], sizes = [16, 32], strides = [1, 1]} : vector<16x96xf32> to vector<16x32xf32>
    %689 = vector.extract_strided_slice %662 {offsets = [0, 0], sizes = [16, 32], strides = [1, 1]} : vector<16x96xf32> to vector<16x32xf32>
    %690 = arith.addf %688, %689 : vector<16x32xf32>
    %691 = arith.negf %690 : vector<16x32xf32>
    %692 = math.exp %691 : vector<16x32xf32>
    %cst_148 = arith.constant 1.000000e+00 : f32
    %693 = vector.broadcast %cst_148 : f32 to vector<16x32xf32>
    %694 = arith.addf %693, %692 : vector<16x32xf32>
    %695 = arith.divf %693, %694 : vector<16x32xf32>
    %696 = vector.extract_strided_slice %658 {offsets = [0, 32], sizes = [16, 32], strides = [1, 1]} : vector<16x96xf32> to vector<16x32xf32>
    %697 = vector.extract_strided_slice %662 {offsets = [0, 32], sizes = [16, 32], strides = [1, 1]} : vector<16x96xf32> to vector<16x32xf32>
    %698 = arith.addf %696, %697 : vector<16x32xf32>
    %699 = arith.negf %698 : vector<16x32xf32>
    %700 = math.exp %699 : vector<16x32xf32>
    %cst_149 = arith.constant 1.000000e+00 : f32
    %701 = vector.broadcast %cst_149 : f32 to vector<16x32xf32>
    %702 = arith.addf %701, %700 : vector<16x32xf32>
    %703 = arith.divf %701, %702 : vector<16x32xf32>
    %704 = vector.extract_strided_slice %658 {offsets = [0, 64], sizes = [16, 32], strides = [1, 1]} : vector<16x96xf32> to vector<16x32xf32>
    %705 = vector.extract_strided_slice %662 {offsets = [0, 64], sizes = [16, 32], strides = [1, 1]} : vector<16x96xf32> to vector<16x32xf32>
    %706 = arith.addf %705, %14 : vector<16x32xf32>
    %707 = arith.mulf %695, %706 : vector<16x32xf32>
    %708 = arith.addf %704, %707 : vector<16x32xf32>
    %709 = math.tanh %708 : vector<16x32xf32>
    %710 = arith.subf %649, %709 : vector<16x32xf32>
    %711 = arith.mulf %703, %710 : vector<16x32xf32>
    %712 = arith.addf %709, %711 : vector<16x32xf32>
    %713 = vector.broadcast %c7_i32_138 : i32 to vector<16x1xi32>
    %714 = arith.cmpi slt, %713, %0 : vector<16x1xi32>
    %c7_i32_150 = arith.constant 7 : i32
    %715 = arith.subi %c7_i32_150, %c7_i32_138 : i32
    %716 = vector.broadcast %715 : i32 to vector<16x1xi32>
    %717 = arith.cmpi slt, %716, %0 : vector<16x1xi32>
    %cst_151 = arith.constant 0.000000e+00 : f32
    %718 = vector.shape_cast %714 : vector<16x1xi1> to vector<16x1xi1>
    %719 = vector.broadcast %718 : vector<16x1xi1> to vector<16x32xi1>
    %720 = vector.broadcast %cst_151 : f32 to vector<16x32xf32>
    %721 = arith.select %719, %687, %720 : vector<16x32xi1>, vector<16x32xf32>
    %722 = arith.truncf %721 : vector<16x32xf32> to vector<16x32xbf16>
    %723 = arith.index_cast %651 : i32 to index
    %c0_152 = arith.constant 0 : index
    %724 = vector.load %arg6[%723, %c0_152] : memref<128x32xbf16, #tpu.memory_space<vmem>>, vector<16x32xbf16>
    tpu.vector_store %arg6[%723, %c0_152], %722 {strides = array<i32>} : memref<128x32xbf16, #tpu.memory_space<vmem>>, vector<16x32xbf16>,
    %cst_153 = arith.constant 0.000000e+00 : f32
    %725 = vector.shape_cast %717 : vector<16x1xi1> to vector<16x1xi1>
    %726 = vector.broadcast %725 : vector<16x1xi1> to vector<16x32xi1>
    %727 = vector.broadcast %cst_153 : f32 to vector<16x32xf32>
    %728 = arith.select %726, %712, %727 : vector<16x32xi1>, vector<16x32xf32>
    %729 = arith.truncf %728 : vector<16x32xf32> to vector<16x32xbf16>
    %730 = arith.index_cast %654 : i32 to index
    %c0_154 = arith.constant 0 : index
    %731 = vector.load %arg7[%730, %c0_154] : memref<128x32xbf16, #tpu.memory_space<vmem>>, vector<16x32xbf16>
    tpu.vector_store %arg7[%730, %c0_154], %729 {strides = array<i32>} : memref<128x32xbf16, #tpu.memory_space<vmem>>, vector<16x32xbf16>,
    %732 = vector.shape_cast %714 : vector<16x1xi1> to vector<16x1xi1>
    %733 = vector.broadcast %732 : vector<16x1xi1> to vector<16x32xi1>
    %734 = arith.select %733, %687, %646 : vector<16x32xi1>, vector<16x32xf32>
    %735 = vector.shape_cast %717 : vector<16x1xi1> to vector<16x1xi1>
    %736 = vector.broadcast %735 : vector<16x1xi1> to vector<16x32xi1>
    %737 = arith.select %736, %712, %649 : vector<16x32xi1>, vector<16x32xf32>
    %c8_i32 = arith.constant 8 : i32
    %c0_155 = arith.constant 0 : index
    %c0_156 = arith.constant 0 : index
    %738 = vector.load %arg8[%c0_155, %c0_156] : memref<16x32xf32, #tpu.memory_space<vmem>>, vector<16x32xf32>
    tpu.vector_store %arg8[%c0_155, %c0_156], %734 {strides = array<i32>} : memref<16x32xf32, #tpu.memory_space<vmem>>, vector<16x32xf32>,
    %c0_157 = arith.constant 0 : index
    %c0_158 = arith.constant 0 : index
    %739 = vector.load %arg9[%c0_157, %c0_158] : memref<16x32xf32, #tpu.memory_space<vmem>>, vector<16x32xf32>
    tpu.vector_store %arg9[%c0_157, %c0_158], %737 {strides = array<i32>} : memref<16x32xf32, #tpu.memory_space<vmem>>, vector<16x32xf32>,
    return
  }
}

</mosaic_0001>

<llo_original>
// kernel: tpu_custom_call.1
$region0: #{tpu_custom_call.1}
  #allocation0 [shape = 'u32[]', space=smem, size = 0x4, offset = 0x4, fixed_abs, tag = 'smem constant byte address 0x4 - core index']
  #allocation1 [shape = 'u32[144,128]{1,0:T(1,128)}', space=vmem, size = 0x12000, scoped, tag = 'internal scratch']
  #allocation2 [shape = 'f32[128,96]{1,0:T(8,128)}', space=vmem, size = 0x10000, scoped, tag = 'scratch operand']
  #allocation3 [shape = 'f32[128,96]{1,0:T(8,128)}', space=vmem, size = 0x10000, scoped, tag = 'scratch operand']
  %s0 = inlined_call_operand.vmem [shape: s32[16,1], index: 0, kind: input, shape index: {}]
  %s1 = inlined_call_operand.vmem [shape: f32[128,32], index: 1, kind: input, shape index: {}]
  %s2 = inlined_call_operand.vmem [shape: bf16[2,1,32,96], index: 2, kind: input, shape index: {}]
  %s3 = inlined_call_operand.vmem [shape: f32[2,1,96], index: 3, kind: input, shape index: {}]
  %s4 = inlined_call_operand.vmem [shape: bf16[2,32,96], index: 4, kind: input, shape index: {}]
  %s5 = inlined_call_operand.vmem [shape: f32[2,1,32], index: 5, kind: input, shape index: {}]
  %s6 = inlined_call_operand.vmem [shape: bf16[128,32], index: 6, kind: output, shape index: {0}]
  %s7 = inlined_call_operand.vmem [shape: bf16[128,32], index: 7, kind: output, shape index: {1}]
  %s8 = inlined_call_operand.hbm [shape: f32[16,32], index: 8, kind: output, shape index: {2}]
  %s9 = inlined_call_operand.hbm [shape: f32[16,32], index: 9, kind: output, shape index: {3}]
  %10 = xla_tuple %s6, %s7, %s8, %s9
  %s11 = sld [smem:[#allocation0]]
  $region58: #{tpu_custom_call.1} parent=0
    _
  %s13 = ssub.s32 1, %s11
  %s14 = scalar_select 0, %s13, %s11
  $region1: #{tpu_custom_call.1} parent=0
    #allocation4 [shape = 'u8[8192]{0}', space=vmem, size = 0x2000, scoped, tag = 'output window, operand 2, single buffered']
    #allocation5 [shape = 's32[1]{0}', space=sflag, size = 0x4, scoped, tag = 'scoped memory for tpu_custom_call.1']
    #allocation6 [shape = 'u8[8192]{0}', space=vmem, size = 0x2000, scoped, tag = 'output window, operand 3, single buffered']
    #allocation7 [shape = 's32[1]{0}', space=sflag, size = 0x4, scoped, tag = 'scoped memory for tpu_custom_call.1']
    %15 = vsyncpa [#allocation5], 0
    %16 = vsyncpa [#allocation7], 0
    // Predicated region
    $region2: #{tpu_custom_call.1} parent=1 // pred_check
      _
    $region3: #{tpu_custom_call.1} parent=1 // pred_check_branch
      %18 = sbr.rel (0) target = $region5
    $region4: #{tpu_custom_call.1} parent=1 // pred_region
      _
    $region5: #{tpu_custom_call.1} parent=1 // pred_fallthru
      _
    // Predicated region
    $region6: #{tpu_custom_call.1} parent=1 // pred_check
      _
    $region7: #{tpu_custom_call.1} parent=1 // pred_check_branch
      %20 = sbr.rel (0) target = $region9
    $region8: #{tpu_custom_call.1} parent=1 // pred_region
      _
    $region9: #{tpu_custom_call.1} parent=1 // pred_fallthru
      _
    // Predicated region
    $region10: #{tpu_custom_call.1} parent=1 // pred_check
      _
    $region11: #{tpu_custom_call.1} parent=1 // pred_check_branch
      %22 = sbr.rel (0) target = $region13
    $region12: #{tpu_custom_call.1} parent=1 // pred_region
      _
    $region13: #{tpu_custom_call.1} parent=1 // pred_fallthru
      _
    // Predicated region
    $region14: #{tpu_custom_call.1} parent=1 // pred_check
      _
    $region15: #{tpu_custom_call.1} parent=1 // pred_check_branch
      %24 = sbr.rel (0) target = $region17
    $region16: #{tpu_custom_call.1} parent=1 // pred_region
      _
    $region17: #{tpu_custom_call.1} parent=1 // pred_fallthru
      _
    // Predicated region
    $region18: #{tpu_custom_call.1} parent=1 // pred_check
      _
    $region19: #{tpu_custom_call.1} parent=1 // pred_check_branch
      %26 = sbr.rel (0) target = $region21
    $region20: #{tpu_custom_call.1} parent=1 // pred_region
      _
    $region21: #{tpu_custom_call.1} parent=1 // pred_fallthru
      _
    // Predicated region
    $region22: #{tpu_custom_call.1} parent=1 // pred_check
      _
    $region23: #{tpu_custom_call.1} parent=1 // pred_check_branch
      %28 = sbr.rel (0) target = $region25
    $region24: #{tpu_custom_call.1} parent=1 // pred_region
      _
    $region25: #{tpu_custom_call.1} parent=1 // pred_fallthru
      _
    %v30 = vld [vmem:[%s0] sm:$0xff]
    %v31 = vld [vmem:[%s0 + $0x8] sm:$0xff]
    %v32 = vld [vmem:[%s4] sm:$0xf]
    %v33 = vld [vmem:[%s4 + $0x4] sm:$0xf]
    %v34 = vld [vmem:[%s4 + $0x8] sm:$0xf]
    %v35 = vld [vmem:[%s4 + $0xc] sm:$0xf]
    %s36 = scalar_lea.vmem %s4, 16
    %v37 = vld [vmem:[%s36] sm:$0xf]
    %v38 = vld [vmem:[%s36 + $0x4] sm:$0xf]
    %v39 = vld [vmem:[%s36 + $0x8] sm:$0xf]
    %v40 = vld [vmem:[%s36 + $0xc] sm:$0xf]
    %v41 = vld [vmem:[%s3] sm:$0x1]
    %v42 = vld [vmem:[%s3 + $0x1] sm:$0x1]
    %v43 = vld [vmem:[%s5] sm:$0x1]
    %v44 = vld [vmem:[%s5 + $0x1] sm:$0x1]
    %v46 = vlaneseq
    %v47 = vshrl.u32 %v46, 7
    %v48 = vsub.s32 0, %v47
    %v49 = vrot.slane %v43, %v48
    %v51 = vlaneseq
    %v52 = vshrl.u32 %v51, 7
    %v53 = vsub.s32 0, %v52
    %v54 = vrot.slane %v44, %v53
    %v55 = vld [vmem:[%s1] sm:$0xff]
    %v56 = vld [vmem:[%s1 + $0x8] sm:$0xff]
    %v57 = vld [vmem:[%s1 + $0x10] sm:$0xff]
    %v58 = vld [vmem:[%s1 + $0x18] sm:$0xff]
    %v59 = vld [vmem:[%s1 + $0x20] sm:$0xff]
    %v60 = vld [vmem:[%s1 + $0x28] sm:$0xff]
    %v61 = vld [vmem:[%s1 + $0x30] sm:$0xff]
    %v62 = vld [vmem:[%s1 + $0x38] sm:$0xff]
    %v63 = vld [vmem:[%s1 + $0x40] sm:$0xff]
    %v64 = vld [vmem:[%s1 + $0x48] sm:$0xff]
    %v65 = vld [vmem:[%s1 + $0x50] sm:$0xff]
    %v66 = vld [vmem:[%s1 + $0x58] sm:$0xff]
    %v67 = vld [vmem:[%s1 + $0x60] sm:$0xff]
    %v68 = vld [vmem:[%s1 + $0x68] sm:$0xff]
    %v69 = vld [vmem:[%s1 + $0x70] sm:$0xff]
    %v70 = vld [vmem:[%s1 + $0x78] sm:$0xff]
    %v71 = vpack.c.bf16 %v56, %v55
    %v72 = vpack.c.bf16 %v58, %v57
    %v73 = vpack.c.bf16 %v60, %v59
    %v74 = vpack.c.bf16 %v62, %v61
    %v75 = vpack.c.bf16 %v64, %v63
    %v76 = vpack.c.bf16 %v66, %v65
    %v77 = vpack.c.bf16 %v68, %v67
    %v78 = vpack.c.bf16 %v70, %v69
    %v79 = vld [vmem:[%s2] sm:$0xf]
    %v80 = vld [vmem:[%s2 + $0x4] sm:$0xf]
    %v81 = vld [vmem:[%s2 + $0x8] sm:$0xf]
    %v82 = vld [vmem:[%s2 + $0xc] sm:$0xf]
    %v84 = vlaneseq
    %v85 = vshrl.u32 %v84, 7
    %v86 = vsub.s32 0, %v85
    %v87 = vrot.slane %v41, %v86
    %v93 = vunpack.c.l.b16 %v79
    %v94 = vunpack.c.l.b16 %v80
    %v95 = vunpack.c.l.b16 %v81
    %v96 = vunpack.c.l.b16 %v82
    %v97 = vpack.c.b16 %v94, %v93
    %v98 = vpack.c.b16 %v96, %v95
    %vm101 = vcmask 261120
    %v103 = vsel %vm101, %v71, 0
    %v106 = vsel %vm101, %v72, 0
    %v109 = vsel %vm101, %v73, 0
    %v112 = vsel %vm101, %v74, 0
    %v115 = vsel %vm101, %v75, 0
    %v118 = vsel %vm101, %v76, 0
    %v121 = vsel %vm101, %v77, 0
    %v124 = vsel %vm101, %v78, 0
    %126 = vmatprep.subr.bf16.mxu0 0
    %127 = vmatpush1.bf16.msra.mxu0 %v97
    %128 = vmatprep.subr.bf16.mxu0 0
    %129 = vmatpush1.bf16.msra.mxu0 %v98
    %130 = vmatprep.subr.bf16.mxu0 0
    %131 = vmatpush1.bf16.msra.mxu0 0
    %132 = vmatprep.subr.bf16.mxu0 0
    %133 = vmatpush1.bf16.msra.mxu0 0
    %134 = vmatprep.subr.bf16.mxu0 0
    %135 = vmatpush1.bf16.msra.mxu0 0
    %136 = vmatprep.subr.bf16.mxu0 0
    %137 = vmatpush1.bf16.msra.mxu0 0
    %138 = vmatprep.subr.bf16.mxu0 0
    %139 = vmatpush1.bf16.msra.mxu0 0
    %140 = vmatprep.subr.bf16.mxu0 0
    %141 = vmatpush1.bf16.msra.mxu0 0
    %142 = vmatprep.subr.bf16.mxu0 0
    %143 = vmatpush1.bf16.msra.mxu0 0
    %144 = vmatprep.subr.bf16.mxu0 0
    %145 = vmatpush1.bf16.msra.mxu0 0
    %146 = vmatprep.subr.bf16.mxu0 0
    %147 = vmatpush1.bf16.msra.mxu0 0
    %148 = vmatprep.subr.bf16.mxu0 0
    %149 = vmatpush1.bf16.msra.mxu0 0
    %150 = vmatprep.subr.bf16.mxu0 0
    %151 = vmatpush1.bf16.msra.mxu0 0
    %152 = vmatprep.subr.bf16.mxu0 0
    %153 = vmatpush1.bf16.msra.mxu0 0
    %154 = vmatprep.subr.bf16.mxu0 0
    %155 = vmatpush1.bf16.msra.mxu0 0
    %156 = vmatprep.subr.bf16.mxu0 0
    %157 = vmatpush1.bf16.msra.mxu0 0
    %158 = vmatprep.mubr.bf16.mxu0 0
    %159 = vmatmul.mubr.bf16.gmra.mrb[0].mxu0 %v103
    %v160 = vpop.f32.mrb[0].mxu0
    %v161 = vadd.f32 %v87, %v160
    %v162 = vpop.f32.mrb[0].mxu0
    %v163 = vpop.f32.mrb[0].mxu0
    %v164 = vadd.f32 %v87, %v163
    %v165 = vpop.f32.mrb[0].mxu0
    %166 = vmatprep.mubr.bf16.mxu0 0
    %167 = vmatmul.mubr.bf16.gmra.mrb[0].mxu0 %v106
    %v168 = vpop.f32.mrb[0].mxu0
    %v169 = vadd.f32 %v87, %v168
    %v170 = vpop.f32.mrb[0].mxu0
    %v171 = vpop.f32.mrb[0].mxu0
    %v172 = vadd.f32 %v87, %v171
    %v173 = vpop.f32.mrb[0].mxu0
    %174 = vmatprep.mubr.bf16.mxu0 0
    %175 = vmatmul.mubr.bf16.gmra.mrb[0].mxu0 %v109
    %v176 = vpop.f32.mrb[0].mxu0
    %v177 = vadd.f32 %v87, %v176
    %v178 = vpop.f32.mrb[0].mxu0
    %v179 = vpop.f32.mrb[0].mxu0
    %v180 = vadd.f32 %v87, %v179
    %v181 = vpop.f32.mrb[0].mxu0
    %182 = vmatprep.mubr.bf16.mxu0 0
    %183 = vmatmul.mubr.bf16.gmra.mrb[0].mxu0 %v112
    %v184 = vpop.f32.mrb[0].mxu0
    %v185 = vadd.f32 %v87, %v184
    %v186 = vpop.f32.mrb[0].mxu0
    %v187 = vpop.f32.mrb[0].mxu0
    %v188 = vadd.f32 %v87, %v187
    %v189 = vpop.f32.mrb[0].mxu0
    %190 = vmatprep.mubr.bf16.mxu0 0
    %191 = vmatmul.mubr.bf16.gmra.mrb[0].mxu0 %v115
    %v192 = vpop.f32.mrb[0].mxu0
    %v193 = vadd.f32 %v87, %v192
    %v194 = vpop.f32.mrb[0].mxu0
    %v195 = vpop.f32.mrb[0].mxu0
    %v196 = vadd.f32 %v87, %v195
    %v197 = vpop.f32.mrb[0].mxu0
    %198 = vmatprep.mubr.bf16.mxu0 0
    %199 = vmatmul.mubr.bf16.gmra.mrb[0].mxu0 %v118
    %v200 = vpop.f32.mrb[0].mxu0
    %v201 = vadd.f32 %v87, %v200
    %v202 = vpop.f32.mrb[0].mxu0
    %v203 = vpop.f32.mrb[0].mxu0
    %v204 = vadd.f32 %v87, %v203
    %v205 = vpop.f32.mrb[0].mxu0
    %206 = vmatprep.mubr.bf16.mxu0 0
    %207 = vmatmul.mubr.bf16.gmra.mrb[0].mxu0 %v121
    %v208 = vpop.f32.mrb[0].mxu0
    %v209 = vadd.f32 %v87, %v208
    %v210 = vpop.f32.mrb[0].mxu0
    %v211 = vpop.f32.mrb[0].mxu0
    %v212 = vadd.f32 %v87, %v211
    %v213 = vpop.f32.mrb[0].mxu0
    %214 = vmatprep.mubr.bf16.mxu0 0
    %215 = vmatmul.mubr.bf16.gmra.mrb[0].mxu0 %v124
    %v216 = vpop.f32.mrb[0].mxu0
    %v217 = vadd.f32 %v87, %v216
    %v218 = vpop.f32.mrb[0].mxu0
    %v219 = vpop.f32.mrb[0].mxu0
    %v220 = vadd.f32 %v87, %v219
    %v221 = vpop.f32.mrb[0].mxu0
    %222 = vdwg.mxu0
    %vm223 = vcmask 785408
    %224 = vst.msk [vmem:[#allocation2] sm:$0xff] %vm223, %v161
    %225 = vst.msk [vmem:[#allocation2 + $0x8] sm:$0xff] %vm223, %v164
    %226 = vst.msk [vmem:[#allocation2 + $0x10] sm:$0xff] %vm223, %v169
    %227 = vst.msk [vmem:[#allocation2 + $0x18] sm:$0xff] %vm223, %v172
    %228 = vst.msk [vmem:[#allocation2 + $0x20] sm:$0xff] %vm223, %v177
    %229 = vst.msk [vmem:[#allocation2 + $0x28] sm:$0xff] %vm223, %v180
    %230 = vst.msk [vmem:[#allocation2 + $0x30] sm:$0xff] %vm223, %v185
    %231 = vst.msk [vmem:[#allocation2 + $0x38] sm:$0xff] %vm223, %v188
    %232 = vst.msk [vmem:[#allocation2 + $0x40] sm:$0xff] %vm223, %v193
    %233 = vst.msk [vmem:[#allocation2 + $0x48] sm:$0xff] %vm223, %v196
    %234 = vst.msk [vmem:[#allocation2 + $0x50] sm:$0xff] %vm223, %v201
    %235 = vst.msk [vmem:[#allocation2 + $0x58] sm:$0xff] %vm223, %v204
    %236 = vst.msk [vmem:[#allocation2 + $0x60] sm:$0xff] %vm223, %v209
    %237 = vst.msk [vmem:[#allocation2 + $0x68] sm:$0xff] %vm223, %v212
    %238 = vst.msk [vmem:[#allocation2 + $0x70] sm:$0xff] %vm223, %v217
    %239 = vst.msk [vmem:[#allocation2 + $0x78] sm:$0xff] %vm223, %v220
    %s240 = scalar_lea.vmem %s2, 16
    %v241 = vld [vmem:[%s240] sm:$0xf]
    %v242 = vld [vmem:[%s240 + $0x4] sm:$0xf]
    %v243 = vld [vmem:[%s240 + $0x8] sm:$0xf]
    %v244 = vld [vmem:[%s240 + $0xc] sm:$0xf]
    %v246 = vlaneseq
    %v247 = vshrl.u32 %v246, 7
    %v248 = vsub.s32 0, %v247
    %v249 = vrot.slane %v42, %v248
    %v255 = vunpack.c.l.b16 %v241
    %v256 = vunpack.c.l.b16 %v242
    %v257 = vunpack.c.l.b16 %v243
    %v258 = vunpack.c.l.b16 %v244
    %v259 = vpack.c.b16 %v256, %v255
    %v260 = vpack.c.b16 %v258, %v257
    %263 = vmatprep.subr.bf16.mxu0 0
    %264 = vmatpush1.bf16.msra.mxu0 %v259
    %265 = vmatprep.subr.bf16.mxu0 0
    %266 = vmatpush1.bf16.msra.mxu0 %v260
    %267 = vmatprep.subr.bf16.mxu0 0
    %268 = vmatpush1.bf16.msra.mxu0 0
    %269 = vmatprep.subr.bf16.mxu0 0
    %270 = vmatpush1.bf16.msra.mxu0 0
    %271 = vmatprep.subr.bf16.mxu0 0
    %272 = vmatpush1.bf16.msra.mxu0 0
    %273 = vmatprep.subr.bf16.mxu0 0
    %274 = vmatpush1.bf16.msra.mxu0 0
    %275 = vmatprep.subr.bf16.mxu0 0
    %276 = vmatpush1.bf16.msra.mxu0 0
    %277 = vmatprep.subr.bf16.mxu0 0
    %278 = vmatpush1.bf16.msra.mxu0 0
    %279 = vmatprep.subr.bf16.mxu0 0
    %280 = vmatpush1.bf16.msra.mxu0 0
    %281 = vmatprep.subr.bf16.mxu0 0
    %282 = vmatpush1.bf16.msra.mxu0 0
    %283 = vmatprep.subr.bf16.mxu0 0
    %284 = vmatpush1.bf16.msra.mxu0 0
    %285 = vmatprep.subr.bf16.mxu0 0
    %286 = vmatpush1.bf16.msra.mxu0 0
    %287 = vmatprep.subr.bf16.mxu0 0
    %288 = vmatpush1.bf16.msra.mxu0 0
    %289 = vmatprep.subr.bf16.mxu0 0
    %290 = vmatpush1.bf16.msra.mxu0 0
    %291 = vmatprep.subr.bf16.mxu0 0
    %292 = vmatpush1.bf16.msra.mxu0 0
    %293 = vmatprep.subr.bf16.mxu0 0
    %294 = vmatpush1.bf16.msra.mxu0 0
    %295 = vmatprep.mubr.bf16.mxu0 0
    %296 = vmatmul.mubr.bf16.gmra.mrb[0].mxu0 %v103
    %v297 = vpop.f32.mrb[0].mxu0
    %v298 = vadd.f32 %v249, %v297
    %v299 = vpop.f32.mrb[0].mxu0
    %v300 = vpop.f32.mrb[0].mxu0
    %v301 = vadd.f32 %v249, %v300
    %v302 = vpop.f32.mrb[0].mxu0
    %303 = vmatprep.mubr.bf16.mxu0 0
    %304 = vmatmul.mubr.bf16.gmra.mrb[0].mxu0 %v106
    %v305 = vpop.f32.mrb[0].mxu0
    %v306 = vadd.f32 %v249, %v305
    %v307 = vpop.f32.mrb[0].mxu0
    %v308 = vpop.f32.mrb[0].mxu0
    %v309 = vadd.f32 %v249, %v308
    %v310 = vpop.f32.mrb[0].mxu0
    %311 = vmatprep.mubr.bf16.mxu0 0
    %312 = vmatmul.mubr.bf16.gmra.mrb[0].mxu0 %v109
    %v313 = vpop.f32.mrb[0].mxu0
    %v314 = vadd.f32 %v249, %v313
    %v315 = vpop.f32.mrb[0].mxu0
    %v316 = vpop.f32.mrb[0].mxu0
    %v317 = vadd.f32 %v249, %v316
    %v318 = vpop.f32.mrb[0].mxu0
    %319 = vmatprep.mubr.bf16.mxu0 0
    %320 = vmatmul.mubr.bf16.gmra.mrb[0].mxu0 %v112
    %v321 = vpop.f32.mrb[0].mxu0
    %v322 = vadd.f32 %v249, %v321
    %v323 = vpop.f32.mrb[0].mxu0
    %v324 = vpop.f32.mrb[0].mxu0
    %v325 = vadd.f32 %v249, %v324
    %v326 = vpop.f32.mrb[0].mxu0
    %327 = vmatprep.mubr.bf16.mxu0 0
    %328 = vmatmul.mubr.bf16.gmra.mrb[0].mxu0 %v115
    %v329 = vpop.f32.mrb[0].mxu0
    %v330 = vadd.f32 %v249, %v329
    %v331 = vpop.f32.mrb[0].mxu0
    %v332 = vpop.f32.mrb[0].mxu0
    %v333 = vadd.f32 %v249, %v332
    %v334 = vpop.f32.mrb[0].mxu0
    %335 = vmatprep.mubr.bf16.mxu0 0
    %336 = vmatmul.mubr.bf16.gmra.mrb[0].mxu0 %v118
    %v337 = vpop.f32.mrb[0].mxu0
    %v338 = vadd.f32 %v249, %v337
    %v339 = vpop.f32.mrb[0].mxu0
    %v340 = vpop.f32.mrb[0].mxu0
    %v341 = vadd.f32 %v249, %v340
    %v342 = vpop.f32.mrb[0].mxu0
    %343 = vmatprep.mubr.bf16.mxu0 0
    %344 = vmatmul.mubr.bf16.gmra.mrb[0].mxu0 %v121
    %v345 = vpop.f32.mrb[0].mxu0
    %v346 = vadd.f32 %v249, %v345
    %v347 = vpop.f32.mrb[0].mxu0
    %v348 = vpop.f32.mrb[0].mxu0
    %v349 = vadd.f32 %v249, %v348
    %v350 = vpop.f32.mrb[0].mxu0
    %351 = vmatprep.mubr.bf16.mxu0 0
    %352 = vmatmul.mubr.bf16.gmra.mrb[0].mxu0 %v124
    %v353 = vpop.f32.mrb[0].mxu0
    %v354 = vadd.f32 %v249, %v353
    %v355 = vpop.f32.mrb[0].mxu0
    %v356 = vpop.f32.mrb[0].mxu0
    %v357 = vadd.f32 %v249, %v356
    %v358 = vpop.f32.mrb[0].mxu0
    %359 = vdwg.mxu0
    %360 = vst.msk [vmem:[#allocation3] sm:$0xff] %vm223, %v298
    %361 = vst.msk [vmem:[#allocation3 + $0x8] sm:$0xff] %vm223, %v301
    %362 = vst.msk [vmem:[#allocation3 + $0x10] sm:$0xff] %vm223, %v306
    %363 = vst.msk [vmem:[#allocation3 + $0x18] sm:$0xff] %vm223, %v309
    %364 = vst.msk [vmem:[#allocation3 + $0x20] sm:$0xff] %vm223, %v314
    %365 = vst.msk [vmem:[#allocation3 + $0x28] sm:$0xff] %vm223, %v317
    %366 = vst.msk [vmem:[#allocation3 + $0x30] sm:$0xff] %vm223, %v322
    %367 = vst.msk [vmem:[#allocation3 + $0x38] sm:$0xff] %vm223, %v325
    %368 = vst.msk [vmem:[#allocation3 + $0x40] sm:$0xff] %vm223, %v330
    %369 = vst.msk [vmem:[#allocation3 + $0x48] sm:$0xff] %vm223, %v333
    %370 = vst.msk [vmem:[#allocation3 + $0x50] sm:$0xff] %vm223, %v338
    %371 = vst.msk [vmem:[#allocation3 + $0x58] sm:$0xff] %vm223, %v341
    %372 = vst.msk [vmem:[#allocation3 + $0x60] sm:$0xff] %vm223, %v346
    %373 = vst.msk [vmem:[#allocation3 + $0x68] sm:$0xff] %vm223, %v349
    %374 = vst.msk [vmem:[#allocation3 + $0x70] sm:$0xff] %vm223, %v354
    %375 = vst.msk [vmem:[#allocation3 + $0x78] sm:$0xff] %vm223, %v357
    %v376 = vld [vmem:[#allocation2] sm:$0xff]
    %v377 = vld [vmem:[#allocation2 + $0x8] sm:$0xff]
    %s378 = scalar_lea.vmem [#allocation3], 112
    %v379 = vld [vmem:[%s378] sm:$0xff]
    %v380 = vld [vmem:[%s378 + $0x8] sm:$0xff]
    %v385 = vunpack.c.l.b16 %v32
    %v386 = vunpack.c.l.b16 %v33
    %v387 = vunpack.c.l.b16 %v34
    %v388 = vunpack.c.l.b16 %v35
    %v389 = vpack.c.b16 %v386, %v385
    %v390 = vpack.c.b16 %v388, %v387
    %v394 = vsel %vm101, 0, 0
    %396 = vmatprep.subr.bf16.mxu0 0
    %397 = vmatpush1.bf16.msra.mxu0 %v389
    %398 = vmatprep.subr.bf16.mxu0 0
    %399 = vmatpush1.bf16.msra.mxu0 %v390
    %400 = vmatprep.subr.bf16.mxu0 0
    %401 = vmatpush1.bf16.msra.mxu0 0
    %402 = vmatprep.subr.bf16.mxu0 0
    %403 = vmatpush1.bf16.msra.mxu0 0
    %404 = vmatprep.subr.bf16.mxu0 0
    %405 = vmatpush1.bf16.msra.mxu0 0
    %406 = vmatprep.subr.bf16.mxu0 0
    %407 = vmatpush1.bf16.msra.mxu0 0
    %408 = vmatprep.subr.bf16.mxu0 0
    %409 = vmatpush1.bf16.msra.mxu0 0
    %410 = vmatprep.subr.bf16.mxu0 0
    %411 = vmatpush1.bf16.msra.mxu0 0
    %412 = vmatprep.subr.bf16.mxu0 0
    %413 = vmatpush1.bf16.msra.mxu0 0
    %414 = vmatprep.subr.bf16.mxu0 0
    %415 = vmatpush1.bf16.msra.mxu0 0
    %416 = vmatprep.subr.bf16.mxu0 0
    %417 = vmatpush1.bf16.msra.mxu0 0
    %418 = vmatprep.subr.bf16.mxu0 0
    %419 = vmatpush1.bf16.msra.mxu0 0
    %420 = vmatprep.subr.bf16.mxu0 0
    %421 = vmatpush1.bf16.msra.mxu0 0
    %422 = vmatprep.subr.bf16.mxu0 0
    %423 = vmatpush1.bf16.msra.mxu0 0
    %424 = vmatprep.subr.bf16.mxu0 0
    %425 = vmatpush1.bf16.msra.mxu0 0
    %426 = vmatprep.subr.bf16.mxu0 0
    %427 = vmatpush1.bf16.msra.mxu0 0
    %428 = vmatprep.mubr.bf16.mxu0 0
    %429 = vmatmul.mubr.bf16.gmra.mrb[0].mxu0 %v394
    %v430 = vpop.f32.mrb[0].mxu0
    %v431 = vadd.f32 0.0, %v430
    %v432 = vpop.f32.mrb[0].mxu0
    %v433 = vpop.f32.mrb[0].mxu0
    %v434 = vadd.f32 0.0, %v433
    %v435 = vpop.f32.mrb[0].mxu0
    %436 = vdwg.mxu0
    %v441 = vunpack.c.l.b16 %v37
    %v442 = vunpack.c.l.b16 %v38
    %v443 = vunpack.c.l.b16 %v39
    %v444 = vunpack.c.l.b16 %v40
    %v445 = vpack.c.b16 %v442, %v441
    %v446 = vpack.c.b16 %v444, %v443
    %449 = vmatprep.subr.bf16.mxu0 0
    %450 = vmatpush1.bf16.msra.mxu0 %v445
    %451 = vmatprep.subr.bf16.mxu0 0
    %452 = vmatpush1.bf16.msra.mxu0 %v446
    %453 = vmatprep.subr.bf16.mxu0 0
    %454 = vmatpush1.bf16.msra.mxu0 0
    %455 = vmatprep.subr.bf16.mxu0 0
    %456 = vmatpush1.bf16.msra.mxu0 0
    %457 = vmatprep.subr.bf16.mxu0 0
    %458 = vmatpush1.bf16.msra.mxu0 0
    %459 = vmatprep.subr.bf16.mxu0 0
    %460 = vmatpush1.bf16.msra.mxu0 0
    %461 = vmatprep.subr.bf16.mxu0 0
    %462 = vmatpush1.bf16.msra.mxu0 0
    %463 = vmatprep.subr.bf16.mxu0 0
    %464 = vmatpush1.bf16.msra.mxu0 0
    %465 = vmatprep.subr.bf16.mxu0 0
    %466 = vmatpush1.bf16.msra.mxu0 0
    %467 = vmatprep.subr.bf16.mxu0 0
    %468 = vmatpush1.bf16.msra.mxu0 0
    %469 = vmatprep.subr.bf16.mxu0 0
    %470 = vmatpush1.bf16.msra.mxu0 0
    %471 = vmatprep.subr.bf16.mxu0 0
    %472 = vmatpush1.bf16.msra.mxu0 0
    %473 = vmatprep.subr.bf16.mxu0 0
    %474 = vmatpush1.bf16.msra.mxu0 0
    %475 = vmatprep.subr.bf16.mxu0 0
    %476 = vmatpush1.bf16.msra.mxu0 0
    %477 = vmatprep.subr.bf16.mxu0 0
    %478 = vmatpush1.bf16.msra.mxu0 0
    %479 = vmatprep.subr.bf16.mxu0 0
    %480 = vmatpush1.bf16.msra.mxu0 0
    %481 = vmatprep.mubr.bf16.mxu0 0
    %482 = vmatmul.mubr.bf16.gmra.mrb[0].mxu0 %v394
    %v483 = vpop.f32.mrb[0].mxu0
    %v484 = vadd.f32 0.0, %v483
    %v485 = vpop.f32.mrb[0].mxu0
    %v486 = vpop.f32.mrb[0].mxu0
    %v487 = vadd.f32 0.0, %v486
    %v488 = vpop.f32.mrb[0].mxu0
    %489 = vdwg.mxu0
    %v490 = vadd.f32 %v376, %v431
    %v491 = vadd.f32 %v377, %v434
    %v492 = vxor.u32 %v490, 2147483648
    %v493 = vxor.u32 %v491, 2147483648
    %v494 = vmul.f32 %v492, 1.442695
    %v495 = vpow.pop %v494
    %v496 = vmul.f32 %v493, 1.442695
    %v497 = vpow.pop %v496
    %v498 = vadd.f32 %v495, 1.0
    %v499 = vadd.f32 %v497, 1.0
    %v500 = vrcp.pop %v498
    %v501 = vmul.f32 1.0, %v500
    %v502 = vrcp.pop %v499
    %v503 = vmul.f32 1.0, %v502
    %504 = vrot.lane.b32.xlu0 %v49, 64
    %v505 = vpop.permute.xlu0 %504
    %v507 = vadd.f32 %v431, %v505
    %v508 = vadd.f32 %v434, %v505
    %511 = vrot.lane.b32.xlu0 %v507, 64
    %v512 = vpop.permute.xlu0 %511
    %513 = vrot.lane.b32.xlu0 %v508, 64
    %v514 = vpop.permute.xlu0 %513
    %v517 = vmul.f32 %v501, %v512
    %v518 = vmul.f32 %v503, %v514
    %521 = vrot.lane.b32.xlu0 %v517, 64
    %v522 = vpop.permute.xlu0 %521
    %523 = vrot.lane.b32.xlu0 %v518, 64
    %v524 = vpop.permute.xlu0 %523
    %v527 = vadd.f32 %v376, %v522
    %v528 = vadd.f32 %v377, %v524
    %v529 = vtanh.pop %v527
    %v530 = vtanh.pop %v528
    %v531 = vsub.f32 0.0, %v529
    %v532 = vsub.f32 0.0, %v530
    %535 = vrot.lane.b32.xlu0 %v531, 96
    %v536 = vpop.permute.xlu0 %535
    %537 = vrot.lane.b32.xlu0 %v532, 96
    %v538 = vpop.permute.xlu0 %537
    %v541 = vmul.f32 %v501, %v536
    %v542 = vmul.f32 %v503, %v538
    %545 = vrot.lane.b32.xlu0 %v541, 32
    %v546 = vpop.permute.xlu0 %545
    %547 = vrot.lane.b32.xlu0 %v542, 32
    %v548 = vpop.permute.xlu0 %547
    %v551 = vadd.f32 %v529, %v546
    %v552 = vadd.f32 %v530, %v548
    %v553 = vadd.f32 %v379, %v484
    %v554 = vadd.f32 %v380, %v487
    %v555 = vxor.u32 %v553, 2147483648
    %v556 = vxor.u32 %v554, 2147483648
    %v557 = vmul.f32 %v555, 1.442695
    %v558 = vpow.pop %v557
    %v559 = vmul.f32 %v556, 1.442695
    %v560 = vpow.pop %v559
    %v561 = vadd.f32 %v558, 1.0
    %v562 = vadd.f32 %v560, 1.0
    %v563 = vrcp.pop %v561
    %v564 = vmul.f32 1.0, %v563
    %v565 = vrcp.pop %v562
    %v566 = vmul.f32 1.0, %v565
    %567 = vrot.lane.b32.xlu0 %v54, 64
    %v568 = vpop.permute.xlu0 %567
    %v570 = vadd.f32 %v484, %v568
    %v571 = vadd.f32 %v487, %v568
    %574 = vrot.lane.b32.xlu0 %v570, 64
    %v575 = vpop.permute.xlu0 %574
    %576 = vrot.lane.b32.xlu0 %v571, 64
    %v577 = vpop.permute.xlu0 %576
    %v580 = vmul.f32 %v564, %v575
    %v581 = vmul.f32 %v566, %v577
    %584 = vrot.lane.b32.xlu0 %v580, 64
    %v585 = vpop.permute.xlu0 %584
    %586 = vrot.lane.b32.xlu0 %v581, 64
    %v587 = vpop.permute.xlu0 %586
    %v590 = vadd.f32 %v379, %v585
    %v591 = vadd.f32 %v380, %v587
    %v592 = vtanh.pop %v590
    %v593 = vtanh.pop %v591
    %v594 = vsub.f32 0.0, %v592
    %v595 = vsub.f32 0.0, %v593
    %598 = vrot.lane.b32.xlu0 %v594, 96
    %v599 = vpop.permute.xlu0 %598
    %600 = vrot.lane.b32.xlu0 %v595, 96
    %v601 = vpop.permute.xlu0 %600
    %v604 = vmul.f32 %v564, %v599
    %v605 = vmul.f32 %v566, %v601
    %608 = vrot.lane.b32.xlu0 %v604, 32
    %v609 = vpop.permute.xlu0 %608
    %610 = vrot.lane.b32.xlu0 %v605, 32
    %v611 = vpop.permute.xlu0 %610
    %v614 = vadd.f32 %v592, %v609
    %v615 = vadd.f32 %v593, %v611
    %vm616 = vcmp.gt.s32.totalorder %v30, 0
    %vm617 = vcmp.gt.s32.totalorder %v31, 0
    %vm618 = vcmp.gt.s32.totalorder %v30, 7
    %vm619 = vcmp.gt.s32.totalorder %v31, 7
    %v620 = vsel %vm616, 1, 0
    %v621 = vsel %vm617, 1, 0
    %622 = vset.pattern.permute.xlu0 0
    %623 = vperm.xlu0 %622, %v620
    %v624 = vpop.permute.xlu0 %623
    %625 = vset.pattern.permute.xlu0 0
    %626 = vperm.xlu0 %625, %v621
    %v627 = vpop.permute.xlu0 %626
    %vm628 = vcmp.eq.s32.totalorder %v624, 1
    %vm629 = vcmp.eq.s32.totalorder %v627, 1
    %v630 = vsel %vm628, %v551, 0.0
    %v631 = vsel %vm629, %v552, 0.0
    %v632 = vpack.c.bf16 %v631, %v630
    %v634 = vunpack.c.l.b16 %v632
    %v635 = vunpack.c.h.b16 %v632
    %v636 = vpack.c.b16 %v634, %v634
    %v637 = vpack.c.b16 %v635, %v635
    %638 = vrot.lane.b32.xlu0 %v636, 64
    %v639 = vpop.permute.xlu0 %638
    %640 = vrot.lane.b32.xlu0 %v637, 64
    %v641 = vpop.permute.xlu0 %640
    %vm644 = vcmask 257024
    %645 = vst.msk [vmem:[%s6] sm:$0xf] %vm644, %v639
    %646 = vst.msk [vmem:[%s6 + $0x4] sm:$0xf] %vm644, %v641
    %v647 = vsel %vm618, 1, 0
    %v648 = vsel %vm619, 1, 0
    %649 = vset.pattern.permute.xlu0 0
    %650 = vperm.xlu0 %649, %v647
    %v651 = vpop.permute.xlu0 %650
    %652 = vset.pattern.permute.xlu0 0
    %653 = vperm.xlu0 %652, %v648
    %v654 = vpop.permute.xlu0 %653
    %vm655 = vcmp.eq.s32.totalorder %v651, 1
    %vm656 = vcmp.eq.s32.totalorder %v654, 1
    %v657 = vsel %vm655, %v614, 0.0
    %v658 = vsel %vm656, %v615, 0.0
    %v659 = vpack.c.bf16 %v658, %v657
    %v661 = vunpack.c.l.b16 %v659
    %v662 = vunpack.c.h.b16 %v659
    %v663 = vpack.c.b16 %v661, %v661
    %v664 = vpack.c.b16 %v662, %v662
    %665 = vrot.lane.b32.xlu0 %v663, 64
    %v666 = vpop.permute.xlu0 %665
    %667 = vrot.lane.b32.xlu0 %v664, 64
    %v668 = vpop.permute.xlu0 %667
    %s671 = scalar_lea.vmem %s7, 56
    %672 = vst.msk [vmem:[%s671] sm:$0xf] %vm644, %v666
    %673 = vst.msk [vmem:[%s671 + $0x4] sm:$0xf] %vm644, %v668
    %s674 = scalar_lea.vmem [#allocation2], 16
    %v675 = vld [vmem:[%s674] sm:$0xff]
    %v676 = vld [vmem:[%s674 + $0x8] sm:$0xff]
    %s677 = scalar_lea.vmem [#allocation3], 96
    %v678 = vld [vmem:[%s677] sm:$0xff]
    %v679 = vld [vmem:[%s677 + $0x8] sm:$0xff]
    %680 = vrot.lane.b32.xlu0 %v632, 64
    %v681 = vpop.permute.xlu0 %680
    %v683 = vsel %vm101, %v681, 0
    %685 = vmatprep.subr.bf16.mxu0 0
    %686 = vmatpush1.bf16.msra.mxu0 %v389
    %687 = vmatprep.subr.bf16.mxu0 0
    %688 = vmatpush1.bf16.msra.mxu0 %v390
    %689 = vmatprep.subr.bf16.mxu0 0
    %690 = vmatpush1.bf16.msra.mxu0 0
    %691 = vmatprep.subr.bf16.mxu0 0
    %692 = vmatpush1.bf16.msra.mxu0 0
    %693 = vmatprep.subr.bf16.mxu0 0
    %694 = vmatpush1.bf16.msra.mxu0 0
    %695 = vmatprep.subr.bf16.mxu0 0
    %696 = vmatpush1.bf16.msra.mxu0 0
    %697 = vmatprep.subr.bf16.mxu0 0
    %698 = vmatpush1.bf16.msra.mxu0 0
    %699 = vmatprep.subr.bf16.mxu0 0
    %700 = vmatpush1.bf16.msra.mxu0 0
    %701 = vmatprep.subr.bf16.mxu0 0
    %702 = vmatpush1.bf16.msra.mxu0 0
    %703 = vmatprep.subr.bf16.mxu0 0
    %704 = vmatpush1.bf16.msra.mxu0 0
    %705 = vmatprep.subr.bf16.mxu0 0
    %706 = vmatpush1.bf16.msra.mxu0 0
    %707 = vmatprep.subr.bf16.mxu0 0
    %708 = vmatpush1.bf16.msra.mxu0 0
    %709 = vmatprep.subr.bf16.mxu0 0
    %710 = vmatpush1.bf16.msra.mxu0 0
    %711 = vmatprep.subr.bf16.mxu0 0
    %712 = vmatpush1.bf16.msra.mxu0 0
    %713 = vmatprep.subr.bf16.mxu0 0
    %714 = vmatpush1.bf16.msra.mxu0 0
    %715 = vmatprep.subr.bf16.mxu0 0
    %716 = vmatpush1.bf16.msra.mxu0 0
    %717 = vmatprep.mubr.bf16.mxu0 0
    %718 = vmatmul.mubr.bf16.gmra.mrb[0].mxu0 %v683
    %v719 = vpop.f32.mrb[0].mxu0
    %v720 = vadd.f32 0.0, %v719
    %v721 = vpop.f32.mrb[0].mxu0
    %v722 = vpop.f32.mrb[0].mxu0
    %v723 = vadd.f32 0.0, %v722
    %v724 = vpop.f32.mrb[0].mxu0
    %725 = vdwg.mxu0
    %726 = vrot.lane.b32.xlu0 %v659, 64
    %v727 = vpop.permute.xlu0 %726
    %v729 = vsel %vm101, %v727, 0
    %731 = vmatprep.subr.bf16.mxu0 0
    %732 = vmatpush1.bf16.msra.mxu0 %v445
    %733 = vmatprep.subr.bf16.mxu0 0
    %734 = vmatpush1.bf16.msra.mxu0 %v446
    %735 = vmatprep.subr.bf16.mxu0 0
    %736 = vmatpush1.bf16.msra.mxu0 0
    %737 = vmatprep.subr.bf16.mxu0 0
    %738 = vmatpush1.bf16.msra.mxu0 0
    %739 = vmatprep.subr.bf16.mxu0 0
    %740 = vmatpush1.bf16.msra.mxu0 0
    %741 = vmatprep.subr.bf16.mxu0 0
    %742 = vmatpush1.bf16.msra.mxu0 0
    %743 = vmatprep.subr.bf16.mxu0 0
    %744 = vmatpush1.bf16.msra.mxu0 0
    %745 = vmatprep.subr.bf16.mxu0 0
    %746 = vmatpush1.bf16.msra.mxu0 0
    %747 = vmatprep.subr.bf16.mxu0 0
    %748 = vmatpush1.bf16.msra.mxu0 0
    %749 = vmatprep.subr.bf16.mxu0 0
    %750 = vmatpush1.bf16.msra.mxu0 0
    %751 = vmatprep.subr.bf16.mxu0 0
    %752 = vmatpush1.bf16.msra.mxu0 0
    %753 = vmatprep.subr.bf16.mxu0 0
    %754 = vmatpush1.bf16.msra.mxu0 0
    %755 = vmatprep.subr.bf16.mxu0 0
    %756 = vmatpush1.bf16.msra.mxu0 0
    %757 = vmatprep.subr.bf16.mxu0 0
    %758 = vmatpush1.bf16.msra.mxu0 0
    %759 = vmatprep.subr.bf16.mxu0 0
    %760 = vmatpush1.bf16.msra.mxu0 0
    %761 = vmatprep.subr.bf16.mxu0 0
    %762 = vmatpush1.bf16.msra.mxu0 0
    %763 = vmatprep.mubr.bf16.mxu0 0
    %764 = vmatmul.mubr.bf16.gmra.mrb[0].mxu0 %v729
    %v765 = vpop.f32.mrb[0].mxu0
    %v766 = vadd.f32 0.0, %v765
    %v767 = vpop.f32.mrb[0].mxu0
    %v768 = vpop.f32.mrb[0].mxu0
    %v769 = vadd.f32 0.0, %v768
    %v770 = vpop.f32.mrb[0].mxu0
    %771 = vdwg.mxu0
    %v772 = vadd.f32 %v675, %v720
    %v773 = vadd.f32 %v676, %v723
    %v774 = vxor.u32 %v772, 2147483648
    %v775 = vxor.u32 %v773, 2147483648
    %v776 = vmul.f32 %v774, 1.442695
    %v777 = vpow.pop %v776
    %v778 = vmul.f32 %v775, 1.442695
    %v779 = vpow.pop %v778
    %v780 = vadd.f32 %v777, 1.0
    %v781 = vadd.f32 %v779, 1.0
    %v782 = vrcp.pop %v780
    %v783 = vmul.f32 1.0, %v782
    %v784 = vrcp.pop %v781
    %v785 = vmul.f32 1.0, %v784
    %v786 = vadd.f32 %v720, %v505
    %v787 = vadd.f32 %v723, %v505
    %790 = vrot.lane.b32.xlu0 %v786, 64
    %v791 = vpop.permute.xlu0 %790
    %792 = vrot.lane.b32.xlu0 %v787, 64
    %v793 = vpop.permute.xlu0 %792
    %v796 = vmul.f32 %v783, %v791
    %v797 = vmul.f32 %v785, %v793
    %800 = vrot.lane.b32.xlu0 %v796, 64
    %v801 = vpop.permute.xlu0 %800
    %802 = vrot.lane.b32.xlu0 %v797, 64
    %v803 = vpop.permute.xlu0 %802
    %v806 = vadd.f32 %v675, %v801
    %v807 = vadd.f32 %v676, %v803
    %v808 = vtanh.pop %v806
    %v809 = vtanh.pop %v807
    %v810 = vsub.f32 %v630, %v808
    %v811 = vsub.f32 %v631, %v809
    %814 = vrot.lane.b32.xlu0 %v810, 96
    %v815 = vpop.permute.xlu0 %814
    %816 = vrot.lane.b32.xlu0 %v811, 96
    %v817 = vpop.permute.xlu0 %816
    %v820 = vmul.f32 %v783, %v815
    %v821 = vmul.f32 %v785, %v817
    %824 = vrot.lane.b32.xlu0 %v820, 32
    %v825 = vpop.permute.xlu0 %824
    %826 = vrot.lane.b32.xlu0 %v821, 32
    %v827 = vpop.permute.xlu0 %826
    %v830 = vadd.f32 %v808, %v825
    %v831 = vadd.f32 %v809, %v827
    %v832 = vadd.f32 %v678, %v766
    %v833 = vadd.f32 %v679, %v769
    %v834 = vxor.u32 %v832, 2147483648
    %v835 = vxor.u32 %v833, 2147483648
    %v836 = vmul.f32 %v834, 1.442695
    %v837 = vpow.pop %v836
    %v838 = vmul.f32 %v835, 1.442695
    %v839 = vpow.pop %v838
    %v840 = vadd.f32 %v837, 1.0
    %v841 = vadd.f32 %v839, 1.0
    %v842 = vrcp.pop %v840
    %v843 = vmul.f32 1.0, %v842
    %v844 = vrcp.pop %v841
    %v845 = vmul.f32 1.0, %v844
    %v846 = vadd.f32 %v766, %v568
    %v847 = vadd.f32 %v769, %v568
    %850 = vrot.lane.b32.xlu0 %v846, 64
    %v851 = vpop.permute.xlu0 %850
    %852 = vrot.lane.b32.xlu0 %v847, 64
    %v853 = vpop.permute.xlu0 %852
    %v856 = vmul.f32 %v843, %v851
    %v857 = vmul.f32 %v845, %v853
    %860 = vrot.lane.b32.xlu0 %v856, 64
    %v861 = vpop.permute.xlu0 %860
    %862 = vrot.lane.b32.xlu0 %v857, 64
    %v863 = vpop.permute.xlu0 %862
    %v866 = vadd.f32 %v678, %v861
    %v867 = vadd.f32 %v679, %v863
    %v868 = vtanh.pop %v866
    %v869 = vtanh.pop %v867
    %v870 = vsub.f32 %v657, %v868
    %v871 = vsub.f32 %v658, %v869
    %874 = vrot.lane.b32.xlu0 %v870, 96
    %v875 = vpop.permute.xlu0 %874
    %876 = vrot.lane.b32.xlu0 %v871, 96
    %v877 = vpop.permute.xlu0 %876
    %v880 = vmul.f32 %v843, %v875
    %v881 = vmul.f32 %v845, %v877
    %884 = vrot.lane.b32.xlu0 %v880, 32
    %v885 = vpop.permute.xlu0 %884
    %886 = vrot.lane.b32.xlu0 %v881, 32
    %v887 = vpop.permute.xlu0 %886
    %v890 = vadd.f32 %v868, %v885
    %v891 = vadd.f32 %v869, %v887
    %vm892 = vcmp.gt.s32.totalorder %v30, 1
    %vm893 = vcmp.gt.s32.totalorder %v31, 1
    %vm894 = vcmp.gt.s32.totalorder %v30, 6
    %vm895 = vcmp.gt.s32.totalorder %v31, 6
    %v896 = vsel %vm892, 1, 0
    %v897 = vsel %vm893, 1, 0
    %898 = vset.pattern.permute.xlu0 0
    %899 = vperm.xlu0 %898, %v896
    %v900 = vpop.permute.xlu0 %899
    %901 = vset.pattern.permute.xlu0 0
    %902 = vperm.xlu0 %901, %v897
    %v903 = vpop.permute.xlu0 %902
    %vm904 = vcmp.eq.s32.totalorder %v900, 1
    %vm905 = vcmp.eq.s32.totalorder %v903, 1
    %v906 = vsel %vm904, %v830, 0.0
    %v907 = vsel %vm905, %v831, 0.0
    %v908 = vpack.c.bf16 %v907, %v906
    %v910 = vunpack.c.l.b16 %v908
    %v911 = vunpack.c.h.b16 %v908
    %v912 = vpack.c.b16 %v910, %v910
    %v913 = vpack.c.b16 %v911, %v911
    %914 = vrot.lane.b32.xlu0 %v912, 64
    %v915 = vpop.permute.xlu0 %914
    %916 = vrot.lane.b32.xlu0 %v913, 64
    %v917 = vpop.permute.xlu0 %916
    %s920 = scalar_lea.vmem %s6, 8
    %921 = vst.msk [vmem:[%s920] sm:$0xf] %vm644, %v915
    %922 = vst.msk [vmem:[%s920 + $0x4] sm:$0xf] %vm644, %v917
    %v923 = vsel %vm894, 1, 0
    %v924 = vsel %vm895, 1, 0
    %925 = vset.pattern.permute.xlu0 0
    %926 = vperm.xlu0 %925, %v923
    %v927 = vpop.permute.xlu0 %926
    %928 = vset.pattern.permute.xlu0 0
    %929 = vperm.xlu0 %928, %v924
    %v930 = vpop.permute.xlu0 %929
    %vm931 = vcmp.eq.s32.totalorder %v927, 1
    %vm932 = vcmp.eq.s32.totalorder %v930, 1
    %v933 = vsel %vm931, %v890, 0.0
    %v934 = vsel %vm932, %v891, 0.0
    %v935 = vpack.c.bf16 %v934, %v933
    %v937 = vunpack.c.l.b16 %v935
    %v938 = vunpack.c.h.b16 %v935
    %v939 = vpack.c.b16 %v937, %v937
    %v940 = vpack.c.b16 %v938, %v938
    %941 = vrot.lane.b32.xlu0 %v939, 64
    %v942 = vpop.permute.xlu0 %941
    %943 = vrot.lane.b32.xlu0 %v940, 64
    %v944 = vpop.permute.xlu0 %943
    %s947 = scalar_lea.vmem %s7, 48
    %948 = vst.msk [vmem:[%s947] sm:$0xf] %vm644, %v942
    %949 = vst.msk [vmem:[%s947 + $0x4] sm:$0xf] %vm644, %v944
    %v950 = vsel %vm904, %v830, %v630
    %v951 = vsel %vm905, %v831, %v631
    %v952 = vsel %vm931, %v890, %v657
    %v953 = vsel %vm932, %v891, %v658
    %s954 = scalar_lea.vmem [#allocation2], 32
    %v955 = vld [vmem:[%s954] sm:$0xff]
    %v956 = vld [vmem:[%s954 + $0x8] sm:$0xff]
    %s957 = scalar_lea.vmem [#allocation3], 80
    %v958 = vld [vmem:[%s957] sm:$0xff]
    %v959 = vld [vmem:[%s957 + $0x8] sm:$0xff]
    %v960 = vpack.c.bf16 %v951, %v950
    %962 = vrot.lane.b32.xlu0 %v960, 64
    %v963 = vpop.permute.xlu0 %962
    %v965 = vsel %vm101, %v963, 0
    %967 = vmatprep.subr.bf16.mxu0 0
    %968 = vmatpush1.bf16.msra.mxu0 %v389
    %969 = vmatprep.subr.bf16.mxu0 0
    %970 = vmatpush1.bf16.msra.mxu0 %v390
    %971 = vmatprep.subr.bf16.mxu0 0
    %972 = vmatpush1.bf16.msra.mxu0 0
    %973 = vmatprep.subr.bf16.mxu0 0
    %974 = vmatpush1.bf16.msra.mxu0 0
    %975 = vmatprep.subr.bf16.mxu0 0
    %976 = vmatpush1.bf16.msra.mxu0 0
    %977 = vmatprep.subr.bf16.mxu0 0
    %978 = vmatpush1.bf16.msra.mxu0 0
    %979 = vmatprep.subr.bf16.mxu0 0
    %980 = vmatpush1.bf16.msra.mxu0 0
    %981 = vmatprep.subr.bf16.mxu0 0
    %982 = vmatpush1.bf16.msra.mxu0 0
    %983 = vmatprep.subr.bf16.mxu0 0
    %984 = vmatpush1.bf16.msra.mxu0 0
    %985 = vmatprep.subr.bf16.mxu0 0
    %986 = vmatpush1.bf16.msra.mxu0 0
    %987 = vmatprep.subr.bf16.mxu0 0
    %988 = vmatpush1.bf16.msra.mxu0 0
    %989 = vmatprep.subr.bf16.mxu0 0
    %990 = vmatpush1.bf16.msra.mxu0 0
    %991 = vmatprep.subr.bf16.mxu0 0
    %992 = vmatpush1.bf16.msra.mxu0 0
    %993 = vmatprep.subr.bf16.mxu0 0
    %994 = vmatpush1.bf16.msra.mxu0 0
    %995 = vmatprep.subr.bf16.mxu0 0
    %996 = vmatpush1.bf16.msra.mxu0 0
    %997 = vmatprep.subr.bf16.mxu0 0
    %998 = vmatpush1.bf16.msra.mxu0 0
    %999 = vmatprep.mubr.bf16.mxu0 0
    %1000 = vmatmul.mubr.bf16.gmra.mrb[0].mxu0 %v965
    %v1001 = vpop.f32.mrb[0].mxu0
    %v1002 = vadd.f32 0.0, %v1001
    %v1003 = vpop.f32.mrb[0].mxu0
    %v1004 = vpop.f32.mrb[0].mxu0
    %v1005 = vadd.f32 0.0, %v1004
    %v1006 = vpop.f32.mrb[0].mxu0
    %1007 = vdwg.mxu0
    %v1008 = vpack.c.bf16 %v953, %v952
    %1010 = vrot.lane.b32.xlu0 %v1008, 64
    %v1011 = vpop.permute.xlu0 %1010
    %v1013 = vsel %vm101, %v1011, 0
    %1015 = vmatprep.subr.bf16.mxu0 0
    %1016 = vmatpush1.bf16.msra.mxu0 %v445
    %1017 = vmatprep.subr.bf16.mxu0 0
    %1018 = vmatpush1.bf16.msra.mxu0 %v446
    %1019 = vmatprep.subr.bf16.mxu0 0
    %1020 = vmatpush1.bf16.msra.mxu0 0
    %1021 = vmatprep.subr.bf16.mxu0 0
    %1022 = vmatpush1.bf16.msra.mxu0 0
    %1023 = vmatprep.subr.bf16.mxu0 0
    %1024 = vmatpush1.bf16.msra.mxu0 0
    %1025 = vmatprep.subr.bf16.mxu0 0
    %1026 = vmatpush1.bf16.msra.mxu0 0
    %1027 = vmatprep.subr.bf16.mxu0 0
    %1028 = vmatpush1.bf16.msra.mxu0 0
    %1029 = vmatprep.subr.bf16.mxu0 0
    %1030 = vmatpush1.bf16.msra.mxu0 0
    %1031 = vmatprep.subr.bf16.mxu0 0
    %1032 = vmatpush1.bf16.msra.mxu0 0
    %1033 = vmatprep.subr.bf16.mxu0 0
    %1034 = vmatpush1.bf16.msra.mxu0 0
    %1035 = vmatprep.subr.bf16.mxu0 0
    %1036 = vmatpush1.bf16.msra.mxu0 0
    %1037 = vmatprep.subr.bf16.mxu0 0
    %1038 = vmatpush1.bf16.msra.mxu0 0
    %1039 = vmatprep.subr.bf16.mxu0 0
    %1040 = vmatpush1.bf16.msra.mxu0 0
    %1041 = vmatprep.subr.bf16.mxu0 0
    %1042 = vmatpush1.bf16.msra.mxu0 0
    %1043 = vmatprep.subr.bf16.mxu0 0
    %1044 = vmatpush1.bf16.msra.mxu0 0
    %1045 = vmatprep.subr.bf16.mxu0 0
    %1046 = vmatpush1.bf16.msra.mxu0 0
    %1047 = vmatprep.mubr.bf16.mxu0 0
    %1048 = vmatmul.mubr.bf16.gmra.mrb[0].mxu0 %v1013
    %v1049 = vpop.f32.mrb[0].mxu0
    %v1050 = vadd.f32 0.0, %v1049
    %v1051 = vpop.f32.mrb[0].mxu0
    %v1052 = vpop.f32.mrb[0].mxu0
    %v1053 = vadd.f32 0.0, %v1052
    %v1054 = vpop.f32.mrb[0].mxu0
    %1055 = vdwg.mxu0
    %v1056 = vadd.f32 %v955, %v1002
    %v1057 = vadd.f32 %v956, %v1005
    %v1058 = vxor.u32 %v1056, 2147483648
    %v1059 = vxor.u32 %v1057, 2147483648
    %v1060 = vmul.f32 %v1058, 1.442695
    %v1061 = vpow.pop %v1060
    %v1062 = vmul.f32 %v1059, 1.442695
    %v1063 = vpow.pop %v1062
    %v1064 = vadd.f32 %v1061, 1.0
    %v1065 = vadd.f32 %v1063, 1.0
    %v1066 = vrcp.pop %v1064
    %v1067 = vmul.f32 1.0, %v1066
    %v1068 = vrcp.pop %v1065
    %v1069 = vmul.f32 1.0, %v1068
    %v1070 = vadd.f32 %v1002, %v505
    %v1071 = vadd.f32 %v1005, %v505
    %1074 = vrot.lane.b32.xlu0 %v1070, 64
    %v1075 = vpop.permute.xlu0 %1074
    %1076 = vrot.lane.b32.xlu0 %v1071, 64
    %v1077 = vpop.permute.xlu0 %1076
    %v1080 = vmul.f32 %v1067, %v1075
    %v1081 = vmul.f32 %v1069, %v1077
    %1084 = vrot.lane.b32.xlu0 %v1080, 64
    %v1085 = vpop.permute.xlu0 %1084
    %1086 = vrot.lane.b32.xlu0 %v1081, 64
    %v1087 = vpop.permute.xlu0 %1086
    %v1090 = vadd.f32 %v955, %v1085
    %v1091 = vadd.f32 %v956, %v1087
    %v1092 = vtanh.pop %v1090
    %v1093 = vtanh.pop %v1091
    %v1094 = vsub.f32 %v950, %v1092
    %v1095 = vsub.f32 %v951, %v1093
    %1098 = vrot.lane.b32.xlu0 %v1094, 96
    %v1099 = vpop.permute.xlu0 %1098
    %1100 = vrot.lane.b32.xlu0 %v1095, 96
    %v1101 = vpop.permute.xlu0 %1100
    %v1104 = vmul.f32 %v1067, %v1099
    %v1105 = vmul.f32 %v1069, %v1101
    %1108 = vrot.lane.b32.xlu0 %v1104, 32
    %v1109 = vpop.permute.xlu0 %1108
    %1110 = vrot.lane.b32.xlu0 %v1105, 32
    %v1111 = vpop.permute.xlu0 %1110
    %v1114 = vadd.f32 %v1092, %v1109
    %v1115 = vadd.f32 %v1093, %v1111
    %v1116 = vadd.f32 %v958, %v1050
    %v1117 = vadd.f32 %v959, %v1053
    %v1118 = vxor.u32 %v1116, 2147483648
    %v1119 = vxor.u32 %v1117, 2147483648
    %v1120 = vmul.f32 %v1118, 1.442695
    %v1121 = vpow.pop %v1120
    %v1122 = vmul.f32 %v1119, 1.442695
    %v1123 = vpow.pop %v1122
    %v1124 = vadd.f32 %v1121, 1.0
    %v1125 = vadd.f32 %v1123, 1.0
    %v1126 = vrcp.pop %v1124
    %v1127 = vmul.f32 1.0, %v1126
    %v1128 = vrcp.pop %v1125
    %v1129 = vmul.f32 1.0, %v1128
    %v1130 = vadd.f32 %v1050, %v568
    %v1131 = vadd.f32 %v1053, %v568
    %1134 = vrot.lane.b32.xlu0 %v1130, 64
    %v1135 = vpop.permute.xlu0 %1134
    %1136 = vrot.lane.b32.xlu0 %v1131, 64
    %v1137 = vpop.permute.xlu0 %1136
    %v1140 = vmul.f32 %v1127, %v1135
    %v1141 = vmul.f32 %v1129, %v1137
    %1144 = vrot.lane.b32.xlu0 %v1140, 64
    %v1145 = vpop.permute.xlu0 %1144
    %1146 = vrot.lane.b32.xlu0 %v1141, 64
    %v1147 = vpop.permute.xlu0 %1146
    %v1150 = vadd.f32 %v958, %v1145
    %v1151 = vadd.f32 %v959, %v1147
    %v1152 = vtanh.pop %v1150
    %v1153 = vtanh.pop %v1151
    %v1154 = vsub.f32 %v952, %v1152
    %v1155 = vsub.f32 %v953, %v1153
    %1158 = vrot.lane.b32.xlu0 %v1154, 96
    %v1159 = vpop.permute.xlu0 %1158
    %1160 = vrot.lane.b32.xlu0 %v1155, 96
    %v1161 = vpop.permute.xlu0 %1160
    %v1164 = vmul.f32 %v1127, %v1159
    %v1165 = vmul.f32 %v1129, %v1161
    %1168 = vrot.lane.b32.xlu0 %v1164, 32
    %v1169 = vpop.permute.xlu0 %1168
    %1170 = vrot.lane.b32.xlu0 %v1165, 32
    %v1171 = vpop.permute.xlu0 %1170
    %v1174 = vadd.f32 %v1152, %v1169
    %v1175 = vadd.f32 %v1153, %v1171
    %vm1176 = vcmp.gt.s32.totalorder %v30, 2
    %vm1177 = vcmp.gt.s32.totalorder %v31, 2
    %vm1178 = vcmp.gt.s32.totalorder %v30, 5
    %vm1179 = vcmp.gt.s32.totalorder %v31, 5
    %v1180 = vsel %vm1176, 1, 0
    %v1181 = vsel %vm1177, 1, 0
    %1182 = vset.pattern.permute.xlu0 0
    %1183 = vperm.xlu0 %1182, %v1180
    %v1184 = vpop.permute.xlu0 %1183
    %1185 = vset.pattern.permute.xlu0 0
    %1186 = vperm.xlu0 %1185, %v1181
    %v1187 = vpop.permute.xlu0 %1186
    %vm1188 = vcmp.eq.s32.totalorder %v1184, 1
    %vm1189 = vcmp.eq.s32.totalorder %v1187, 1
    %v1190 = vsel %vm1188, %v1114, 0.0
    %v1191 = vsel %vm1189, %v1115, 0.0
    %v1192 = vpack.c.bf16 %v1191, %v1190
    %v1194 = vunpack.c.l.b16 %v1192
    %v1195 = vunpack.c.h.b16 %v1192
    %v1196 = vpack.c.b16 %v1194, %v1194
    %v1197 = vpack.c.b16 %v1195, %v1195
    %1198 = vrot.lane.b32.xlu0 %v1196, 64
    %v1199 = vpop.permute.xlu0 %1198
    %1200 = vrot.lane.b32.xlu0 %v1197, 64
    %v1201 = vpop.permute.xlu0 %1200
    %s1204 = scalar_lea.vmem %s6, 16
    %1205 = vst.msk [vmem:[%s1204] sm:$0xf] %vm644, %v1199
    %1206 = vst.msk [vmem:[%s1204 + $0x4] sm:$0xf] %vm644, %v1201
    %v1207 = vsel %vm1178, 1, 0
    %v1208 = vsel %vm1179, 1, 0
    %1209 = vset.pattern.permute.xlu0 0
    %1210 = vperm.xlu0 %1209, %v1207
    %v1211 = vpop.permute.xlu0 %1210
    %1212 = vset.pattern.permute.xlu0 0
    %1213 = vperm.xlu0 %1212, %v1208
    %v1214 = vpop.permute.xlu0 %1213
    %vm1215 = vcmp.eq.s32.totalorder %v1211, 1
    %vm1216 = vcmp.eq.s32.totalorder %v1214, 1
    %v1217 = vsel %vm1215, %v1174, 0.0
    %v1218 = vsel %vm1216, %v1175, 0.0
    %v1219 = vpack.c.bf16 %v1218, %v1217
    %v1221 = vunpack.c.l.b16 %v1219
    %v1222 = vunpack.c.h.b16 %v1219
    %v1223 = vpack.c.b16 %v1221, %v1221
    %v1224 = vpack.c.b16 %v1222, %v1222
    %1225 = vrot.lane.b32.xlu0 %v1223, 64
    %v1226 = vpop.permute.xlu0 %1225
    %1227 = vrot.lane.b32.xlu0 %v1224, 64
    %v1228 = vpop.permute.xlu0 %1227
    %s1231 = scalar_lea.vmem %s7, 40
    %1232 = vst.msk [vmem:[%s1231] sm:$0xf] %vm644, %v1226
    %1233 = vst.msk [vmem:[%s1231 + $0x4] sm:$0xf] %vm644, %v1228
    %v1234 = vsel %vm1188, %v1114, %v950
    %v1235 = vsel %vm1189, %v1115, %v951
    %v1236 = vsel %vm1215, %v1174, %v952
    %v1237 = vsel %vm1216, %v1175, %v953
    %s1238 = scalar_lea.vmem [#allocation2], 48
    %v1239 = vld [vmem:[%s1238] sm:$0xff]
    %v1240 = vld [vmem:[%s1238 + $0x8] sm:$0xff]
    %s1241 = scalar_lea.vmem [#allocation3], 64
    %v1242 = vld [vmem:[%s1241] sm:$0xff]
    %v1243 = vld [vmem:[%s1241 + $0x8] sm:$0xff]
    %v1244 = vpack.c.bf16 %v1235, %v1234
    %1246 = vrot.lane.b32.xlu0 %v1244, 64
    %v1247 = vpop.permute.xlu0 %1246
    %v1249 = vsel %vm101, %v1247, 0
    %1251 = vmatprep.subr.bf16.mxu0 0
    %1252 = vmatpush1.bf16.msra.mxu0 %v389
    %1253 = vmatprep.subr.bf16.mxu0 0
    %1254 = vmatpush1.bf16.msra.mxu0 %v390
    %1255 = vmatprep.subr.bf16.mxu0 0
    %1256 = vmatpush1.bf16.msra.mxu0 0
    %1257 = vmatprep.subr.bf16.mxu0 0
    %1258 = vmatpush1.bf16.msra.mxu0 0
    %1259 = vmatprep.subr.bf16.mxu0 0
    %1260 = vmatpush1.bf16.msra.mxu0 0
    %1261 = vmatprep.subr.bf16.mxu0 0
    %1262 = vmatpush1.bf16.msra.mxu0 0
    %1263 = vmatprep.subr.bf16.mxu0 0
    %1264 = vmatpush1.bf16.msra.mxu0 0
    %1265 = vmatprep.subr.bf16.mxu0 0
    %1266 = vmatpush1.bf16.msra.mxu0 0
    %1267 = vmatprep.subr.bf16.mxu0 0
    %1268 = vmatpush1.bf16.msra.mxu0 0
    %1269 = vmatprep.subr.bf16.mxu0 0
    %1270 = vmatpush1.bf16.msra.mxu0 0
    %1271 = vmatprep.subr.bf16.mxu0 0
    %1272 = vmatpush1.bf16.msra.mxu0 0
    %1273 = vmatprep.subr.bf16.mxu0 0
    %1274 = vmatpush1.bf16.msra.mxu0 0
    %1275 = vmatprep.subr.bf16.mxu0 0
    %1276 = vmatpush1.bf16.msra.mxu0 0
    %1277 = vmatprep.subr.bf16.mxu0 0
    %1278 = vmatpush1.bf16.msra.mxu0 0
    %1279 = vmatprep.subr.bf16.mxu0 0
    %1280 = vmatpush1.bf16.msra.mxu0 0
    %1281 = vmatprep.subr.bf16.mxu0 0
    %1282 = vmatpush1.bf16.msra.mxu0 0
    %1283 = vmatprep.mubr.bf16.mxu0 0
    %1284 = vmatmul.mubr.bf16.gmra.mrb[0].mxu0 %v1249
    %v1285 = vpop.f32.mrb[0].mxu0
    %v1286 = vadd.f32 0.0, %v1285
    %v1287 = vpop.f32.mrb[0].mxu0
    %v1288 = vpop.f32.mrb[0].mxu0
    %v1289 = vadd.f32 0.0, %v1288
    %v1290 = vpop.f32.mrb[0].mxu0
    %1291 = vdwg.mxu0
    %v1292 = vpack.c.bf16 %v1237, %v1236
    %1294 = vrot.lane.b32.xlu0 %v1292, 64
    %v1295 = vpop.permute.xlu0 %1294
    %v1297 = vsel %vm101, %v1295, 0
    %1299 = vmatprep.subr.bf16.mxu0 0
    %1300 = vmatpush1.bf16.msra.mxu0 %v445
    %1301 = vmatprep.subr.bf16.mxu0 0
    %1302 = vmatpush1.bf16.msra.mxu0 %v446
    %1303 = vmatprep.subr.bf16.mxu0 0
    %1304 = vmatpush1.bf16.msra.mxu0 0
    %1305 = vmatprep.subr.bf16.mxu0 0
    %1306 = vmatpush1.bf16.msra.mxu0 0
    %1307 = vmatprep.subr.bf16.mxu0 0
    %1308 = vmatpush1.bf16.msra.mxu0 0
    %1309 = vmatprep.subr.bf16.mxu0 0
    %1310 = vmatpush1.bf16.msra.mxu0 0
    %1311 = vmatprep.subr.bf16.mxu0 0
    %1312 = vmatpush1.bf16.msra.mxu0 0
    %1313 = vmatprep.subr.bf16.mxu0 0
    %1314 = vmatpush1.bf16.msra.mxu0 0
    %1315 = vmatprep.subr.bf16.mxu0 0
    %1316 = vmatpush1.bf16.msra.mxu0 0
    %1317 = vmatprep.subr.bf16.mxu0 0
    %1318 = vmatpush1.bf16.msra.mxu0 0
    %1319 = vmatprep.subr.bf16.mxu0 0
    %1320 = vmatpush1.bf16.msra.mxu0 0
    %1321 = vmatprep.subr.bf16.mxu0 0
    %1322 = vmatpush1.bf16.msra.mxu0 0
    %1323 = vmatprep.subr.bf16.mxu0 0
    %1324 = vmatpush1.bf16.msra.mxu0 0
    %1325 = vmatprep.subr.bf16.mxu0 0
    %1326 = vmatpush1.bf16.msra.mxu0 0
    %1327 = vmatprep.subr.bf16.mxu0 0
    %1328 = vmatpush1.bf16.msra.mxu0 0
    %1329 = vmatprep.subr.bf16.mxu0 0
    %1330 = vmatpush1.bf16.msra.mxu0 0
    %1331 = vmatprep.mubr.bf16.mxu0 0
    %1332 = vmatmul.mubr.bf16.gmra.mrb[0].mxu0 %v1297
    %v1333 = vpop.f32.mrb[0].mxu0
    %v1334 = vadd.f32 0.0, %v1333
    %v1335 = vpop.f32.mrb[0].mxu0
    %v1336 = vpop.f32.mrb[0].mxu0
    %v1337 = vadd.f32 0.0, %v1336
    %v1338 = vpop.f32.mrb[0].mxu0
    %1339 = vdwg.mxu0
    %v1340 = vadd.f32 %v1239, %v1286
    %v1341 = vadd.f32 %v1240, %v1289
    %v1342 = vxor.u32 %v1340, 2147483648
    %v1343 = vxor.u32 %v1341, 2147483648
    %v1344 = vmul.f32 %v1342, 1.442695
    %v1345 = vpow.pop %v1344
    %v1346 = vmul.f32 %v1343, 1.442695
    %v1347 = vpow.pop %v1346
    %v1348 = vadd.f32 %v1345, 1.0
    %v1349 = vadd.f32 %v1347, 1.0
    %v1350 = vrcp.pop %v1348
    %v1351 = vmul.f32 1.0, %v1350
    %v1352 = vrcp.pop %v1349
    %v1353 = vmul.f32 1.0, %v1352
    %v1354 = vadd.f32 %v1286, %v505
    %v1355 = vadd.f32 %v1289, %v505
    %1358 = vrot.lane.b32.xlu0 %v1354, 64
    %v1359 = vpop.permute.xlu0 %1358
    %1360 = vrot.lane.b32.xlu0 %v1355, 64
    %v1361 = vpop.permute.xlu0 %1360
    %v1364 = vmul.f32 %v1351, %v1359
    %v1365 = vmul.f32 %v1353, %v1361
    %1368 = vrot.lane.b32.xlu0 %v1364, 64
    %v1369 = vpop.permute.xlu0 %1368
    %1370 = vrot.lane.b32.xlu0 %v1365, 64
    %v1371 = vpop.permute.xlu0 %1370
    %v1374 = vadd.f32 %v1239, %v1369
    %v1375 = vadd.f32 %v1240, %v1371
    %v1376 = vtanh.pop %v1374
    %v1377 = vtanh.pop %v1375
    %v1378 = vsub.f32 %v1234, %v1376
    %v1379 = vsub.f32 %v1235, %v1377
    %1382 = vrot.lane.b32.xlu0 %v1378, 96
    %v1383 = vpop.permute.xlu0 %1382
    %1384 = vrot.lane.b32.xlu0 %v1379, 96
    %v1385 = vpop.permute.xlu0 %1384
    %v1388 = vmul.f32 %v1351, %v1383
    %v1389 = vmul.f32 %v1353, %v1385
    %1392 = vrot.lane.b32.xlu0 %v1388, 32
    %v1393 = vpop.permute.xlu0 %1392
    %1394 = vrot.lane.b32.xlu0 %v1389, 32
    %v1395 = vpop.permute.xlu0 %1394
    %v1398 = vadd.f32 %v1376, %v1393
    %v1399 = vadd.f32 %v1377, %v1395
    %v1400 = vadd.f32 %v1242, %v1334
    %v1401 = vadd.f32 %v1243, %v1337
    %v1402 = vxor.u32 %v1400, 2147483648
    %v1403 = vxor.u32 %v1401, 2147483648
    %v1404 = vmul.f32 %v1402, 1.442695
    %v1405 = vpow.pop %v1404
    %v1406 = vmul.f32 %v1403, 1.442695
    %v1407 = vpow.pop %v1406
    %v1408 = vadd.f32 %v1405, 1.0
    %v1409 = vadd.f32 %v1407, 1.0
    %v1410 = vrcp.pop %v1408
    %v1411 = vmul.f32 1.0, %v1410
    %v1412 = vrcp.pop %v1409
    %v1413 = vmul.f32 1.0, %v1412
    %v1414 = vadd.f32 %v1334, %v568
    %v1415 = vadd.f32 %v1337, %v568
    %1418 = vrot.lane.b32.xlu0 %v1414, 64
    %v1419 = vpop.permute.xlu0 %1418
    %1420 = vrot.lane.b32.xlu0 %v1415, 64
    %v1421 = vpop.permute.xlu0 %1420
    %v1424 = vmul.f32 %v1411, %v1419
    %v1425 = vmul.f32 %v1413, %v1421
    %1428 = vrot.lane.b32.xlu0 %v1424, 64
    %v1429 = vpop.permute.xlu0 %1428
    %1430 = vrot.lane.b32.xlu0 %v1425, 64
    %v1431 = vpop.permute.xlu0 %1430
    %v1434 = vadd.f32 %v1242, %v1429
    %v1435 = vadd.f32 %v1243, %v1431
    %v1436 = vtanh.pop %v1434
    %v1437 = vtanh.pop %v1435
    %v1438 = vsub.f32 %v1236, %v1436
    %v1439 = vsub.f32 %v1237, %v1437
    %1442 = vrot.lane.b32.xlu0 %v1438, 96
    %v1443 = vpop.permute.xlu0 %1442
    %1444 = vrot.lane.b32.xlu0 %v1439, 96
    %v1445 = vpop.permute.xlu0 %1444
    %v1448 = vmul.f32 %v1411, %v1443
    %v1449 = vmul.f32 %v1413, %v1445
    %1452 = vrot.lane.b32.xlu0 %v1448, 32
    %v1453 = vpop.permute.xlu0 %1452
    %1454 = vrot.lane.b32.xlu0 %v1449, 32
    %v1455 = vpop.permute.xlu0 %1454
    %v1458 = vadd.f32 %v1436, %v1453
    %v1459 = vadd.f32 %v1437, %v1455
    %vm1460 = vcmp.gt.s32.totalorder %v30, 3
    %vm1461 = vcmp.gt.s32.totalorder %v31, 3
    %vm1462 = vcmp.gt.s32.totalorder %v30, 4
    %vm1463 = vcmp.gt.s32.totalorder %v31, 4
    %v1464 = vsel %vm1460, 1, 0
    %v1465 = vsel %vm1461, 1, 0
    %1466 = vset.pattern.permute.xlu0 0
    %1467 = vperm.xlu0 %1466, %v1464
    %v1468 = vpop.permute.xlu0 %1467
    %1469 = vset.pattern.permute.xlu0 0
    %1470 = vperm.xlu0 %1469, %v1465
    %v1471 = vpop.permute.xlu0 %1470
    %vm1472 = vcmp.eq.s32.totalorder %v1468, 1
    %vm1473 = vcmp.eq.s32.totalorder %v1471, 1
    %v1474 = vsel %vm1472, %v1398, 0.0
    %v1475 = vsel %vm1473, %v1399, 0.0
    %v1476 = vpack.c.bf16 %v1475, %v1474
    %v1478 = vunpack.c.l.b16 %v1476
    %v1479 = vunpack.c.h.b16 %v1476
    %v1480 = vpack.c.b16 %v1478, %v1478
    %v1481 = vpack.c.b16 %v1479, %v1479
    %1482 = vrot.lane.b32.xlu0 %v1480, 64
    %v1483 = vpop.permute.xlu0 %1482
    %1484 = vrot.lane.b32.xlu0 %v1481, 64
    %v1485 = vpop.permute.xlu0 %1484
    %s1488 = scalar_lea.vmem %s6, 24
    %1489 = vst.msk [vmem:[%s1488] sm:$0xf] %vm644, %v1483
    %1490 = vst.msk [vmem:[%s1488 + $0x4] sm:$0xf] %vm644, %v1485
    %v1491 = vsel %vm1462, 1, 0
    %v1492 = vsel %vm1463, 1, 0
    %1493 = vset.pattern.permute.xlu0 0
    %1494 = vperm.xlu0 %1493, %v1491
    %v1495 = vpop.permute.xlu0 %1494
    %1496 = vset.pattern.permute.xlu0 0
    %1497 = vperm.xlu0 %1496, %v1492
    %v1498 = vpop.permute.xlu0 %1497
    %vm1499 = vcmp.eq.s32.totalorder %v1495, 1
    %vm1500 = vcmp.eq.s32.totalorder %v1498, 1
    %v1501 = vsel %vm1499, %v1458, 0.0
    %v1502 = vsel %vm1500, %v1459, 0.0
    %v1503 = vpack.c.bf16 %v1502, %v1501
    %v1505 = vunpack.c.l.b16 %v1503
    %v1506 = vunpack.c.h.b16 %v1503
    %v1507 = vpack.c.b16 %v1505, %v1505
    %v1508 = vpack.c.b16 %v1506, %v1506
    %1509 = vrot.lane.b32.xlu0 %v1507, 64
    %v1510 = vpop.permute.xlu0 %1509
    %1511 = vrot.lane.b32.xlu0 %v1508, 64
    %v1512 = vpop.permute.xlu0 %1511
    %s1515 = scalar_lea.vmem %s7, 32
    %1516 = vst.msk [vmem:[%s1515] sm:$0xf] %vm644, %v1510
    %1517 = vst.msk [vmem:[%s1515 + $0x4] sm:$0xf] %vm644, %v1512
    %v1518 = vsel %vm1472, %v1398, %v1234
    %v1519 = vsel %vm1473, %v1399, %v1235
    %v1520 = vsel %vm1499, %v1458, %v1236
    %v1521 = vsel %vm1500, %v1459, %v1237
    %s1522 = scalar_lea.vmem [#allocation2], 64
    %v1523 = vld [vmem:[%s1522] sm:$0xff]
    %v1524 = vld [vmem:[%s1522 + $0x8] sm:$0xff]
    %s1525 = scalar_lea.vmem [#allocation3], 48
    %v1526 = vld [vmem:[%s1525] sm:$0xff]
    %v1527 = vld [vmem:[%s1525 + $0x8] sm:$0xff]
    %v1528 = vpack.c.bf16 %v1519, %v1518
    %1530 = vrot.lane.b32.xlu0 %v1528, 64
    %v1531 = vpop.permute.xlu0 %1530
    %v1533 = vsel %vm101, %v1531, 0
    %1535 = vmatprep.subr.bf16.mxu0 0
    %1536 = vmatpush1.bf16.msra.mxu0 %v389
    %1537 = vmatprep.subr.bf16.mxu0 0
    %1538 = vmatpush1.bf16.msra.mxu0 %v390
    %1539 = vmatprep.subr.bf16.mxu0 0
    %1540 = vmatpush1.bf16.msra.mxu0 0
    %1541 = vmatprep.subr.bf16.mxu0 0
    %1542 = vmatpush1.bf16.msra.mxu0 0
    %1543 = vmatprep.subr.bf16.mxu0 0
    %1544 = vmatpush1.bf16.msra.mxu0 0
    %1545 = vmatprep.subr.bf16.mxu0 0
    %1546 = vmatpush1.bf16.msra.mxu0 0
    %1547 = vmatprep.subr.bf16.mxu0 0
    %1548 = vmatpush1.bf16.msra.mxu0 0
    %1549 = vmatprep.subr.bf16.mxu0 0
    %1550 = vmatpush1.bf16.msra.mxu0 0
    %1551 = vmatprep.subr.bf16.mxu0 0
    %1552 = vmatpush1.bf16.msra.mxu0 0
    %1553 = vmatprep.subr.bf16.mxu0 0
    %1554 = vmatpush1.bf16.msra.mxu0 0
    %1555 = vmatprep.subr.bf16.mxu0 0
    %1556 = vmatpush1.bf16.msra.mxu0 0
    %1557 = vmatprep.subr.bf16.mxu0 0
    %1558 = vmatpush1.bf16.msra.mxu0 0
    %1559 = vmatprep.subr.bf16.mxu0 0
    %1560 = vmatpush1.bf16.msra.mxu0 0
    %1561 = vmatprep.subr.bf16.mxu0 0
    %1562 = vmatpush1.bf16.msra.mxu0 0
    %1563 = vmatprep.subr.bf16.mxu0 0
    %1564 = vmatpush1.bf16.msra.mxu0 0
    %1565 = vmatprep.subr.bf16.mxu0 0
    %1566 = vmatpush1.bf16.msra.mxu0 0
    %1567 = vmatprep.mubr.bf16.mxu0 0
    %1568 = vmatmul.mubr.bf16.gmra.mrb[0].mxu0 %v1533
    %v1569 = vpop.f32.mrb[0].mxu0
    %v1570 = vadd.f32 0.0, %v1569
    %v1571 = vpop.f32.mrb[0].mxu0
    %v1572 = vpop.f32.mrb[0].mxu0
    %v1573 = vadd.f32 0.0, %v1572
    %v1574 = vpop.f32.mrb[0].mxu0
    %1575 = vdwg.mxu0
    %v1576 = vpack.c.bf16 %v1521, %v1520
    %1578 = vrot.lane.b32.xlu0 %v1576, 64
    %v1579 = vpop.permute.xlu0 %1578
    %v1581 = vsel %vm101, %v1579, 0
    %1583 = vmatprep.subr.bf16.mxu0 0
    %1584 = vmatpush1.bf16.msra.mxu0 %v445
    %1585 = vmatprep.subr.bf16.mxu0 0
    %1586 = vmatpush1.bf16.msra.mxu0 %v446
    %1587 = vmatprep.subr.bf16.mxu0 0
    %1588 = vmatpush1.bf16.msra.mxu0 0
    %1589 = vmatprep.subr.bf16.mxu0 0
    %1590 = vmatpush1.bf16.msra.mxu0 0
    %1591 = vmatprep.subr.bf16.mxu0 0
    %1592 = vmatpush1.bf16.msra.mxu0 0
    %1593 = vmatprep.subr.bf16.mxu0 0
    %1594 = vmatpush1.bf16.msra.mxu0 0
    %1595 = vmatprep.subr.bf16.mxu0 0
    %1596 = vmatpush1.bf16.msra.mxu0 0
    %1597 = vmatprep.subr.bf16.mxu0 0
    %1598 = vmatpush1.bf16.msra.mxu0 0
    %1599 = vmatprep.subr.bf16.mxu0 0
    %1600 = vmatpush1.bf16.msra.mxu0 0
    %1601 = vmatprep.subr.bf16.mxu0 0
    %1602 = vmatpush1.bf16.msra.mxu0 0
    %1603 = vmatprep.subr.bf16.mxu0 0
    %1604 = vmatpush1.bf16.msra.mxu0 0
    %1605 = vmatprep.subr.bf16.mxu0 0
    %1606 = vmatpush1.bf16.msra.mxu0 0
    %1607 = vmatprep.subr.bf16.mxu0 0
    %1608 = vmatpush1.bf16.msra.mxu0 0
    %1609 = vmatprep.subr.bf16.mxu0 0
    %1610 = vmatpush1.bf16.msra.mxu0 0
    %1611 = vmatprep.subr.bf16.mxu0 0
    %1612 = vmatpush1.bf16.msra.mxu0 0
    %1613 = vmatprep.subr.bf16.mxu0 0
    %1614 = vmatpush1.bf16.msra.mxu0 0
    %1615 = vmatprep.mubr.bf16.mxu0 0
    %1616 = vmatmul.mubr.bf16.gmra.mrb[0].mxu0 %v1581
    %v1617 = vpop.f32.mrb[0].mxu0
    %v1618 = vadd.f32 0.0, %v1617
    %v1619 = vpop.f32.mrb[0].mxu0
    %v1620 = vpop.f32.mrb[0].mxu0
    %v1621 = vadd.f32 0.0, %v1620
    %v1622 = vpop.f32.mrb[0].mxu0
    %1623 = vdwg.mxu0
    %v1624 = vadd.f32 %v1523, %v1570
    %v1625 = vadd.f32 %v1524, %v1573
    %v1626 = vxor.u32 %v1624, 2147483648
    %v1627 = vxor.u32 %v1625, 2147483648
    %v1628 = vmul.f32 %v1626, 1.442695
    %v1629 = vpow.pop %v1628
    %v1630 = vmul.f32 %v1627, 1.442695
    %v1631 = vpow.pop %v1630
    %v1632 = vadd.f32 %v1629, 1.0
    %v1633 = vadd.f32 %v1631, 1.0
    %v1634 = vrcp.pop %v1632
    %v1635 = vmul.f32 1.0, %v1634
    %v1636 = vrcp.pop %v1633
    %v1637 = vmul.f32 1.0, %v1636
    %v1638 = vadd.f32 %v1570, %v505
    %v1639 = vadd.f32 %v1573, %v505
    %1642 = vrot.lane.b32.xlu0 %v1638, 64
    %v1643 = vpop.permute.xlu0 %1642
    %1644 = vrot.lane.b32.xlu0 %v1639, 64
    %v1645 = vpop.permute.xlu0 %1644
    %v1648 = vmul.f32 %v1635, %v1643
    %v1649 = vmul.f32 %v1637, %v1645
    %1652 = vrot.lane.b32.xlu0 %v1648, 64
    %v1653 = vpop.permute.xlu0 %1652
    %1654 = vrot.lane.b32.xlu0 %v1649, 64
    %v1655 = vpop.permute.xlu0 %1654
    %v1658 = vadd.f32 %v1523, %v1653
    %v1659 = vadd.f32 %v1524, %v1655
    %v1660 = vtanh.pop %v1658
    %v1661 = vtanh.pop %v1659
    %v1662 = vsub.f32 %v1518, %v1660
    %v1663 = vsub.f32 %v1519, %v1661
    %1666 = vrot.lane.b32.xlu0 %v1662, 96
    %v1667 = vpop.permute.xlu0 %1666
    %1668 = vrot.lane.b32.xlu0 %v1663, 96
    %v1669 = vpop.permute.xlu0 %1668
    %v1672 = vmul.f32 %v1635, %v1667
    %v1673 = vmul.f32 %v1637, %v1669
    %1676 = vrot.lane.b32.xlu0 %v1672, 32
    %v1677 = vpop.permute.xlu0 %1676
    %1678 = vrot.lane.b32.xlu0 %v1673, 32
    %v1679 = vpop.permute.xlu0 %1678
    %v1682 = vadd.f32 %v1660, %v1677
    %v1683 = vadd.f32 %v1661, %v1679
    %v1684 = vadd.f32 %v1526, %v1618
    %v1685 = vadd.f32 %v1527, %v1621
    %v1686 = vxor.u32 %v1684, 2147483648
    %v1687 = vxor.u32 %v1685, 2147483648
    %v1688 = vmul.f32 %v1686, 1.442695
    %v1689 = vpow.pop %v1688
    %v1690 = vmul.f32 %v1687, 1.442695
    %v1691 = vpow.pop %v1690
    %v1692 = vadd.f32 %v1689, 1.0
    %v1693 = vadd.f32 %v1691, 1.0
    %v1694 = vrcp.pop %v1692
    %v1695 = vmul.f32 1.0, %v1694
    %v1696 = vrcp.pop %v1693
    %v1697 = vmul.f32 1.0, %v1696
    %v1698 = vadd.f32 %v1618, %v568
    %v1699 = vadd.f32 %v1621, %v568
    %1702 = vrot.lane.b32.xlu0 %v1698, 64
    %v1703 = vpop.permute.xlu0 %1702
    %1704 = vrot.lane.b32.xlu0 %v1699, 64
    %v1705 = vpop.permute.xlu0 %1704
    %v1708 = vmul.f32 %v1695, %v1703
    %v1709 = vmul.f32 %v1697, %v1705
    %1712 = vrot.lane.b32.xlu0 %v1708, 64
    %v1713 = vpop.permute.xlu0 %1712
    %1714 = vrot.lane.b32.xlu0 %v1709, 64
    %v1715 = vpop.permute.xlu0 %1714
    %v1718 = vadd.f32 %v1526, %v1713
    %v1719 = vadd.f32 %v1527, %v1715
    %v1720 = vtanh.pop %v1718
    %v1721 = vtanh.pop %v1719
    %v1722 = vsub.f32 %v1520, %v1720
    %v1723 = vsub.f32 %v1521, %v1721
    %1726 = vrot.lane.b32.xlu0 %v1722, 96
    %v1727 = vpop.permute.xlu0 %1726
    %1728 = vrot.lane.b32.xlu0 %v1723, 96
    %v1729 = vpop.permute.xlu0 %1728
    %v1732 = vmul.f32 %v1695, %v1727
    %v1733 = vmul.f32 %v1697, %v1729
    %1736 = vrot.lane.b32.xlu0 %v1732, 32
    %v1737 = vpop.permute.xlu0 %1736
    %1738 = vrot.lane.b32.xlu0 %v1733, 32
    %v1739 = vpop.permute.xlu0 %1738
    %v1742 = vadd.f32 %v1720, %v1737
    %v1743 = vadd.f32 %v1721, %v1739
    %v1744 = vsel %vm1499, %v1682, 0.0
    %v1745 = vsel %vm1500, %v1683, 0.0
    %v1746 = vpack.c.bf16 %v1745, %v1744
    %v1748 = vunpack.c.l.b16 %v1746
    %v1749 = vunpack.c.h.b16 %v1746
    %v1750 = vpack.c.b16 %v1748, %v1748
    %v1751 = vpack.c.b16 %v1749, %v1749
    %1752 = vrot.lane.b32.xlu0 %v1750, 64
    %v1753 = vpop.permute.xlu0 %1752
    %1754 = vrot.lane.b32.xlu0 %v1751, 64
    %v1755 = vpop.permute.xlu0 %1754
    %s1758 = scalar_lea.vmem %s6, 32
    %1759 = vst.msk [vmem:[%s1758] sm:$0xf] %vm644, %v1753
    %1760 = vst.msk [vmem:[%s1758 + $0x4] sm:$0xf] %vm644, %v1755
    %v1761 = vsel %vm1472, %v1742, 0.0
    %v1762 = vsel %vm1473, %v1743, 0.0
    %v1763 = vpack.c.bf16 %v1762, %v1761
    %v1765 = vunpack.c.l.b16 %v1763
    %v1766 = vunpack.c.h.b16 %v1763
    %v1767 = vpack.c.b16 %v1765, %v1765
    %v1768 = vpack.c.b16 %v1766, %v1766
    %1769 = vrot.lane.b32.xlu0 %v1767, 64
    %v1770 = vpop.permute.xlu0 %1769
    %1771 = vrot.lane.b32.xlu0 %v1768, 64
    %v1772 = vpop.permute.xlu0 %1771
    %s1775 = scalar_lea.vmem %s7, 24
    %1776 = vst.msk [vmem:[%s1775] sm:$0xf] %vm644, %v1770
    %1777 = vst.msk [vmem:[%s1775 + $0x4] sm:$0xf] %vm644, %v1772
    %v1778 = vsel %vm1499, %v1682, %v1518
    %v1779 = vsel %vm1500, %v1683, %v1519
    %v1780 = vsel %vm1472, %v1742, %v1520
    %v1781 = vsel %vm1473, %v1743, %v1521
    %s1782 = scalar_lea.vmem [#allocation2], 80
    %v1783 = vld [vmem:[%s1782] sm:$0xff]
    %v1784 = vld [vmem:[%s1782 + $0x8] sm:$0xff]
    %s1785 = scalar_lea.vmem [#allocation3], 32
    %v1786 = vld [vmem:[%s1785] sm:$0xff]
    %v1787 = vld [vmem:[%s1785 + $0x8] sm:$0xff]
    %v1788 = vpack.c.bf16 %v1779, %v1778
    %1790 = vrot.lane.b32.xlu0 %v1788, 64
    %v1791 = vpop.permute.xlu0 %1790
    %v1793 = vsel %vm101, %v1791, 0
    %1795 = vmatprep.subr.bf16.mxu0 0
    %1796 = vmatpush1.bf16.msra.mxu0 %v389
    %1797 = vmatprep.subr.bf16.mxu0 0
    %1798 = vmatpush1.bf16.msra.mxu0 %v390
    %1799 = vmatprep.subr.bf16.mxu0 0
    %1800 = vmatpush1.bf16.msra.mxu0 0
    %1801 = vmatprep.subr.bf16.mxu0 0
    %1802 = vmatpush1.bf16.msra.mxu0 0
    %1803 = vmatprep.subr.bf16.mxu0 0
    %1804 = vmatpush1.bf16.msra.mxu0 0
    %1805 = vmatprep.subr.bf16.mxu0 0
    %1806 = vmatpush1.bf16.msra.mxu0 0
    %1807 = vmatprep.subr.bf16.mxu0 0
    %1808 = vmatpush1.bf16.msra.mxu0 0
    %1809 = vmatprep.subr.bf16.mxu0 0
    %1810 = vmatpush1.bf16.msra.mxu0 0
    %1811 = vmatprep.subr.bf16.mxu0 0
    %1812 = vmatpush1.bf16.msra.mxu0 0
    %1813 = vmatprep.subr.bf16.mxu0 0
    %1814 = vmatpush1.bf16.msra.mxu0 0
    %1815 = vmatprep.subr.bf16.mxu0 0
    %1816 = vmatpush1.bf16.msra.mxu0 0
    %1817 = vmatprep.subr.bf16.mxu0 0
    %1818 = vmatpush1.bf16.msra.mxu0 0
    %1819 = vmatprep.subr.bf16.mxu0 0
    %1820 = vmatpush1.bf16.msra.mxu0 0
    %1821 = vmatprep.subr.bf16.mxu0 0
    %1822 = vmatpush1.bf16.msra.mxu0 0
    %1823 = vmatprep.subr.bf16.mxu0 0
    %1824 = vmatpush1.bf16.msra.mxu0 0
    %1825 = vmatprep.subr.bf16.mxu0 0
    %1826 = vmatpush1.bf16.msra.mxu0 0
    %1827 = vmatprep.mubr.bf16.mxu0 0
    %1828 = vmatmul.mubr.bf16.gmra.mrb[0].mxu0 %v1793
    %v1829 = vpop.f32.mrb[0].mxu0
    %v1830 = vadd.f32 0.0, %v1829
    %v1831 = vpop.f32.mrb[0].mxu0
    %v1832 = vpop.f32.mrb[0].mxu0
    %v1833 = vadd.f32 0.0, %v1832
    %v1834 = vpop.f32.mrb[0].mxu0
    %1835 = vdwg.mxu0
    %v1836 = vpack.c.bf16 %v1781, %v1780
    %1838 = vrot.lane.b32.xlu0 %v1836, 64
    %v1839 = vpop.permute.xlu0 %1838
    %v1841 = vsel %vm101, %v1839, 0
    %1843 = vmatprep.subr.bf16.mxu0 0
    %1844 = vmatpush1.bf16.msra.mxu0 %v445
    %1845 = vmatprep.subr.bf16.mxu0 0
    %1846 = vmatpush1.bf16.msra.mxu0 %v446
    %1847 = vmatprep.subr.bf16.mxu0 0
    %1848 = vmatpush1.bf16.msra.mxu0 0
    %1849 = vmatprep.subr.bf16.mxu0 0
    %1850 = vmatpush1.bf16.msra.mxu0 0
    %1851 = vmatprep.subr.bf16.mxu0 0
    %1852 = vmatpush1.bf16.msra.mxu0 0
    %1853 = vmatprep.subr.bf16.mxu0 0
    %1854 = vmatpush1.bf16.msra.mxu0 0
    %1855 = vmatprep.subr.bf16.mxu0 0
    %1856 = vmatpush1.bf16.msra.mxu0 0
    %1857 = vmatprep.subr.bf16.mxu0 0
    %1858 = vmatpush1.bf16.msra.mxu0 0
    %1859 = vmatprep.subr.bf16.mxu0 0
    %1860 = vmatpush1.bf16.msra.mxu0 0
    %1861 = vmatprep.subr.bf16.mxu0 0
    %1862 = vmatpush1.bf16.msra.mxu0 0
    %1863 = vmatprep.subr.bf16.mxu0 0
    %1864 = vmatpush1.bf16.msra.mxu0 0
    %1865 = vmatprep.subr.bf16.mxu0 0
    %1866 = vmatpush1.bf16.msra.mxu0 0
    %1867 = vmatprep.subr.bf16.mxu0 0
    %1868 = vmatpush1.bf16.msra.mxu0 0
    %1869 = vmatprep.subr.bf16.mxu0 0
    %1870 = vmatpush1.bf16.msra.mxu0 0
    %1871 = vmatprep.subr.bf16.mxu0 0
    %1872 = vmatpush1.bf16.msra.mxu0 0
    %1873 = vmatprep.subr.bf16.mxu0 0
    %1874 = vmatpush1.bf16.msra.mxu0 0
    %1875 = vmatprep.mubr.bf16.mxu0 0
    %1876 = vmatmul.mubr.bf16.gmra.mrb[0].mxu0 %v1841
    %v1877 = vpop.f32.mrb[0].mxu0
    %v1878 = vadd.f32 0.0, %v1877
    %v1879 = vpop.f32.mrb[0].mxu0
    %v1880 = vpop.f32.mrb[0].mxu0
    %v1881 = vadd.f32 0.0, %v1880
    %v1882 = vpop.f32.mrb[0].mxu0
    %1883 = vdwg.mxu0
    %v1884 = vadd.f32 %v1783, %v1830
    %v1885 = vadd.f32 %v1784, %v1833
    %v1886 = vxor.u32 %v1884, 2147483648
    %v1887 = vxor.u32 %v1885, 2147483648
    %v1888 = vmul.f32 %v1886, 1.442695
    %v1889 = vpow.pop %v1888
    %v1890 = vmul.f32 %v1887, 1.442695
    %v1891 = vpow.pop %v1890
    %v1892 = vadd.f32 %v1889, 1.0
    %v1893 = vadd.f32 %v1891, 1.0
    %v1894 = vrcp.pop %v1892
    %v1895 = vmul.f32 1.0, %v1894
    %v1896 = vrcp.pop %v1893
    %v1897 = vmul.f32 1.0, %v1896
    %v1898 = vadd.f32 %v1830, %v505
    %v1899 = vadd.f32 %v1833, %v505
    %1902 = vrot.lane.b32.xlu0 %v1898, 64
    %v1903 = vpop.permute.xlu0 %1902
    %1904 = vrot.lane.b32.xlu0 %v1899, 64
    %v1905 = vpop.permute.xlu0 %1904
    %v1908 = vmul.f32 %v1895, %v1903
    %v1909 = vmul.f32 %v1897, %v1905
    %1912 = vrot.lane.b32.xlu0 %v1908, 64
    %v1913 = vpop.permute.xlu0 %1912
    %1914 = vrot.lane.b32.xlu0 %v1909, 64
    %v1915 = vpop.permute.xlu0 %1914
    %v1918 = vadd.f32 %v1783, %v1913
    %v1919 = vadd.f32 %v1784, %v1915
    %v1920 = vtanh.pop %v1918
    %v1921 = vtanh.pop %v1919
    %v1922 = vsub.f32 %v1778, %v1920
    %v1923 = vsub.f32 %v1779, %v1921
    %1926 = vrot.lane.b32.xlu0 %v1922, 96
    %v1927 = vpop.permute.xlu0 %1926
    %1928 = vrot.lane.b32.xlu0 %v1923, 96
    %v1929 = vpop.permute.xlu0 %1928
    %v1932 = vmul.f32 %v1895, %v1927
    %v1933 = vmul.f32 %v1897, %v1929
    %1936 = vrot.lane.b32.xlu0 %v1932, 32
    %v1937 = vpop.permute.xlu0 %1936
    %1938 = vrot.lane.b32.xlu0 %v1933, 32
    %v1939 = vpop.permute.xlu0 %1938
    %v1942 = vadd.f32 %v1920, %v1937
    %v1943 = vadd.f32 %v1921, %v1939
    %v1944 = vadd.f32 %v1786, %v1878
    %v1945 = vadd.f32 %v1787, %v1881
    %v1946 = vxor.u32 %v1944, 2147483648
    %v1947 = vxor.u32 %v1945, 2147483648
    %v1948 = vmul.f32 %v1946, 1.442695
    %v1949 = vpow.pop %v1948
    %v1950 = vmul.f32 %v1947, 1.442695
    %v1951 = vpow.pop %v1950
    %v1952 = vadd.f32 %v1949, 1.0
    %v1953 = vadd.f32 %v1951, 1.0
    %v1954 = vrcp.pop %v1952
    %v1955 = vmul.f32 1.0, %v1954
    %v1956 = vrcp.pop %v1953
    %v1957 = vmul.f32 1.0, %v1956
    %v1958 = vadd.f32 %v1878, %v568
    %v1959 = vadd.f32 %v1881, %v568
    %1962 = vrot.lane.b32.xlu0 %v1958, 64
    %v1963 = vpop.permute.xlu0 %1962
    %1964 = vrot.lane.b32.xlu0 %v1959, 64
    %v1965 = vpop.permute.xlu0 %1964
    %v1968 = vmul.f32 %v1955, %v1963
    %v1969 = vmul.f32 %v1957, %v1965
    %1972 = vrot.lane.b32.xlu0 %v1968, 64
    %v1973 = vpop.permute.xlu0 %1972
    %1974 = vrot.lane.b32.xlu0 %v1969, 64
    %v1975 = vpop.permute.xlu0 %1974
    %v1978 = vadd.f32 %v1786, %v1973
    %v1979 = vadd.f32 %v1787, %v1975
    %v1980 = vtanh.pop %v1978
    %v1981 = vtanh.pop %v1979
    %v1982 = vsub.f32 %v1780, %v1980
    %v1983 = vsub.f32 %v1781, %v1981
    %1986 = vrot.lane.b32.xlu0 %v1982, 96
    %v1987 = vpop.permute.xlu0 %1986
    %1988 = vrot.lane.b32.xlu0 %v1983, 96
    %v1989 = vpop.permute.xlu0 %1988
    %v1992 = vmul.f32 %v1955, %v1987
    %v1993 = vmul.f32 %v1957, %v1989
    %1996 = vrot.lane.b32.xlu0 %v1992, 32
    %v1997 = vpop.permute.xlu0 %1996
    %1998 = vrot.lane.b32.xlu0 %v1993, 32
    %v1999 = vpop.permute.xlu0 %1998
    %v2002 = vadd.f32 %v1980, %v1997
    %v2003 = vadd.f32 %v1981, %v1999
    %v2004 = vsel %vm1215, %v1942, 0.0
    %v2005 = vsel %vm1216, %v1943, 0.0
    %v2006 = vpack.c.bf16 %v2005, %v2004
    %v2008 = vunpack.c.l.b16 %v2006
    %v2009 = vunpack.c.h.b16 %v2006
    %v2010 = vpack.c.b16 %v2008, %v2008
    %v2011 = vpack.c.b16 %v2009, %v2009
    %2012 = vrot.lane.b32.xlu0 %v2010, 64
    %v2013 = vpop.permute.xlu0 %2012
    %2014 = vrot.lane.b32.xlu0 %v2011, 64
    %v2015 = vpop.permute.xlu0 %2014
    %s2018 = scalar_lea.vmem %s6, 40
    %2019 = vst.msk [vmem:[%s2018] sm:$0xf] %vm644, %v2013
    %2020 = vst.msk [vmem:[%s2018 + $0x4] sm:$0xf] %vm644, %v2015
    %v2021 = vsel %vm1188, %v2002, 0.0
    %v2022 = vsel %vm1189, %v2003, 0.0
    %v2023 = vpack.c.bf16 %v2022, %v2021
    %v2025 = vunpack.c.l.b16 %v2023
    %v2026 = vunpack.c.h.b16 %v2023
    %v2027 = vpack.c.b16 %v2025, %v2025
    %v2028 = vpack.c.b16 %v2026, %v2026
    %2029 = vrot.lane.b32.xlu0 %v2027, 64
    %v2030 = vpop.permute.xlu0 %2029
    %2031 = vrot.lane.b32.xlu0 %v2028, 64
    %v2032 = vpop.permute.xlu0 %2031
    %s2035 = scalar_lea.vmem %s7, 16
    %2036 = vst.msk [vmem:[%s2035] sm:$0xf] %vm644, %v2030
    %2037 = vst.msk [vmem:[%s2035 + $0x4] sm:$0xf] %vm644, %v2032
    %v2038 = vsel %vm1215, %v1942, %v1778
    %v2039 = vsel %vm1216, %v1943, %v1779
    %v2040 = vsel %vm1188, %v2002, %v1780
    %v2041 = vsel %vm1189, %v2003, %v1781
    %s2042 = scalar_lea.vmem [#allocation2], 96
    %v2043 = vld [vmem:[%s2042] sm:$0xff]
    %v2044 = vld [vmem:[%s2042 + $0x8] sm:$0xff]
    %s2045 = scalar_lea.vmem [#allocation3], 16
    %v2046 = vld [vmem:[%s2045] sm:$0xff]
    %v2047 = vld [vmem:[%s2045 + $0x8] sm:$0xff]
    %v2048 = vpack.c.bf16 %v2039, %v2038
    %2050 = vrot.lane.b32.xlu0 %v2048, 64
    %v2051 = vpop.permute.xlu0 %2050
    %v2053 = vsel %vm101, %v2051, 0
    %2055 = vmatprep.subr.bf16.mxu0 0
    %2056 = vmatpush1.bf16.msra.mxu0 %v389
    %2057 = vmatprep.subr.bf16.mxu0 0
    %2058 = vmatpush1.bf16.msra.mxu0 %v390
    %2059 = vmatprep.subr.bf16.mxu0 0
    %2060 = vmatpush1.bf16.msra.mxu0 0
    %2061 = vmatprep.subr.bf16.mxu0 0
    %2062 = vmatpush1.bf16.msra.mxu0 0
    %2063 = vmatprep.subr.bf16.mxu0 0
    %2064 = vmatpush1.bf16.msra.mxu0 0
    %2065 = vmatprep.subr.bf16.mxu0 0
    %2066 = vmatpush1.bf16.msra.mxu0 0
    %2067 = vmatprep.subr.bf16.mxu0 0
    %2068 = vmatpush1.bf16.msra.mxu0 0
    %2069 = vmatprep.subr.bf16.mxu0 0
    %2070 = vmatpush1.bf16.msra.mxu0 0
    %2071 = vmatprep.subr.bf16.mxu0 0
    %2072 = vmatpush1.bf16.msra.mxu0 0
    %2073 = vmatprep.subr.bf16.mxu0 0
    %2074 = vmatpush1.bf16.msra.mxu0 0
    %2075 = vmatprep.subr.bf16.mxu0 0
    %2076 = vmatpush1.bf16.msra.mxu0 0
    %2077 = vmatprep.subr.bf16.mxu0 0
    %2078 = vmatpush1.bf16.msra.mxu0 0
    %2079 = vmatprep.subr.bf16.mxu0 0
    %2080 = vmatpush1.bf16.msra.mxu0 0
    %2081 = vmatprep.subr.bf16.mxu0 0
    %2082 = vmatpush1.bf16.msra.mxu0 0
    %2083 = vmatprep.subr.bf16.mxu0 0
    %2084 = vmatpush1.bf16.msra.mxu0 0
    %2085 = vmatprep.subr.bf16.mxu0 0
    %2086 = vmatpush1.bf16.msra.mxu0 0
    %2087 = vmatprep.mubr.bf16.mxu0 0
    %2088 = vmatmul.mubr.bf16.gmra.mrb[0].mxu0 %v2053
    %v2089 = vpop.f32.mrb[0].mxu0
    %v2090 = vadd.f32 0.0, %v2089
    %v2091 = vpop.f32.mrb[0].mxu0
    %v2092 = vpop.f32.mrb[0].mxu0
    %v2093 = vadd.f32 0.0, %v2092
    %v2094 = vpop.f32.mrb[0].mxu0
    %2095 = vdwg.mxu0
    %v2096 = vpack.c.bf16 %v2041, %v2040
    %2098 = vrot.lane.b32.xlu0 %v2096, 64
    %v2099 = vpop.permute.xlu0 %2098
    %v2101 = vsel %vm101, %v2099, 0
    %2103 = vmatprep.subr.bf16.mxu0 0
    %2104 = vmatpush1.bf16.msra.mxu0 %v445
    %2105 = vmatprep.subr.bf16.mxu0 0
    %2106 = vmatpush1.bf16.msra.mxu0 %v446
    %2107 = vmatprep.subr.bf16.mxu0 0
    %2108 = vmatpush1.bf16.msra.mxu0 0
    %2109 = vmatprep.subr.bf16.mxu0 0
    %2110 = vmatpush1.bf16.msra.mxu0 0
    %2111 = vmatprep.subr.bf16.mxu0 0
    %2112 = vmatpush1.bf16.msra.mxu0 0
    %2113 = vmatprep.subr.bf16.mxu0 0
    %2114 = vmatpush1.bf16.msra.mxu0 0
    %2115 = vmatprep.subr.bf16.mxu0 0
    %2116 = vmatpush1.bf16.msra.mxu0 0
    %2117 = vmatprep.subr.bf16.mxu0 0
    %2118 = vmatpush1.bf16.msra.mxu0 0
    %2119 = vmatprep.subr.bf16.mxu0 0
    %2120 = vmatpush1.bf16.msra.mxu0 0
    %2121 = vmatprep.subr.bf16.mxu0 0
    %2122 = vmatpush1.bf16.msra.mxu0 0
    %2123 = vmatprep.subr.bf16.mxu0 0
    %2124 = vmatpush1.bf16.msra.mxu0 0
    %2125 = vmatprep.subr.bf16.mxu0 0
    %2126 = vmatpush1.bf16.msra.mxu0 0
    %2127 = vmatprep.subr.bf16.mxu0 0
    %2128 = vmatpush1.bf16.msra.mxu0 0
    %2129 = vmatprep.subr.bf16.mxu0 0
    %2130 = vmatpush1.bf16.msra.mxu0 0
    %2131 = vmatprep.subr.bf16.mxu0 0
    %2132 = vmatpush1.bf16.msra.mxu0 0
    %2133 = vmatprep.subr.bf16.mxu0 0
    %2134 = vmatpush1.bf16.msra.mxu0 0
    %2135 = vmatprep.mubr.bf16.mxu0 0
    %2136 = vmatmul.mubr.bf16.gmra.mrb[0].mxu0 %v2101
    %v2137 = vpop.f32.mrb[0].mxu0
    %v2138 = vadd.f32 0.0, %v2137
    %v2139 = vpop.f32.mrb[0].mxu0
    %v2140 = vpop.f32.mrb[0].mxu0
    %v2141 = vadd.f32 0.0, %v2140
    %v2142 = vpop.f32.mrb[0].mxu0
    %2143 = vdwg.mxu0
    %v2144 = vadd.f32 %v2043, %v2090
    %v2145 = vadd.f32 %v2044, %v2093
    %v2146 = vxor.u32 %v2144, 2147483648
    %v2147 = vxor.u32 %v2145, 2147483648
    %v2148 = vmul.f32 %v2146, 1.442695
    %v2149 = vpow.pop %v2148
    %v2150 = vmul.f32 %v2147, 1.442695
    %v2151 = vpow.pop %v2150
    %v2152 = vadd.f32 %v2149, 1.0
    %v2153 = vadd.f32 %v2151, 1.0
    %v2154 = vrcp.pop %v2152
    %v2155 = vmul.f32 1.0, %v2154
    %v2156 = vrcp.pop %v2153
    %v2157 = vmul.f32 1.0, %v2156
    %v2158 = vadd.f32 %v2090, %v505
    %v2159 = vadd.f32 %v2093, %v505
    %2162 = vrot.lane.b32.xlu0 %v2158, 64
    %v2163 = vpop.permute.xlu0 %2162
    %2164 = vrot.lane.b32.xlu0 %v2159, 64
    %v2165 = vpop.permute.xlu0 %2164
    %v2168 = vmul.f32 %v2155, %v2163
    %v2169 = vmul.f32 %v2157, %v2165
    %2172 = vrot.lane.b32.xlu0 %v2168, 64
    %v2173 = vpop.permute.xlu0 %2172
    %2174 = vrot.lane.b32.xlu0 %v2169, 64
    %v2175 = vpop.permute.xlu0 %2174
    %v2178 = vadd.f32 %v2043, %v2173
    %v2179 = vadd.f32 %v2044, %v2175
    %v2180 = vtanh.pop %v2178
    %v2181 = vtanh.pop %v2179
    %v2182 = vsub.f32 %v2038, %v2180
    %v2183 = vsub.f32 %v2039, %v2181
    %2186 = vrot.lane.b32.xlu0 %v2182, 96
    %v2187 = vpop.permute.xlu0 %2186
    %2188 = vrot.lane.b32.xlu0 %v2183, 96
    %v2189 = vpop.permute.xlu0 %2188
    %v2192 = vmul.f32 %v2155, %v2187
    %v2193 = vmul.f32 %v2157, %v2189
    %2196 = vrot.lane.b32.xlu0 %v2192, 32
    %v2197 = vpop.permute.xlu0 %2196
    %2198 = vrot.lane.b32.xlu0 %v2193, 32
    %v2199 = vpop.permute.xlu0 %2198
    %v2202 = vadd.f32 %v2180, %v2197
    %v2203 = vadd.f32 %v2181, %v2199
    %v2204 = vadd.f32 %v2046, %v2138
    %v2205 = vadd.f32 %v2047, %v2141
    %v2206 = vxor.u32 %v2204, 2147483648
    %v2207 = vxor.u32 %v2205, 2147483648
    %v2208 = vmul.f32 %v2206, 1.442695
    %v2209 = vpow.pop %v2208
    %v2210 = vmul.f32 %v2207, 1.442695
    %v2211 = vpow.pop %v2210
    %v2212 = vadd.f32 %v2209, 1.0
    %v2213 = vadd.f32 %v2211, 1.0
    %v2214 = vrcp.pop %v2212
    %v2215 = vmul.f32 1.0, %v2214
    %v2216 = vrcp.pop %v2213
    %v2217 = vmul.f32 1.0, %v2216
    %v2218 = vadd.f32 %v2138, %v568
    %v2219 = vadd.f32 %v2141, %v568
    %2222 = vrot.lane.b32.xlu0 %v2218, 64
    %v2223 = vpop.permute.xlu0 %2222
    %2224 = vrot.lane.b32.xlu0 %v2219, 64
    %v2225 = vpop.permute.xlu0 %2224
    %v2228 = vmul.f32 %v2215, %v2223
    %v2229 = vmul.f32 %v2217, %v2225
    %2232 = vrot.lane.b32.xlu0 %v2228, 64
    %v2233 = vpop.permute.xlu0 %2232
    %2234 = vrot.lane.b32.xlu0 %v2229, 64
    %v2235 = vpop.permute.xlu0 %2234
    %v2238 = vadd.f32 %v2046, %v2233
    %v2239 = vadd.f32 %v2047, %v2235
    %v2240 = vtanh.pop %v2238
    %v2241 = vtanh.pop %v2239
    %v2242 = vsub.f32 %v2040, %v2240
    %v2243 = vsub.f32 %v2041, %v2241
    %2246 = vrot.lane.b32.xlu0 %v2242, 96
    %v2247 = vpop.permute.xlu0 %2246
    %2248 = vrot.lane.b32.xlu0 %v2243, 96
    %v2249 = vpop.permute.xlu0 %2248
    %v2252 = vmul.f32 %v2215, %v2247
    %v2253 = vmul.f32 %v2217, %v2249
    %2256 = vrot.lane.b32.xlu0 %v2252, 32
    %v2257 = vpop.permute.xlu0 %2256
    %2258 = vrot.lane.b32.xlu0 %v2253, 32
    %v2259 = vpop.permute.xlu0 %2258
    %v2262 = vadd.f32 %v2240, %v2257
    %v2263 = vadd.f32 %v2241, %v2259
    %v2264 = vsel %vm931, %v2202, 0.0
    %v2265 = vsel %vm932, %v2203, 0.0
    %v2266 = vpack.c.bf16 %v2265, %v2264
    %v2268 = vunpack.c.l.b16 %v2266
    %v2269 = vunpack.c.h.b16 %v2266
    %v2270 = vpack.c.b16 %v2268, %v2268
    %v2271 = vpack.c.b16 %v2269, %v2269
    %2272 = vrot.lane.b32.xlu0 %v2270, 64
    %v2273 = vpop.permute.xlu0 %2272
    %2274 = vrot.lane.b32.xlu0 %v2271, 64
    %v2275 = vpop.permute.xlu0 %2274
    %s2278 = scalar_lea.vmem %s6, 48
    %2279 = vst.msk [vmem:[%s2278] sm:$0xf] %vm644, %v2273
    %2280 = vst.msk [vmem:[%s2278 + $0x4] sm:$0xf] %vm644, %v2275
    %v2281 = vsel %vm904, %v2262, 0.0
    %v2282 = vsel %vm905, %v2263, 0.0
    %v2283 = vpack.c.bf16 %v2282, %v2281
    %v2285 = vunpack.c.l.b16 %v2283
    %v2286 = vunpack.c.h.b16 %v2283
    %v2287 = vpack.c.b16 %v2285, %v2285
    %v2288 = vpack.c.b16 %v2286, %v2286
    %2289 = vrot.lane.b32.xlu0 %v2287, 64
    %v2290 = vpop.permute.xlu0 %2289
    %2291 = vrot.lane.b32.xlu0 %v2288, 64
    %v2292 = vpop.permute.xlu0 %2291
    %s2295 = scalar_lea.vmem %s7, 8
    %2296 = vst.msk [vmem:[%s2295] sm:$0xf] %vm644, %v2290
    %2297 = vst.msk [vmem:[%s2295 + $0x4] sm:$0xf] %vm644, %v2292
    %v2298 = vsel %vm931, %v2202, %v2038
    %v2299 = vsel %vm932, %v2203, %v2039
    %v2300 = vsel %vm904, %v2262, %v2040
    %v2301 = vsel %vm905, %v2263, %v2041
    %s2302 = scalar_lea.vmem [#allocation2], 112
    %v2303 = vld [vmem:[%s2302] sm:$0xff]
    %v2304 = vld [vmem:[%s2302 + $0x8] sm:$0xff]
    %v2305 = vld [vmem:[#allocation3] sm:$0xff]
    %v2306 = vld [vmem:[#allocation3 + $0x8] sm:$0xff]
    %v2307 = vpack.c.bf16 %v2299, %v2298
    %2309 = vrot.lane.b32.xlu0 %v2307, 64
    %v2310 = vpop.permute.xlu0 %2309
    %v2312 = vsel %vm101, %v2310, 0
    %2314 = vmatprep.subr.bf16.mxu0 0
    %2315 = vmatpush1.bf16.msra.mxu0 %v389
    %2316 = vmatprep.subr.bf16.mxu0 0
    %2317 = vmatpush1.bf16.msra.mxu0 %v390
    %2318 = vmatprep.subr.bf16.mxu0 0
    %2319 = vmatpush1.bf16.msra.mxu0 0
    %2320 = vmatprep.subr.bf16.mxu0 0
    %2321 = vmatpush1.bf16.msra.mxu0 0
    %2322 = vmatprep.subr.bf16.mxu0 0
    %2323 = vmatpush1.bf16.msra.mxu0 0
    %2324 = vmatprep.subr.bf16.mxu0 0
    %2325 = vmatpush1.bf16.msra.mxu0 0
    %2326 = vmatprep.subr.bf16.mxu0 0
    %2327 = vmatpush1.bf16.msra.mxu0 0
    %2328 = vmatprep.subr.bf16.mxu0 0
    %2329 = vmatpush1.bf16.msra.mxu0 0
    %2330 = vmatprep.subr.bf16.mxu0 0
    %2331 = vmatpush1.bf16.msra.mxu0 0
    %2332 = vmatprep.subr.bf16.mxu0 0
    %2333 = vmatpush1.bf16.msra.mxu0 0
    %2334 = vmatprep.subr.bf16.mxu0 0
    %2335 = vmatpush1.bf16.msra.mxu0 0
    %2336 = vmatprep.subr.bf16.mxu0 0
    %2337 = vmatpush1.bf16.msra.mxu0 0
    %2338 = vmatprep.subr.bf16.mxu0 0
    %2339 = vmatpush1.bf16.msra.mxu0 0
    %2340 = vmatprep.subr.bf16.mxu0 0
    %2341 = vmatpush1.bf16.msra.mxu0 0
    %2342 = vmatprep.subr.bf16.mxu0 0
    %2343 = vmatpush1.bf16.msra.mxu0 0
    %2344 = vmatprep.subr.bf16.mxu0 0
    %2345 = vmatpush1.bf16.msra.mxu0 0
    %2346 = vmatprep.mubr.bf16.mxu0 0
    %2347 = vmatmul.mubr.bf16.gmra.mrb[0].mxu0 %v2312
    %v2348 = vpop.f32.mrb[0].mxu0
    %v2349 = vadd.f32 0.0, %v2348
    %v2350 = vpop.f32.mrb[0].mxu0
    %v2351 = vpop.f32.mrb[0].mxu0
    %v2352 = vadd.f32 0.0, %v2351
    %v2353 = vpop.f32.mrb[0].mxu0
    %2354 = vdwg.mxu0
    %v2355 = vpack.c.bf16 %v2301, %v2300
    %2357 = vrot.lane.b32.xlu0 %v2355, 64
    %v2358 = vpop.permute.xlu0 %2357
    %v2360 = vsel %vm101, %v2358, 0
    %2362 = vmatprep.subr.bf16.mxu0 0
    %2363 = vmatpush1.bf16.msra.mxu0 %v445
    %2364 = vmatprep.subr.bf16.mxu0 0
    %2365 = vmatpush1.bf16.msra.mxu0 %v446
    %2366 = vmatprep.subr.bf16.mxu0 0
    %2367 = vmatpush1.bf16.msra.mxu0 0
    %2368 = vmatprep.subr.bf16.mxu0 0
    %2369 = vmatpush1.bf16.msra.mxu0 0
    %2370 = vmatprep.subr.bf16.mxu0 0
    %2371 = vmatpush1.bf16.msra.mxu0 0
    %2372 = vmatprep.subr.bf16.mxu0 0
    %2373 = vmatpush1.bf16.msra.mxu0 0
    %2374 = vmatprep.subr.bf16.mxu0 0
    %2375 = vmatpush1.bf16.msra.mxu0 0
    %2376 = vmatprep.subr.bf16.mxu0 0
    %2377 = vmatpush1.bf16.msra.mxu0 0
    %2378 = vmatprep.subr.bf16.mxu0 0
    %2379 = vmatpush1.bf16.msra.mxu0 0
    %2380 = vmatprep.subr.bf16.mxu0 0
    %2381 = vmatpush1.bf16.msra.mxu0 0
    %2382 = vmatprep.subr.bf16.mxu0 0
    %2383 = vmatpush1.bf16.msra.mxu0 0
    %2384 = vmatprep.subr.bf16.mxu0 0
    %2385 = vmatpush1.bf16.msra.mxu0 0
    %2386 = vmatprep.subr.bf16.mxu0 0
    %2387 = vmatpush1.bf16.msra.mxu0 0
    %2388 = vmatprep.subr.bf16.mxu0 0
    %2389 = vmatpush1.bf16.msra.mxu0 0
    %2390 = vmatprep.subr.bf16.mxu0 0
    %2391 = vmatpush1.bf16.msra.mxu0 0
    %2392 = vmatprep.subr.bf16.mxu0 0
    %2393 = vmatpush1.bf16.msra.mxu0 0
    %2394 = vmatprep.mubr.bf16.mxu0 0
    %2395 = vmatmul.mubr.bf16.gmra.mrb[0].mxu0 %v2360
    %v2396 = vpop.f32.mrb[0].mxu0
    %v2397 = vadd.f32 0.0, %v2396
    %v2398 = vpop.f32.mrb[0].mxu0
    %v2399 = vpop.f32.mrb[0].mxu0
    %v2400 = vadd.f32 0.0, %v2399
    %v2401 = vpop.f32.mrb[0].mxu0
    %2402 = vdwg.mxu0
    %v2403 = vadd.f32 %v2303, %v2349
    %v2404 = vadd.f32 %v2304, %v2352
    %v2405 = vxor.u32 %v2403, 2147483648
    %v2406 = vxor.u32 %v2404, 2147483648
    %v2407 = vmul.f32 %v2405, 1.442695
    %v2408 = vpow.pop %v2407
    %v2409 = vmul.f32 %v2406, 1.442695
    %v2410 = vpow.pop %v2409
    %v2411 = vadd.f32 %v2408, 1.0
    %v2412 = vadd.f32 %v2410, 1.0
    %v2413 = vrcp.pop %v2411
    %v2414 = vmul.f32 1.0, %v2413
    %v2415 = vrcp.pop %v2412
    %v2416 = vmul.f32 1.0, %v2415
    %v2417 = vadd.f32 %v2349, %v505
    %v2418 = vadd.f32 %v2352, %v505
    %2421 = vrot.lane.b32.xlu0 %v2417, 64
    %v2422 = vpop.permute.xlu0 %2421
    %2423 = vrot.lane.b32.xlu0 %v2418, 64
    %v2424 = vpop.permute.xlu0 %2423
    %v2427 = vmul.f32 %v2414, %v2422
    %v2428 = vmul.f32 %v2416, %v2424
    %2431 = vrot.lane.b32.xlu0 %v2427, 64
    %v2432 = vpop.permute.xlu0 %2431
    %2433 = vrot.lane.b32.xlu0 %v2428, 64
    %v2434 = vpop.permute.xlu0 %2433
    %v2437 = vadd.f32 %v2303, %v2432
    %v2438 = vadd.f32 %v2304, %v2434
    %v2439 = vtanh.pop %v2437
    %v2440 = vtanh.pop %v2438
    %v2441 = vsub.f32 %v2298, %v2439
    %v2442 = vsub.f32 %v2299, %v2440
    %2445 = vrot.lane.b32.xlu0 %v2441, 96
    %v2446 = vpop.permute.xlu0 %2445
    %2447 = vrot.lane.b32.xlu0 %v2442, 96
    %v2448 = vpop.permute.xlu0 %2447
    %v2451 = vmul.f32 %v2414, %v2446
    %v2452 = vmul.f32 %v2416, %v2448
    %2455 = vrot.lane.b32.xlu0 %v2451, 32
    %v2456 = vpop.permute.xlu0 %2455
    %2457 = vrot.lane.b32.xlu0 %v2452, 32
    %v2458 = vpop.permute.xlu0 %2457
    %v2461 = vadd.f32 %v2439, %v2456
    %v2462 = vadd.f32 %v2440, %v2458
    %v2463 = vadd.f32 %v2305, %v2397
    %v2464 = vadd.f32 %v2306, %v2400
    %v2465 = vxor.u32 %v2463, 2147483648
    %v2466 = vxor.u32 %v2464, 2147483648
    %v2467 = vmul.f32 %v2465, 1.442695
    %v2468 = vpow.pop %v2467
    %v2469 = vmul.f32 %v2466, 1.442695
    %v2470 = vpow.pop %v2469
    %v2471 = vadd.f32 %v2468, 1.0
    %v2472 = vadd.f32 %v2470, 1.0
    %v2473 = vrcp.pop %v2471
    %v2474 = vmul.f32 1.0, %v2473
    %v2475 = vrcp.pop %v2472
    %v2476 = vmul.f32 1.0, %v2475
    %v2477 = vadd.f32 %v2397, %v568
    %v2478 = vadd.f32 %v2400, %v568
    %2481 = vrot.lane.b32.xlu0 %v2477, 64
    %v2482 = vpop.permute.xlu0 %2481
    %2483 = vrot.lane.b32.xlu0 %v2478, 64
    %v2484 = vpop.permute.xlu0 %2483
    %v2487 = vmul.f32 %v2474, %v2482
    %v2488 = vmul.f32 %v2476, %v2484
    %2491 = vrot.lane.b32.xlu0 %v2487, 64
    %v2492 = vpop.permute.xlu0 %2491
    %2493 = vrot.lane.b32.xlu0 %v2488, 64
    %v2494 = vpop.permute.xlu0 %2493
    %v2497 = vadd.f32 %v2305, %v2492
    %v2498 = vadd.f32 %v2306, %v2494
    %v2499 = vtanh.pop %v2497
    %v2500 = vtanh.pop %v2498
    %v2501 = vsub.f32 %v2300, %v2499
    %v2502 = vsub.f32 %v2301, %v2500
    %2505 = vrot.lane.b32.xlu0 %v2501, 96
    %v2506 = vpop.permute.xlu0 %2505
    %2507 = vrot.lane.b32.xlu0 %v2502, 96
    %v2508 = vpop.permute.xlu0 %2507
    %v2511 = vmul.f32 %v2474, %v2506
    %v2512 = vmul.f32 %v2476, %v2508
    %2515 = vrot.lane.b32.xlu0 %v2511, 32
    %v2516 = vpop.permute.xlu0 %2515
    %2517 = vrot.lane.b32.xlu0 %v2512, 32
    %v2518 = vpop.permute.xlu0 %2517
    %v2521 = vadd.f32 %v2499, %v2516
    %v2522 = vadd.f32 %v2500, %v2518
    %v2523 = vsel %vm655, %v2461, 0.0
    %v2524 = vsel %vm656, %v2462, 0.0
    %v2525 = vpack.c.bf16 %v2524, %v2523
    %v2527 = vunpack.c.l.b16 %v2525
    %v2528 = vunpack.c.h.b16 %v2525
    %v2529 = vpack.c.b16 %v2527, %v2527
    %v2530 = vpack.c.b16 %v2528, %v2528
    %2531 = vrot.lane.b32.xlu0 %v2529, 64
    %v2532 = vpop.permute.xlu0 %2531
    %2533 = vrot.lane.b32.xlu0 %v2530, 64
    %v2534 = vpop.permute.xlu0 %2533
    %s2537 = scalar_lea.vmem %s6, 56
    %2538 = vst.msk [vmem:[%s2537] sm:$0xf] %vm644, %v2532
    %2539 = vst.msk [vmem:[%s2537 + $0x4] sm:$0xf] %vm644, %v2534
    %v2540 = vsel %vm628, %v2521, 0.0
    %v2541 = vsel %vm629, %v2522, 0.0
    %v2542 = vpack.c.bf16 %v2541, %v2540
    %v2544 = vunpack.c.l.b16 %v2542
    %v2545 = vunpack.c.h.b16 %v2542
    %v2546 = vpack.c.b16 %v2544, %v2544
    %v2547 = vpack.c.b16 %v2545, %v2545
    %2548 = vrot.lane.b32.xlu0 %v2546, 64
    %v2549 = vpop.permute.xlu0 %2548
    %2550 = vrot.lane.b32.xlu0 %v2547, 64
    %v2551 = vpop.permute.xlu0 %2550
    %2554 = vst.msk [vmem:[%s7] sm:$0xf] %vm644, %v2549
    %2555 = vst.msk [vmem:[%s7 + $0x4] sm:$0xf] %vm644, %v2551
    %v2556 = vsel %vm655, %v2461, %v2298
    %v2557 = vsel %vm656, %v2462, %v2299
    %v2558 = vsel %vm628, %v2521, %v2300
    %v2559 = vsel %vm629, %v2522, %v2301
    %2562 = vrot.lane.b32.xlu0 %v2556, 64
    %v2563 = vpop.permute.xlu0 %2562
    %2564 = vrot.lane.b32.xlu0 %v2557, 64
    %v2565 = vpop.permute.xlu0 %2564
    %2568 = vst.msk [vmem:[#allocation4] sm:$0xff] %vm101, %v2563
    %2569 = vst.msk [vmem:[#allocation4 + $0x8] sm:$0xff] %vm101, %v2565
    %2572 = vrot.lane.b32.xlu0 %v2558, 64
    %v2573 = vpop.permute.xlu0 %2572
    %2574 = vrot.lane.b32.xlu0 %v2559, 64
    %v2575 = vpop.permute.xlu0 %2574
    %2578 = vst.msk [vmem:[#allocation6] sm:$0xff] %vm101, %v2573
    %2579 = vst.msk [vmem:[#allocation6 + $0x8] sm:$0xff] %vm101, %v2575
    // Predicated region
    $region26: #{tpu_custom_call.1} parent=1 // pred_check
      _
    $region27: #{tpu_custom_call.1} parent=1 // pred_check_branch
      %2581 = sbr.rel (0) target = $region29
    $region28: #{tpu_custom_call.1} parent=1 // pred_region
      _
    $region29: #{tpu_custom_call.1} parent=1 // pred_fallthru
      _
    // Predicated region
    $region30: #{tpu_custom_call.1} parent=1 // pred_check
      _
    $region31: #{tpu_custom_call.1} parent=1 // pred_check_branch
      %2583 = sbr.rel (0) target = $region33
    $region32: #{tpu_custom_call.1} parent=1 // pred_region
      _
    $region33: #{tpu_custom_call.1} parent=1 // pred_fallthru
      _
    // Predicated region
    $region34: #{tpu_custom_call.1} parent=1 // pred_check
      _
    $region35: #{tpu_custom_call.1} parent=1 // pred_check_branch
      %2585 = sbr.rel (0) target = $region37
    $region36: #{tpu_custom_call.1} parent=1 // pred_region
      %s2587 = ssub.s32 256, 256
      %2588 = vsyncadd [#allocation5], %s2587
      %s2589 = sshll.u32 [#allocation4], 4
      %s2590 = int_to_ptr.vmem [resolvable:$true] %s2589
      %2595 = dma.vmem_to_hbm [thread:$0]  %s2590, 256, %s8, [#allocation5], 128, 128, 8
    $region37: #{tpu_custom_call.1} parent=1 // pred_fallthru
      _
    // Predicated region
    $region38: #{tpu_custom_call.1} parent=1 // pred_check
      _
    $region39: #{tpu_custom_call.1} parent=1 // pred_check_branch
      %2597 = sbr.rel (0) target = $region41
    $region40: #{tpu_custom_call.1} parent=1 // pred_region
      %s2599 = ssub.s32 256, 256
      %2600 = vsyncadd [#allocation7], %s2599
      %s2601 = sshll.u32 [#allocation6], 4
      %s2602 = int_to_ptr.vmem [resolvable:$true] %s2601
      %2607 = dma.vmem_to_hbm [thread:$0]  %s2602, 256, %s9, [#allocation7], 128, 128, 8
    $region41: #{tpu_custom_call.1} parent=1 // pred_fallthru
      _
    // Predicated region
    $region42: #{tpu_custom_call.1} parent=1 // pred_check
      _
    $region43: #{tpu_custom_call.1} parent=1 // pred_check_branch
      %2609 = sbr.rel (0) target = $region45
    $region44: #{tpu_custom_call.1} parent=1 // pred_region
      _
    $region45: #{tpu_custom_call.1} parent=1 // pred_fallthru
      _
    // Predicated region
    $region46: #{tpu_custom_call.1} parent=1 // pred_check
      _
    $region47: #{tpu_custom_call.1} parent=1 // pred_check_branch
      %2611 = sbr.rel (0) target = $region49
    $region48: #{tpu_custom_call.1} parent=1 // pred_region
      _
    $region49: #{tpu_custom_call.1} parent=1 // pred_fallthru
      _
    // Predicated region
    $region50: #{tpu_custom_call.1} parent=1 // pred_check
      _
    $region51: #{tpu_custom_call.1} parent=1 // pred_check_branch
      %2613 = sbr.rel (0) target = $region53
    $region52: #{tpu_custom_call.1} parent=1 // pred_region
      %2614 = dma.done [#allocation5], 256
    $region53: #{tpu_custom_call.1} parent=1 // pred_fallthru
      _
    // Predicated region
    $region54: #{tpu_custom_call.1} parent=1 // pred_check
      _
    $region55: #{tpu_custom_call.1} parent=1 // pred_check_branch
      %2616 = sbr.rel (0) target = $region57
    $region56: #{tpu_custom_call.1} parent=1 // pred_region
      %2617 = dma.done [#allocation7], 256
    $region57: #{tpu_custom_call.1} parent=1 // pred_fallthru
      _
    %2618 = vsyncpa [#allocation5], 1
    %2619 = vsyncpa [#allocation7], 1

</llo_original>
